<compile_context>
chip_gen: v5e
topology: v5e:2x2
jax: 0.10.0
libtpu: 0.0.40
codegen_flags: <defaults>
</compile_context>

<pallas_src>
import functools

import jax
import jax.numpy as jnp
from jax import lax
from jax.experimental import pallas as pl
from jax.experimental.pallas import tpu as pltpu


def _spatial_attention_kernel(w_ref, x_ref, o_ref, sum_ref, max_ref,
                              *, kT, kH, kW, O, W, C):
    # w_ref  : (O*2*kT*kH*kW,) f32 conv weights, PyTorch OIDHW order (SMEM)
    # x_ref  : (Bn, Cb, T, HWp)  lane-dense input block (VMEM)
    # o_ref  : (Bn, O, To, HWp)  lane-dense output block (VMEM); only lanes
    #          s = ho*W + wo with ho < Ho, wo < Wo are valid -> the wrapper
    #          crops them.  out_flat must never be consumed before that crop.
    # sum_ref/max_ref : (Bn, T, HWp) f32 running channel sum / max (VMEM)
    Bn, Cb, T, HWp = x_ref.shape
    To = o_ref.shape[2]
    cj = pl.program_id(1)
    ncj = pl.num_programs(1)
    taps_per_out = 2 * kT * kH * kW

    # ---- init running channel sum / max on the first C step -------------
    @pl.when(cj == 0)
    def _():
        sum_ref[...] = jnp.zeros(sum_ref.shape, sum_ref.dtype)
        max_ref[...] = jnp.full(max_ref.shape, -jnp.inf, max_ref.dtype)

    # ---- accumulate this channel block (streamed; bounded live vregs) ---
    for b in range(Bn):
        def c_body(c, carry):
            s, m = carry
            xc = x_ref[b, c].astype(jnp.float32)           # (T, HWp)
            return s + xc, jnp.maximum(m, xc)

        s, m = lax.fori_loop(0, Cb, c_body,
                             (sum_ref[b], max_ref[b]),
                             unroll=min(Cb, 8))
        sum_ref[b] = s
        max_ref[b] = m

    # ---- finalize: VALID 3-D conv over the 2-channel [avg|max] volume ---
    @pl.when(cj == ncj - 1)
    def _():
        inv_c = 1.0 / C
        # Hoist all weight scalar reads out of the per-batch loop.
        wvals = [[w_ref[o * taps_per_out + t] for t in range(taps_per_out)]
                 for o in range(O)]

        for b in range(Bn):
            planes = (sum_ref[b] * inv_c, max_ref[b])       # (T, HWp) each
            # TODO(synk): for large HW (e.g. 56x56) or O >= 16, chunk the lane
            # axis / accumulate through VMEM scratch (or recast the tap loop
            # as an MXU matmul) to avoid spilling the f32 accumulators.
            accs = [jnp.zeros((To, HWp), jnp.float32) for _ in range(O)]
            for ci in range(2):
                plane = planes[ci]
                for kh in range(kH):
                    for kw in range(kW):
                        d = kh * W + kw                      # pure lane shift
                        # rolled[r, s] = plane[r, (s + d) mod HWp]; valid
                        # output lanes never read the wrapped / padded region.
                        rolled = plane if d == 0 else pltpu.roll(
                            plane, shift=HWp - d, axis=1)
                        for kt in range(kT):                 # sublane slices
                            win = rolled[kt:kt + To, :]      # of rolled plane
                            tap = ((ci * kT + kt) * kH + kh) * kW + kw
                            for o in range(O):
                                accs[o] = accs[o] + wvals[o][tap] * win
            for o in range(O):
                o_ref[b, o] = jax.nn.sigmoid(accs[o]).astype(o_ref.dtype)


def spatial_attention(x, w):
    """x: (N, C, T, H, W); w: (O, 2, kT, kH, kW). Returns (N, O, To, Ho, Wo)."""
    N, C, T, H, W = x.shape
    O, two, kT, kH, kW = w.shape
    assert two == 2
    To, Ho, Wo = T - kT + 1, H - kH + 1, W - kW + 1
    HW = H * W
    HWp = ((HW + 127) // 128) * 128              # lane-dense, 128-multiple

    in_itemsize = jnp.dtype(x.dtype).itemsize
    out_itemsize = in_itemsize

    # Lane-dense reshape (+ zero-pad the lane axis; padded lanes are cropped).
    x_flat = x.reshape(N, C, T, HW)
    if HWp != HW:
        x_flat = jnp.pad(x_flat, ((0, 0), (0, 0), (0, 0), (0, HWp - HW)))
    w_flat = w.astype(jnp.float32).reshape(-1)

    # VMEM ceiling: generation-aware where queryable, conservative fallback.
    try:
        vmem_cap = int(pltpu.get_tpu_info().vmem_capacity_bytes)
    except Exception:
        vmem_cap = 64 * 1024 * 1024              # v7x-safe fallback
    vmem_ceiling = max(16 * 1024 * 1024, vmem_cap // 2)

    # Channel tile: largest divisor of C whose (Cb, T, HWp) slab stays small,
    # so VMEM is bounded independent of C (C axis becomes a reduction grid
    # axis with VMEM accumulators).
    cb_budget = 2 * 1024 * 1024
    Cb = 1
    for d in range(1, C + 1):
        if C % d == 0 and d * T * HWp * in_itemsize <= cb_budget:
            Cb = d

    # Batch tile: amortize per-step overhead, but keep >= 2 batch grid steps
    # when N >= 2 so megacore (v7x) has something to shard.
    per_b_bytes = (2 * Cb * T * HWp * in_itemsize            # x, double-buffered
                   + 2 * O * To * HWp * out_itemsize         # out, double-buffered
                   + 2 * T * HWp * 4)                        # sum/max scratch
    bn_budget = max(per_b_bytes, vmem_ceiling // 4)
    Bn = int(max(1, min(N, 8, bn_budget // per_b_bytes)))
    if N >= 2:
        Bn = min(Bn, max(1, N // 2))

    n_blocks = pl.cdiv(N, Bn)
    N_pad = n_blocks * Bn
    if N_pad != N:                                # no Bn-divides-N requirement
        x_flat = jnp.pad(x_flat, ((0, N_pad - N), (0, 0), (0, 0), (0, 0)))

    vmem_limit = int(min(vmem_ceiling,
                         max(16 * 1024 * 1024,
                             2 * Bn * per_b_bytes + (1 << 20))))

    kernel = functools.partial(_spatial_attention_kernel,
                               kT=kT, kH=kH, kW=kW, O=O, W=W, C=C)

    out_flat = pl.pallas_call(
        kernel,
        out_shape=jax.ShapeDtypeStruct((N_pad, O, To, HWp), x.dtype),
        grid=(n_blocks, C // Cb),
        in_specs=[
            # flattened conv weights -> SMEM (cheap scalar reads per tap)
            pl.BlockSpec(memory_space=pltpu.MemorySpace.SMEM),
            # (Bn, Cb, T, HWp) lane-dense block; C is the reduction axis
            pl.BlockSpec((Bn, Cb, T, HWp), lambda n, c: (n, c, 0, 0)),
        ],
        # same output block across the C axis -> accumulator-resident output
        out_specs=pl.BlockSpec((Bn, O, To, HWp), lambda n, c: (n, 0, 0, 0)),
        scratch_shapes=[
            pltpu.VMEM((Bn, T, HWp), jnp.float32),   # running channel sum
            pltpu.VMEM((Bn, T, HWp), jnp.float32),   # running channel max
        ],
        compiler_params=pltpu.CompilerParams(
            dimension_semantics=("parallel", "arbitrary"),
            vmem_limit_bytes=vmem_limit),
    )(w_flat, x_flat)

    # Crop the VALID conv region: lane s = ho*W + wo is valid for ho < Ho,
    # wo < Wo; wrapped-roll lanes, lane padding and batch padding are all
    # discarded here.  Never consume out_flat before this crop.
    out = out_flat[:N, :, :, :HW].reshape(N, O, To, H, W)
    return out[:, :, :, :Ho, :Wo]


def spatial_attention_reference(x, w):
    avg = jnp.mean(x, axis=1, keepdims=True)
    mx = jnp.max(x, axis=1, keepdims=True)
    cat = jnp.concatenate([avg, mx], axis=1)
    out = lax.conv_general_dilated(
        cat, w, window_strides=(1, 1, 1), padding="VALID",
        dimension_numbers=("NCDHW", "OIDHW", "NCDHW"))
    return jax.nn.sigmoid(out)


if __name__ == "__main__":
    key = jax.random.PRNGKey(0)
    kx, kw = jax.random.split(key)

    # Small shapes consistent with the module: x is (N, C, T, H, W).
    N, C, T, H, W = 2, 4, 8, 16, 16
    kernel_size, out_channels = 3, 4

    x = jax.random.normal(kx, (N, C, T, H, W), dtype=jnp.float32)

    # Deterministic Conv3d weight init (PyTorch default kaiming_uniform with
    # a=sqrt(5) -> uniform(-1/sqrt(fan_in), 1/sqrt(fan_in))), bias=False.
    fan_in = 2 * kernel_size ** 3
    bound = 1.0 / (fan_in ** 0.5)
    w = jax.random.uniform(
        kw, (out_channels, 2, kernel_size, kernel_size, kernel_size),
        minval=-bound, maxval=bound, dtype=jnp.float32)

    out = spatial_attention(x, w)
    out = jax.block_until_ready(out)

    ref = spatial_attention_reference(x, w)
    assert out.shape == ref.shape, (out.shape, ref.shape)
    assert jnp.allclose(out, ref, atol=1e-5, rtol=1e-5), \
        float(jnp.max(jnp.abs(out - ref)))

    print("KERNEL_OK")
</pallas_src>

<mosaic_0001>
module attributes {stable_mosaic.version = 11 : i64} {
  func.func @_spatial_attention_kernel(%arg0: i32, %arg1: i32, %arg2: memref<216xf32, #tpu.memory_space<smem>>, %arg3: memref<1x4x8x256xf32, #tpu.memory_space<vmem>>, %arg4: memref<1x4x6x256xf32, #tpu.memory_space<vmem>>, %arg5: memref<1x8x256xf32, #tpu.memory_space<vmem>>, %arg6: memref<1x8x256xf32, #tpu.memory_space<vmem>>) attributes {dimension_semantics = [#tpu.dimension_semantics<parallel>, #tpu.dimension_semantics<arbitrary>], iteration_bounds = array<i64: 2, 1>, scalar_prefetch = 0 : i64, scratch_operands = 2 : i64, tpu.core_type = #tpu.core_type<tc>, window_params = [{transform_indices = @transform_0, window_bounds = array<i64: 216>}, {transform_indices = @transform_1, window_bounds = array<i64: 1, 4, 8, 256>}, {transform_indices = @transform_2, window_bounds = array<i64: 1, 4, 6, 256>}]} {
    %c0_i32 = arith.constant 0 : i32
    %0 = arith.cmpi eq, %arg1, %c0_i32 : i32
    %1 = arith.extui %0 : i1 to i32
    %c0_i32_0 = arith.constant 0 : i32
    %2 = arith.cmpi ne, %1, %c0_i32_0 : i32
    scf.if %2 {
      %cst = arith.constant 0.000000e+00 : f32
      %36 = vector.broadcast %cst : f32 to vector<1x8x256xf32>
      %c0_27 = arith.constant 0 : index
      %c0_28 = arith.constant 0 : index
      %c0_29 = arith.constant 0 : index
      %37 = vector.load %arg5[%c0_27, %c0_28, %c0_29] : memref<1x8x256xf32, #tpu.memory_space<vmem>>, vector<1x8x256xf32>
      tpu.vector_store %arg5[%c0_27, %c0_28, %c0_29], %36 {strides = array<i32>} : memref<1x8x256xf32, #tpu.memory_space<vmem>>, vector<1x8x256xf32>,
      %cst_30 = arith.constant 0xFF800000 : f32
      %38 = vector.broadcast %cst_30 : f32 to vector<1x8x256xf32>
      %c0_31 = arith.constant 0 : index
      %c0_32 = arith.constant 0 : index
      %c0_33 = arith.constant 0 : index
      %39 = vector.load %arg6[%c0_31, %c0_32, %c0_33] : memref<1x8x256xf32, #tpu.memory_space<vmem>>, vector<1x8x256xf32>
      tpu.vector_store %arg6[%c0_31, %c0_32, %c0_33], %38 {strides = array<i32>} : memref<1x8x256xf32, #tpu.memory_space<vmem>>, vector<1x8x256xf32>,
    } else {
    }
    %c0 = arith.constant 0 : index
    %c0_1 = arith.constant 0 : index
    %c0_2 = arith.constant 0 : index
    %3 = vector.load %arg5[%c0, %c0_1, %c0_2] : memref<1x8x256xf32, #tpu.memory_space<vmem>>, vector<1x8x256xf32>
    %4 = vector.shape_cast %3 : vector<1x8x256xf32> to vector<8x256xf32>
    %c0_3 = arith.constant 0 : index
    %c0_4 = arith.constant 0 : index
    %c0_5 = arith.constant 0 : index
    %5 = vector.load %arg6[%c0_3, %c0_4, %c0_5] : memref<1x8x256xf32, #tpu.memory_space<vmem>>, vector<1x8x256xf32>
    %6 = vector.shape_cast %5 : vector<1x8x256xf32> to vector<8x256xf32>
    %c0_i32_6 = arith.constant 0 : i32
    %c0_7 = arith.constant 0 : index
    %7 = arith.index_cast %c0_i32_6 : i32 to index
    %c0_8 = arith.constant 0 : index
    %c0_9 = arith.constant 0 : index
    %8 = vector.load %arg3[%c0_7, %7, %c0_8, %c0_9] : memref<1x4x8x256xf32, #tpu.memory_space<vmem>>, vector<1x1x8x256xf32>
    %9 = vector.shape_cast %8 : vector<1x1x8x256xf32> to vector<8x256xf32>
    %10 = arith.addf %4, %9 : vector<8x256xf32>
    %11 = arith.maximumf %6, %9 : vector<8x256xf32>
    %c1_i32 = arith.constant 1 : i32
    %c0_10 = arith.constant 0 : index
    %12 = arith.index_cast %c1_i32 : i32 to index
    %c0_11 = arith.constant 0 : index
    %c0_12 = arith.constant 0 : index
    %13 = vector.load %arg3[%c0_10, %12, %c0_11, %c0_12] : memref<1x4x8x256xf32, #tpu.memory_space<vmem>>, vector<1x1x8x256xf32>
    %14 = vector.shape_cast %13 : vector<1x1x8x256xf32> to vector<8x256xf32>
    %15 = arith.addf %10, %14 : vector<8x256xf32>
    %16 = arith.maximumf %11, %14 : vector<8x256xf32>
    %c2_i32 = arith.constant 2 : i32
    %c0_13 = arith.constant 0 : index
    %17 = arith.index_cast %c2_i32 : i32 to index
    %c0_14 = arith.constant 0 : index
    %c0_15 = arith.constant 0 : index
    %18 = vector.load %arg3[%c0_13, %17, %c0_14, %c0_15] : memref<1x4x8x256xf32, #tpu.memory_space<vmem>>, vector<1x1x8x256xf32>
    %19 = vector.shape_cast %18 : vector<1x1x8x256xf32> to vector<8x256xf32>
    %20 = arith.addf %15, %19 : vector<8x256xf32>
    %21 = arith.maximumf %16, %19 : vector<8x256xf32>
    %c3_i32 = arith.constant 3 : i32
    %c0_16 = arith.constant 0 : index
    %22 = arith.index_cast %c3_i32 : i32 to index
    %c0_17 = arith.constant 0 : index
    %c0_18 = arith.constant 0 : index
    %23 = vector.load %arg3[%c0_16, %22, %c0_17, %c0_18] : memref<1x4x8x256xf32, #tpu.memory_space<vmem>>, vector<1x1x8x256xf32>
    %24 = vector.shape_cast %23 : vector<1x1x8x256xf32> to vector<8x256xf32>
    %25 = arith.addf %20, %24 : vector<8x256xf32>
    %26 = arith.maximumf %21, %24 : vector<8x256xf32>
    %c4_i32 = arith.constant 4 : i32
    %c0_19 = arith.constant 0 : index
    %c0_20 = arith.constant 0 : index
    %c0_21 = arith.constant 0 : index
    %27 = vector.load %arg5[%c0_19, %c0_20, %c0_21] : memref<1x8x256xf32, #tpu.memory_space<vmem>>, vector<1x8x256xf32>
    %28 = vector.shape_cast %27 : vector<1x8x256xf32> to vector<8x256xf32>
    %29 = vector.shape_cast %25 : vector<8x256xf32> to vector<1x8x256xf32>
    tpu.vector_store %arg5[%c0_19, %c0_20, %c0_21], %29 {strides = array<i32>} : memref<1x8x256xf32, #tpu.memory_space<vmem>>, vector<1x8x256xf32>,
    %c0_22 = arith.constant 0 : index
    %c0_23 = arith.constant 0 : index
    %c0_24 = arith.constant 0 : index
    %30 = vector.load %arg6[%c0_22, %c0_23, %c0_24] : memref<1x8x256xf32, #tpu.memory_space<vmem>>, vector<1x8x256xf32>
    %31 = vector.shape_cast %30 : vector<1x8x256xf32> to vector<8x256xf32>
    %32 = vector.shape_cast %26 : vector<8x256xf32> to vector<1x8x256xf32>
    tpu.vector_store %arg6[%c0_22, %c0_23, %c0_24], %32 {strides = array<i32>} : memref<1x8x256xf32, #tpu.memory_space<vmem>>, vector<1x8x256xf32>,
    %c0_i32_25 = arith.constant 0 : i32
    %33 = arith.cmpi eq, %arg1, %c0_i32_25 : i32
    %34 = arith.extui %33 : i1 to i32
    %c0_i32_26 = arith.constant 0 : i32
    %35 = arith.cmpi ne, %34, %c0_i32_26 : i32
    scf.if %35 {
      %c0_27 = arith.constant 0 : index
      %36 = memref.load %arg2[%c0_27] : memref<216xf32, #tpu.memory_space<smem>>
      %c1 = arith.constant 1 : index
      %37 = memref.load %arg2[%c1] : memref<216xf32, #tpu.memory_space<smem>>
      %c2 = arith.constant 2 : index
      %38 = memref.load %arg2[%c2] : memref<216xf32, #tpu.memory_space<smem>>
      %c3 = arith.constant 3 : index
      %39 = memref.load %arg2[%c3] : memref<216xf32, #tpu.memory_space<smem>>
      %c4 = arith.constant 4 : index
      %40 = memref.load %arg2[%c4] : memref<216xf32, #tpu.memory_space<smem>>
      %c5 = arith.constant 5 : index
      %41 = memref.load %arg2[%c5] : memref<216xf32, #tpu.memory_space<smem>>
      %c6 = arith.constant 6 : index
      %42 = memref.load %arg2[%c6] : memref<216xf32, #tpu.memory_space<smem>>
      %c7 = arith.constant 7 : index
      %43 = memref.load %arg2[%c7] : memref<216xf32, #tpu.memory_space<smem>>
      %c8 = arith.constant 8 : index
      %44 = memref.load %arg2[%c8] : memref<216xf32, #tpu.memory_space<smem>>
      %c9 = arith.constant 9 : index
      %45 = memref.load %arg2[%c9] : memref<216xf32, #tpu.memory_space<smem>>
      %c10 = arith.constant 10 : index
      %46 = memref.load %arg2[%c10] : memref<216xf32, #tpu.memory_space<smem>>
      %c11 = arith.constant 11 : index
      %47 = memref.load %arg2[%c11] : memref<216xf32, #tpu.memory_space<smem>>
      %c12 = arith.constant 12 : index
      %48 = memref.load %arg2[%c12] : memref<216xf32, #tpu.memory_space<smem>>
      %c13 = arith.constant 13 : index
      %49 = memref.load %arg2[%c13] : memref<216xf32, #tpu.memory_space<smem>>
      %c14 = arith.constant 14 : index
      %50 = memref.load %arg2[%c14] : memref<216xf32, #tpu.memory_space<smem>>
      %c15 = arith.constant 15 : index
      %51 = memref.load %arg2[%c15] : memref<216xf32, #tpu.memory_space<smem>>
      %c16 = arith.constant 16 : index
      %52 = memref.load %arg2[%c16] : memref<216xf32, #tpu.memory_space<smem>>
      %c17 = arith.constant 17 : index
      %53 = memref.load %arg2[%c17] : memref<216xf32, #tpu.memory_space<smem>>
      %c18 = arith.constant 18 : index
      %54 = memref.load %arg2[%c18] : memref<216xf32, #tpu.memory_space<smem>>
      %c19 = arith.constant 19 : index
      %55 = memref.load %arg2[%c19] : memref<216xf32, #tpu.memory_space<smem>>
      %c20 = arith.constant 20 : index
      %56 = memref.load %arg2[%c20] : memref<216xf32, #tpu.memory_space<smem>>
      %c21 = arith.constant 21 : index
      %57 = memref.load %arg2[%c21] : memref<216xf32, #tpu.memory_space<smem>>
      %c22 = arith.constant 22 : index
      %58 = memref.load %arg2[%c22] : memref<216xf32, #tpu.memory_space<smem>>
      %c23 = arith.constant 23 : index
      %59 = memref.load %arg2[%c23] : memref<216xf32, #tpu.memory_space<smem>>
      %c24 = arith.constant 24 : index
      %60 = memref.load %arg2[%c24] : memref<216xf32, #tpu.memory_space<smem>>
      %c25 = arith.constant 25 : index
      %61 = memref.load %arg2[%c25] : memref<216xf32, #tpu.memory_space<smem>>
      %c26 = arith.constant 26 : index
      %62 = memref.load %arg2[%c26] : memref<216xf32, #tpu.memory_space<smem>>
      %c27 = arith.constant 27 : index
      %63 = memref.load %arg2[%c27] : memref<216xf32, #tpu.memory_space<smem>>
      %c28 = arith.constant 28 : index
      %64 = memref.load %arg2[%c28] : memref<216xf32, #tpu.memory_space<smem>>
      %c29 = arith.constant 29 : index
      %65 = memref.load %arg2[%c29] : memref<216xf32, #tpu.memory_space<smem>>
      %c30 = arith.constant 30 : index
      %66 = memref.load %arg2[%c30] : memref<216xf32, #tpu.memory_space<smem>>
      %c31 = arith.constant 31 : index
      %67 = memref.load %arg2[%c31] : memref<216xf32, #tpu.memory_space<smem>>
      %c32 = arith.constant 32 : index
      %68 = memref.load %arg2[%c32] : memref<216xf32, #tpu.memory_space<smem>>
      %c33 = arith.constant 33 : index
      %69 = memref.load %arg2[%c33] : memref<216xf32, #tpu.memory_space<smem>>
      %c34 = arith.constant 34 : index
      %70 = memref.load %arg2[%c34] : memref<216xf32, #tpu.memory_space<smem>>
      %c35 = arith.constant 35 : index
      %71 = memref.load %arg2[%c35] : memref<216xf32, #tpu.memory_space<smem>>
      %c36 = arith.constant 36 : index
      %72 = memref.load %arg2[%c36] : memref<216xf32, #tpu.memory_space<smem>>
      %c37 = arith.constant 37 : index
      %73 = memref.load %arg2[%c37] : memref<216xf32, #tpu.memory_space<smem>>
      %c38 = arith.constant 38 : index
      %74 = memref.load %arg2[%c38] : memref<216xf32, #tpu.memory_space<smem>>
      %c39 = arith.constant 39 : index
      %75 = memref.load %arg2[%c39] : memref<216xf32, #tpu.memory_space<smem>>
      %c40 = arith.constant 40 : index
      %76 = memref.load %arg2[%c40] : memref<216xf32, #tpu.memory_space<smem>>
      %c41 = arith.constant 41 : index
      %77 = memref.load %arg2[%c41] : memref<216xf32, #tpu.memory_space<smem>>
      %c42 = arith.constant 42 : index
      %78 = memref.load %arg2[%c42] : memref<216xf32, #tpu.memory_space<smem>>
      %c43 = arith.constant 43 : index
      %79 = memref.load %arg2[%c43] : memref<216xf32, #tpu.memory_space<smem>>
      %c44 = arith.constant 44 : index
      %80 = memref.load %arg2[%c44] : memref<216xf32, #tpu.memory_space<smem>>
      %c45 = arith.constant 45 : index
      %81 = memref.load %arg2[%c45] : memref<216xf32, #tpu.memory_space<smem>>
      %c46 = arith.constant 46 : index
      %82 = memref.load %arg2[%c46] : memref<216xf32, #tpu.memory_space<smem>>
      %c47 = arith.constant 47 : index
      %83 = memref.load %arg2[%c47] : memref<216xf32, #tpu.memory_space<smem>>
      %c48 = arith.constant 48 : index
      %84 = memref.load %arg2[%c48] : memref<216xf32, #tpu.memory_space<smem>>
      %c49 = arith.constant 49 : index
      %85 = memref.load %arg2[%c49] : memref<216xf32, #tpu.memory_space<smem>>
      %c50 = arith.constant 50 : index
      %86 = memref.load %arg2[%c50] : memref<216xf32, #tpu.memory_space<smem>>
      %c51 = arith.constant 51 : index
      %87 = memref.load %arg2[%c51] : memref<216xf32, #tpu.memory_space<smem>>
      %c52 = arith.constant 52 : index
      %88 = memref.load %arg2[%c52] : memref<216xf32, #tpu.memory_space<smem>>
      %c53 = arith.constant 53 : index
      %89 = memref.load %arg2[%c53] : memref<216xf32, #tpu.memory_space<smem>>
      %c54 = arith.constant 54 : index
      %90 = memref.load %arg2[%c54] : memref<216xf32, #tpu.memory_space<smem>>
      %c55 = arith.constant 55 : index
      %91 = memref.load %arg2[%c55] : memref<216xf32, #tpu.memory_space<smem>>
      %c56 = arith.constant 56 : index
      %92 = memref.load %arg2[%c56] : memref<216xf32, #tpu.memory_space<smem>>
      %c57 = arith.constant 57 : index
      %93 = memref.load %arg2[%c57] : memref<216xf32, #tpu.memory_space<smem>>
      %c58 = arith.constant 58 : index
      %94 = memref.load %arg2[%c58] : memref<216xf32, #tpu.memory_space<smem>>
      %c59 = arith.constant 59 : index
      %95 = memref.load %arg2[%c59] : memref<216xf32, #tpu.memory_space<smem>>
      %c60 = arith.constant 60 : index
      %96 = memref.load %arg2[%c60] : memref<216xf32, #tpu.memory_space<smem>>
      %c61 = arith.constant 61 : index
      %97 = memref.load %arg2[%c61] : memref<216xf32, #tpu.memory_space<smem>>
      %c62 = arith.constant 62 : index
      %98 = memref.load %arg2[%c62] : memref<216xf32, #tpu.memory_space<smem>>
      %c63 = arith.constant 63 : index
      %99 = memref.load %arg2[%c63] : memref<216xf32, #tpu.memory_space<smem>>
      %c64 = arith.constant 64 : index
      %100 = memref.load %arg2[%c64] : memref<216xf32, #tpu.memory_space<smem>>
      %c65 = arith.constant 65 : index
      %101 = memref.load %arg2[%c65] : memref<216xf32, #tpu.memory_space<smem>>
      %c66 = arith.constant 66 : index
      %102 = memref.load %arg2[%c66] : memref<216xf32, #tpu.memory_space<smem>>
      %c67 = arith.constant 67 : index
      %103 = memref.load %arg2[%c67] : memref<216xf32, #tpu.memory_space<smem>>
      %c68 = arith.constant 68 : index
      %104 = memref.load %arg2[%c68] : memref<216xf32, #tpu.memory_space<smem>>
      %c69 = arith.constant 69 : index
      %105 = memref.load %arg2[%c69] : memref<216xf32, #tpu.memory_space<smem>>
      %c70 = arith.constant 70 : index
      %106 = memref.load %arg2[%c70] : memref<216xf32, #tpu.memory_space<smem>>
      %c71 = arith.constant 71 : index
      %107 = memref.load %arg2[%c71] : memref<216xf32, #tpu.memory_space<smem>>
      %c72 = arith.constant 72 : index
      %108 = memref.load %arg2[%c72] : memref<216xf32, #tpu.memory_space<smem>>
      %c73 = arith.constant 73 : index
      %109 = memref.load %arg2[%c73] : memref<216xf32, #tpu.memory_space<smem>>
      %c74 = arith.constant 74 : index
      %110 = memref.load %arg2[%c74] : memref<216xf32, #tpu.memory_space<smem>>
      %c75 = arith.constant 75 : index
      %111 = memref.load %arg2[%c75] : memref<216xf32, #tpu.memory_space<smem>>
      %c76 = arith.constant 76 : index
      %112 = memref.load %arg2[%c76] : memref<216xf32, #tpu.memory_space<smem>>
      %c77 = arith.constant 77 : index
      %113 = memref.load %arg2[%c77] : memref<216xf32, #tpu.memory_space<smem>>
      %c78 = arith.constant 78 : index
      %114 = memref.load %arg2[%c78] : memref<216xf32, #tpu.memory_space<smem>>
      %c79 = arith.constant 79 : index
      %115 = memref.load %arg2[%c79] : memref<216xf32, #tpu.memory_space<smem>>
      %c80 = arith.constant 80 : index
      %116 = memref.load %arg2[%c80] : memref<216xf32, #tpu.memory_space<smem>>
      %c81 = arith.constant 81 : index
      %117 = memref.load %arg2[%c81] : memref<216xf32, #tpu.memory_space<smem>>
      %c82 = arith.constant 82 : index
      %118 = memref.load %arg2[%c82] : memref<216xf32, #tpu.memory_space<smem>>
      %c83 = arith.constant 83 : index
      %119 = memref.load %arg2[%c83] : memref<216xf32, #tpu.memory_space<smem>>
      %c84 = arith.constant 84 : index
      %120 = memref.load %arg2[%c84] : memref<216xf32, #tpu.memory_space<smem>>
      %c85 = arith.constant 85 : index
      %121 = memref.load %arg2[%c85] : memref<216xf32, #tpu.memory_space<smem>>
      %c86 = arith.constant 86 : index
      %122 = memref.load %arg2[%c86] : memref<216xf32, #tpu.memory_space<smem>>
      %c87 = arith.constant 87 : index
      %123 = memref.load %arg2[%c87] : memref<216xf32, #tpu.memory_space<smem>>
      %c88 = arith.constant 88 : index
      %124 = memref.load %arg2[%c88] : memref<216xf32, #tpu.memory_space<smem>>
      %c89 = arith.constant 89 : index
      %125 = memref.load %arg2[%c89] : memref<216xf32, #tpu.memory_space<smem>>
      %c90 = arith.constant 90 : index
      %126 = memref.load %arg2[%c90] : memref<216xf32, #tpu.memory_space<smem>>
      %c91 = arith.constant 91 : index
      %127 = memref.load %arg2[%c91] : memref<216xf32, #tpu.memory_space<smem>>
      %c92 = arith.constant 92 : index
      %128 = memref.load %arg2[%c92] : memref<216xf32, #tpu.memory_space<smem>>
      %c93 = arith.constant 93 : index
      %129 = memref.load %arg2[%c93] : memref<216xf32, #tpu.memory_space<smem>>
      %c94 = arith.constant 94 : index
      %130 = memref.load %arg2[%c94] : memref<216xf32, #tpu.memory_space<smem>>
      %c95 = arith.constant 95 : index
      %131 = memref.load %arg2[%c95] : memref<216xf32, #tpu.memory_space<smem>>
      %c96 = arith.constant 96 : index
      %132 = memref.load %arg2[%c96] : memref<216xf32, #tpu.memory_space<smem>>
      %c97 = arith.constant 97 : index
      %133 = memref.load %arg2[%c97] : memref<216xf32, #tpu.memory_space<smem>>
      %c98 = arith.constant 98 : index
      %134 = memref.load %arg2[%c98] : memref<216xf32, #tpu.memory_space<smem>>
      %c99 = arith.constant 99 : index
      %135 = memref.load %arg2[%c99] : memref<216xf32, #tpu.memory_space<smem>>
      %c100 = arith.constant 100 : index
      %136 = memref.load %arg2[%c100] : memref<216xf32, #tpu.memory_space<smem>>
      %c101 = arith.constant 101 : index
      %137 = memref.load %arg2[%c101] : memref<216xf32, #tpu.memory_space<smem>>
      %c102 = arith.constant 102 : index
      %138 = memref.load %arg2[%c102] : memref<216xf32, #tpu.memory_space<smem>>
      %c103 = arith.constant 103 : index
      %139 = memref.load %arg2[%c103] : memref<216xf32, #tpu.memory_space<smem>>
      %c104 = arith.constant 104 : index
      %140 = memref.load %arg2[%c104] : memref<216xf32, #tpu.memory_space<smem>>
      %c105 = arith.constant 105 : index
      %141 = memref.load %arg2[%c105] : memref<216xf32, #tpu.memory_space<smem>>
      %c106 = arith.constant 106 : index
      %142 = memref.load %arg2[%c106] : memref<216xf32, #tpu.memory_space<smem>>
      %c107 = arith.constant 107 : index
      %143 = memref.load %arg2[%c107] : memref<216xf32, #tpu.memory_space<smem>>
      %c108 = arith.constant 108 : index
      %144 = memref.load %arg2[%c108] : memref<216xf32, #tpu.memory_space<smem>>
      %c109 = arith.constant 109 : index
      %145 = memref.load %arg2[%c109] : memref<216xf32, #tpu.memory_space<smem>>
      %c110 = arith.constant 110 : index
      %146 = memref.load %arg2[%c110] : memref<216xf32, #tpu.memory_space<smem>>
      %c111 = arith.constant 111 : index
      %147 = memref.load %arg2[%c111] : memref<216xf32, #tpu.memory_space<smem>>
      %c112 = arith.constant 112 : index
      %148 = memref.load %arg2[%c112] : memref<216xf32, #tpu.memory_space<smem>>
      %c113 = arith.constant 113 : index
      %149 = memref.load %arg2[%c113] : memref<216xf32, #tpu.memory_space<smem>>
      %c114 = arith.constant 114 : index
      %150 = memref.load %arg2[%c114] : memref<216xf32, #tpu.memory_space<smem>>
      %c115 = arith.constant 115 : index
      %151 = memref.load %arg2[%c115] : memref<216xf32, #tpu.memory_space<smem>>
      %c116 = arith.constant 116 : index
      %152 = memref.load %arg2[%c116] : memref<216xf32, #tpu.memory_space<smem>>
      %c117 = arith.constant 117 : index
      %153 = memref.load %arg2[%c117] : memref<216xf32, #tpu.memory_space<smem>>
      %c118 = arith.constant 118 : index
      %154 = memref.load %arg2[%c118] : memref<216xf32, #tpu.memory_space<smem>>
      %c119 = arith.constant 119 : index
      %155 = memref.load %arg2[%c119] : memref<216xf32, #tpu.memory_space<smem>>
      %c120 = arith.constant 120 : index
      %156 = memref.load %arg2[%c120] : memref<216xf32, #tpu.memory_space<smem>>
      %c121 = arith.constant 121 : index
      %157 = memref.load %arg2[%c121] : memref<216xf32, #tpu.memory_space<smem>>
      %c122 = arith.constant 122 : index
      %158 = memref.load %arg2[%c122] : memref<216xf32, #tpu.memory_space<smem>>
      %c123 = arith.constant 123 : index
      %159 = memref.load %arg2[%c123] : memref<216xf32, #tpu.memory_space<smem>>
      %c124 = arith.constant 124 : index
      %160 = memref.load %arg2[%c124] : memref<216xf32, #tpu.memory_space<smem>>
      %c125 = arith.constant 125 : index
      %161 = memref.load %arg2[%c125] : memref<216xf32, #tpu.memory_space<smem>>
      %c126 = arith.constant 126 : index
      %162 = memref.load %arg2[%c126] : memref<216xf32, #tpu.memory_space<smem>>
      %c127 = arith.constant 127 : index
      %163 = memref.load %arg2[%c127] : memref<216xf32, #tpu.memory_space<smem>>
      %c128 = arith.constant 128 : index
      %164 = memref.load %arg2[%c128] : memref<216xf32, #tpu.memory_space<smem>>
      %c129 = arith.constant 129 : index
      %165 = memref.load %arg2[%c129] : memref<216xf32, #tpu.memory_space<smem>>
      %c130 = arith.constant 130 : index
      %166 = memref.load %arg2[%c130] : memref<216xf32, #tpu.memory_space<smem>>
      %c131 = arith.constant 131 : index
      %167 = memref.load %arg2[%c131] : memref<216xf32, #tpu.memory_space<smem>>
      %c132 = arith.constant 132 : index
      %168 = memref.load %arg2[%c132] : memref<216xf32, #tpu.memory_space<smem>>
      %c133 = arith.constant 133 : index
      %169 = memref.load %arg2[%c133] : memref<216xf32, #tpu.memory_space<smem>>
      %c134 = arith.constant 134 : index
      %170 = memref.load %arg2[%c134] : memref<216xf32, #tpu.memory_space<smem>>
      %c135 = arith.constant 135 : index
      %171 = memref.load %arg2[%c135] : memref<216xf32, #tpu.memory_space<smem>>
      %c136 = arith.constant 136 : index
      %172 = memref.load %arg2[%c136] : memref<216xf32, #tpu.memory_space<smem>>
      %c137 = arith.constant 137 : index
      %173 = memref.load %arg2[%c137] : memref<216xf32, #tpu.memory_space<smem>>
      %c138 = arith.constant 138 : index
      %174 = memref.load %arg2[%c138] : memref<216xf32, #tpu.memory_space<smem>>
      %c139 = arith.constant 139 : index
      %175 = memref.load %arg2[%c139] : memref<216xf32, #tpu.memory_space<smem>>
      %c140 = arith.constant 140 : index
      %176 = memref.load %arg2[%c140] : memref<216xf32, #tpu.memory_space<smem>>
      %c141 = arith.constant 141 : index
      %177 = memref.load %arg2[%c141] : memref<216xf32, #tpu.memory_space<smem>>
      %c142 = arith.constant 142 : index
      %178 = memref.load %arg2[%c142] : memref<216xf32, #tpu.memory_space<smem>>
      %c143 = arith.constant 143 : index
      %179 = memref.load %arg2[%c143] : memref<216xf32, #tpu.memory_space<smem>>
      %c144 = arith.constant 144 : index
      %180 = memref.load %arg2[%c144] : memref<216xf32, #tpu.memory_space<smem>>
      %c145 = arith.constant 145 : index
      %181 = memref.load %arg2[%c145] : memref<216xf32, #tpu.memory_space<smem>>
      %c146 = arith.constant 146 : index
      %182 = memref.load %arg2[%c146] : memref<216xf32, #tpu.memory_space<smem>>
      %c147 = arith.constant 147 : index
      %183 = memref.load %arg2[%c147] : memref<216xf32, #tpu.memory_space<smem>>
      %c148 = arith.constant 148 : index
      %184 = memref.load %arg2[%c148] : memref<216xf32, #tpu.memory_space<smem>>
      %c149 = arith.constant 149 : index
      %185 = memref.load %arg2[%c149] : memref<216xf32, #tpu.memory_space<smem>>
      %c150 = arith.constant 150 : index
      %186 = memref.load %arg2[%c150] : memref<216xf32, #tpu.memory_space<smem>>
      %c151 = arith.constant 151 : index
      %187 = memref.load %arg2[%c151] : memref<216xf32, #tpu.memory_space<smem>>
      %c152 = arith.constant 152 : index
      %188 = memref.load %arg2[%c152] : memref<216xf32, #tpu.memory_space<smem>>
      %c153 = arith.constant 153 : index
      %189 = memref.load %arg2[%c153] : memref<216xf32, #tpu.memory_space<smem>>
      %c154 = arith.constant 154 : index
      %190 = memref.load %arg2[%c154] : memref<216xf32, #tpu.memory_space<smem>>
      %c155 = arith.constant 155 : index
      %191 = memref.load %arg2[%c155] : memref<216xf32, #tpu.memory_space<smem>>
      %c156 = arith.constant 156 : index
      %192 = memref.load %arg2[%c156] : memref<216xf32, #tpu.memory_space<smem>>
      %c157 = arith.constant 157 : index
      %193 = memref.load %arg2[%c157] : memref<216xf32, #tpu.memory_space<smem>>
      %c158 = arith.constant 158 : index
      %194 = memref.load %arg2[%c158] : memref<216xf32, #tpu.memory_space<smem>>
      %c159 = arith.constant 159 : index
      %195 = memref.load %arg2[%c159] : memref<216xf32, #tpu.memory_space<smem>>
      %c160 = arith.constant 160 : index
      %196 = memref.load %arg2[%c160] : memref<216xf32, #tpu.memory_space<smem>>
      %c161 = arith.constant 161 : index
      %197 = memref.load %arg2[%c161] : memref<216xf32, #tpu.memory_space<smem>>
      %c162 = arith.constant 162 : index
      %198 = memref.load %arg2[%c162] : memref<216xf32, #tpu.memory_space<smem>>
      %c163 = arith.constant 163 : index
      %199 = memref.load %arg2[%c163] : memref<216xf32, #tpu.memory_space<smem>>
      %c164 = arith.constant 164 : index
      %200 = memref.load %arg2[%c164] : memref<216xf32, #tpu.memory_space<smem>>
      %c165 = arith.constant 165 : index
      %201 = memref.load %arg2[%c165] : memref<216xf32, #tpu.memory_space<smem>>
      %c166 = arith.constant 166 : index
      %202 = memref.load %arg2[%c166] : memref<216xf32, #tpu.memory_space<smem>>
      %c167 = arith.constant 167 : index
      %203 = memref.load %arg2[%c167] : memref<216xf32, #tpu.memory_space<smem>>
      %c168 = arith.constant 168 : index
      %204 = memref.load %arg2[%c168] : memref<216xf32, #tpu.memory_space<smem>>
      %c169 = arith.constant 169 : index
      %205 = memref.load %arg2[%c169] : memref<216xf32, #tpu.memory_space<smem>>
      %c170 = arith.constant 170 : index
      %206 = memref.load %arg2[%c170] : memref<216xf32, #tpu.memory_space<smem>>
      %c171 = arith.constant 171 : index
      %207 = memref.load %arg2[%c171] : memref<216xf32, #tpu.memory_space<smem>>
      %c172 = arith.constant 172 : index
      %208 = memref.load %arg2[%c172] : memref<216xf32, #tpu.memory_space<smem>>
      %c173 = arith.constant 173 : index
      %209 = memref.load %arg2[%c173] : memref<216xf32, #tpu.memory_space<smem>>
      %c174 = arith.constant 174 : index
      %210 = memref.load %arg2[%c174] : memref<216xf32, #tpu.memory_space<smem>>
      %c175 = arith.constant 175 : index
      %211 = memref.load %arg2[%c175] : memref<216xf32, #tpu.memory_space<smem>>
      %c176 = arith.constant 176 : index
      %212 = memref.load %arg2[%c176] : memref<216xf32, #tpu.memory_space<smem>>
      %c177 = arith.constant 177 : index
      %213 = memref.load %arg2[%c177] : memref<216xf32, #tpu.memory_space<smem>>
      %c178 = arith.constant 178 : index
      %214 = memref.load %arg2[%c178] : memref<216xf32, #tpu.memory_space<smem>>
      %c179 = arith.constant 179 : index
      %215 = memref.load %arg2[%c179] : memref<216xf32, #tpu.memory_space<smem>>
      %c180 = arith.constant 180 : index
      %216 = memref.load %arg2[%c180] : memref<216xf32, #tpu.memory_space<smem>>
      %c181 = arith.constant 181 : index
      %217 = memref.load %arg2[%c181] : memref<216xf32, #tpu.memory_space<smem>>
      %c182 = arith.constant 182 : index
      %218 = memref.load %arg2[%c182] : memref<216xf32, #tpu.memory_space<smem>>
      %c183 = arith.constant 183 : index
      %219 = memref.load %arg2[%c183] : memref<216xf32, #tpu.memory_space<smem>>
      %c184 = arith.constant 184 : index
      %220 = memref.load %arg2[%c184] : memref<216xf32, #tpu.memory_space<smem>>
      %c185 = arith.constant 185 : index
      %221 = memref.load %arg2[%c185] : memref<216xf32, #tpu.memory_space<smem>>
      %c186 = arith.constant 186 : index
      %222 = memref.load %arg2[%c186] : memref<216xf32, #tpu.memory_space<smem>>
      %c187 = arith.constant 187 : index
      %223 = memref.load %arg2[%c187] : memref<216xf32, #tpu.memory_space<smem>>
      %c188 = arith.constant 188 : index
      %224 = memref.load %arg2[%c188] : memref<216xf32, #tpu.memory_space<smem>>
      %c189 = arith.constant 189 : index
      %225 = memref.load %arg2[%c189] : memref<216xf32, #tpu.memory_space<smem>>
      %c190 = arith.constant 190 : index
      %226 = memref.load %arg2[%c190] : memref<216xf32, #tpu.memory_space<smem>>
      %c191 = arith.constant 191 : index
      %227 = memref.load %arg2[%c191] : memref<216xf32, #tpu.memory_space<smem>>
      %c192 = arith.constant 192 : index
      %228 = memref.load %arg2[%c192] : memref<216xf32, #tpu.memory_space<smem>>
      %c193 = arith.constant 193 : index
      %229 = memref.load %arg2[%c193] : memref<216xf32, #tpu.memory_space<smem>>
      %c194 = arith.constant 194 : index
      %230 = memref.load %arg2[%c194] : memref<216xf32, #tpu.memory_space<smem>>
      %c195 = arith.constant 195 : index
      %231 = memref.load %arg2[%c195] : memref<216xf32, #tpu.memory_space<smem>>
      %c196 = arith.constant 196 : index
      %232 = memref.load %arg2[%c196] : memref<216xf32, #tpu.memory_space<smem>>
      %c197 = arith.constant 197 : index
      %233 = memref.load %arg2[%c197] : memref<216xf32, #tpu.memory_space<smem>>
      %c198 = arith.constant 198 : index
      %234 = memref.load %arg2[%c198] : memref<216xf32, #tpu.memory_space<smem>>
      %c199 = arith.constant 199 : index
      %235 = memref.load %arg2[%c199] : memref<216xf32, #tpu.memory_space<smem>>
      %c200 = arith.constant 200 : index
      %236 = memref.load %arg2[%c200] : memref<216xf32, #tpu.memory_space<smem>>
      %c201 = arith.constant 201 : index
      %237 = memref.load %arg2[%c201] : memref<216xf32, #tpu.memory_space<smem>>
      %c202 = arith.constant 202 : index
      %238 = memref.load %arg2[%c202] : memref<216xf32, #tpu.memory_space<smem>>
      %c203 = arith.constant 203 : index
      %239 = memref.load %arg2[%c203] : memref<216xf32, #tpu.memory_space<smem>>
      %c204 = arith.constant 204 : index
      %240 = memref.load %arg2[%c204] : memref<216xf32, #tpu.memory_space<smem>>
      %c205 = arith.constant 205 : index
      %241 = memref.load %arg2[%c205] : memref<216xf32, #tpu.memory_space<smem>>
      %c206 = arith.constant 206 : index
      %242 = memref.load %arg2[%c206] : memref<216xf32, #tpu.memory_space<smem>>
      %c207 = arith.constant 207 : index
      %243 = memref.load %arg2[%c207] : memref<216xf32, #tpu.memory_space<smem>>
      %c208 = arith.constant 208 : index
      %244 = memref.load %arg2[%c208] : memref<216xf32, #tpu.memory_space<smem>>
      %c209 = arith.constant 209 : index
      %245 = memref.load %arg2[%c209] : memref<216xf32, #tpu.memory_space<smem>>
      %c210 = arith.constant 210 : index
      %246 = memref.load %arg2[%c210] : memref<216xf32, #tpu.memory_space<smem>>
      %c211 = arith.constant 211 : index
      %247 = memref.load %arg2[%c211] : memref<216xf32, #tpu.memory_space<smem>>
      %c212 = arith.constant 212 : index
      %248 = memref.load %arg2[%c212] : memref<216xf32, #tpu.memory_space<smem>>
      %c213 = arith.constant 213 : index
      %249 = memref.load %arg2[%c213] : memref<216xf32, #tpu.memory_space<smem>>
      %c214 = arith.constant 214 : index
      %250 = memref.load %arg2[%c214] : memref<216xf32, #tpu.memory_space<smem>>
      %c215 = arith.constant 215 : index
      %251 = memref.load %arg2[%c215] : memref<216xf32, #tpu.memory_space<smem>>
      %c0_28 = arith.constant 0 : index
      %c0_29 = arith.constant 0 : index
      %c0_30 = arith.constant 0 : index
      %252 = vector.load %arg5[%c0_28, %c0_29, %c0_30] : memref<1x8x256xf32, #tpu.memory_space<vmem>>, vector<1x8x256xf32>
      %253 = vector.shape_cast %252 : vector<1x8x256xf32> to vector<8x256xf32>
      %cst = arith.constant 2.500000e-01 : f32
      %254 = vector.broadcast %cst : f32 to vector<8x256xf32>
      %255 = arith.mulf %253, %254 : vector<8x256xf32>
      %c0_31 = arith.constant 0 : index
      %c0_32 = arith.constant 0 : index
      %c0_33 = arith.constant 0 : index
      %256 = vector.load %arg6[%c0_31, %c0_32, %c0_33] : memref<1x8x256xf32, #tpu.memory_space<vmem>>, vector<1x8x256xf32>
      %257 = vector.shape_cast %256 : vector<1x8x256xf32> to vector<8x256xf32>
      %cst_34 = arith.constant 0.000000e+00 : f32
      %258 = vector.broadcast %cst_34 : f32 to vector<6x256xf32>
      %cst_35 = arith.constant 0.000000e+00 : f32
      %259 = vector.broadcast %cst_35 : f32 to vector<6x256xf32>
      %cst_36 = arith.constant 0.000000e+00 : f32
      %260 = vector.broadcast %cst_36 : f32 to vector<6x256xf32>
      %cst_37 = arith.constant 0.000000e+00 : f32
      %261 = vector.broadcast %cst_37 : f32 to vector<6x256xf32>
      %262 = vector.extract_strided_slice %255 {offsets = [0, 0], sizes = [6, 256], strides = [1, 1]} : vector<8x256xf32> to vector<6x256xf32>
      %263 = vector.broadcast %36 : f32 to vector<6x256xf32>
      %264 = arith.mulf %263, %262 : vector<6x256xf32>
      %265 = arith.addf %258, %264 : vector<6x256xf32>
      %266 = vector.broadcast %90 : f32 to vector<6x256xf32>
      %267 = arith.mulf %266, %262 : vector<6x256xf32>
      %268 = arith.addf %259, %267 : vector<6x256xf32>
      %269 = vector.broadcast %144 : f32 to vector<6x256xf32>
      %270 = arith.mulf %269, %262 : vector<6x256xf32>
      %271 = arith.addf %260, %270 : vector<6x256xf32>
      %272 = vector.broadcast %198 : f32 to vector<6x256xf32>
      %273 = arith.mulf %272, %262 : vector<6x256xf32>
      %274 = arith.addf %261, %273 : vector<6x256xf32>
      %275 = vector.extract_strided_slice %255 {offsets = [1, 0], sizes = [6, 256], strides = [1, 1]} : vector<8x256xf32> to vector<6x256xf32>
      %276 = vector.broadcast %45 : f32 to vector<6x256xf32>
      %277 = arith.mulf %276, %275 : vector<6x256xf32>
      %278 = arith.addf %265, %277 : vector<6x256xf32>
      %279 = vector.broadcast %99 : f32 to vector<6x256xf32>
      %280 = arith.mulf %279, %275 : vector<6x256xf32>
      %281 = arith.addf %268, %280 : vector<6x256xf32>
      %282 = vector.broadcast %153 : f32 to vector<6x256xf32>
      %283 = arith.mulf %282, %275 : vector<6x256xf32>
      %284 = arith.addf %271, %283 : vector<6x256xf32>
      %285 = vector.broadcast %207 : f32 to vector<6x256xf32>
      %286 = arith.mulf %285, %275 : vector<6x256xf32>
      %287 = arith.addf %274, %286 : vector<6x256xf32>
      %288 = vector.extract_strided_slice %255 {offsets = [2, 0], sizes = [6, 256], strides = [1, 1]} : vector<8x256xf32> to vector<6x256xf32>
      %289 = vector.broadcast %54 : f32 to vector<6x256xf32>
      %290 = arith.mulf %289, %288 : vector<6x256xf32>
      %291 = arith.addf %278, %290 : vector<6x256xf32>
      %292 = vector.broadcast %108 : f32 to vector<6x256xf32>
      %293 = arith.mulf %292, %288 : vector<6x256xf32>
      %294 = arith.addf %281, %293 : vector<6x256xf32>
      %295 = vector.broadcast %162 : f32 to vector<6x256xf32>
      %296 = arith.mulf %295, %288 : vector<6x256xf32>
      %297 = arith.addf %284, %296 : vector<6x256xf32>
      %298 = vector.broadcast %216 : f32 to vector<6x256xf32>
      %299 = arith.mulf %298, %288 : vector<6x256xf32>
      %300 = arith.addf %287, %299 : vector<6x256xf32>
      %c255_i32 = arith.constant 255 : i32
      %301 = tpu.dynamic_rotate %255 by %c255_i32 dim 1 : vector<8x256xf32>, i32 -> vector<8x256xf32>
      %302 = vector.extract_strided_slice %301 {offsets = [0, 0], sizes = [6, 256], strides = [1, 1]} : vector<8x256xf32> to vector<6x256xf32>
      %303 = vector.broadcast %37 : f32 to vector<6x256xf32>
      %304 = arith.mulf %303, %302 : vector<6x256xf32>
      %305 = arith.addf %291, %304 : vector<6x256xf32>
      %306 = vector.broadcast %91 : f32 to vector<6x256xf32>
      %307 = arith.mulf %306, %302 : vector<6x256xf32>
      %308 = arith.addf %294, %307 : vector<6x256xf32>
      %309 = vector.broadcast %145 : f32 to vector<6x256xf32>
      %310 = arith.mulf %309, %302 : vector<6x256xf32>
      %311 = arith.addf %297, %310 : vector<6x256xf32>
      %312 = vector.broadcast %199 : f32 to vector<6x256xf32>
      %313 = arith.mulf %312, %302 : vector<6x256xf32>
      %314 = arith.addf %300, %313 : vector<6x256xf32>
      %315 = vector.extract_strided_slice %301 {offsets = [1, 0], sizes = [6, 256], strides = [1, 1]} : vector<8x256xf32> to vector<6x256xf32>
      %316 = vector.broadcast %46 : f32 to vector<6x256xf32>
      %317 = arith.mulf %316, %315 : vector<6x256xf32>
      %318 = arith.addf %305, %317 : vector<6x256xf32>
      %319 = vector.broadcast %100 : f32 to vector<6x256xf32>
      %320 = arith.mulf %319, %315 : vector<6x256xf32>
      %321 = arith.addf %308, %320 : vector<6x256xf32>
      %322 = vector.broadcast %154 : f32 to vector<6x256xf32>
      %323 = arith.mulf %322, %315 : vector<6x256xf32>
      %324 = arith.addf %311, %323 : vector<6x256xf32>
      %325 = vector.broadcast %208 : f32 to vector<6x256xf32>
      %326 = arith.mulf %325, %315 : vector<6x256xf32>
      %327 = arith.addf %314, %326 : vector<6x256xf32>
      %328 = vector.extract_strided_slice %301 {offsets = [2, 0], sizes = [6, 256], strides = [1, 1]} : vector<8x256xf32> to vector<6x256xf32>
      %329 = vector.broadcast %55 : f32 to vector<6x256xf32>
      %330 = arith.mulf %329, %328 : vector<6x256xf32>
      %331 = arith.addf %318, %330 : vector<6x256xf32>
      %332 = vector.broadcast %109 : f32 to vector<6x256xf32>
      %333 = arith.mulf %332, %328 : vector<6x256xf32>
      %334 = arith.addf %321, %333 : vector<6x256xf32>
      %335 = vector.broadcast %163 : f32 to vector<6x256xf32>
      %336 = arith.mulf %335, %328 : vector<6x256xf32>
      %337 = arith.addf %324, %336 : vector<6x256xf32>
      %338 = vector.broadcast %217 : f32 to vector<6x256xf32>
      %339 = arith.mulf %338, %328 : vector<6x256xf32>
      %340 = arith.addf %327, %339 : vector<6x256xf32>
      %c254_i32 = arith.constant 254 : i32
      %341 = tpu.dynamic_rotate %255 by %c254_i32 dim 1 : vector<8x256xf32>, i32 -> vector<8x256xf32>
      %342 = vector.extract_strided_slice %341 {offsets = [0, 0], sizes = [6, 256], strides = [1, 1]} : vector<8x256xf32> to vector<6x256xf32>
      %343 = vector.broadcast %38 : f32 to vector<6x256xf32>
      %344 = arith.mulf %343, %342 : vector<6x256xf32>
      %345 = arith.addf %331, %344 : vector<6x256xf32>
      %346 = vector.broadcast %92 : f32 to vector<6x256xf32>
      %347 = arith.mulf %346, %342 : vector<6x256xf32>
      %348 = arith.addf %334, %347 : vector<6x256xf32>
      %349 = vector.broadcast %146 : f32 to vector<6x256xf32>
      %350 = arith.mulf %349, %342 : vector<6x256xf32>
      %351 = arith.addf %337, %350 : vector<6x256xf32>
      %352 = vector.broadcast %200 : f32 to vector<6x256xf32>
      %353 = arith.mulf %352, %342 : vector<6x256xf32>
      %354 = arith.addf %340, %353 : vector<6x256xf32>
      %355 = vector.extract_strided_slice %341 {offsets = [1, 0], sizes = [6, 256], strides = [1, 1]} : vector<8x256xf32> to vector<6x256xf32>
      %356 = vector.broadcast %47 : f32 to vector<6x256xf32>
      %357 = arith.mulf %356, %355 : vector<6x256xf32>
      %358 = arith.addf %345, %357 : vector<6x256xf32>
      %359 = vector.broadcast %101 : f32 to vector<6x256xf32>
      %360 = arith.mulf %359, %355 : vector<6x256xf32>
      %361 = arith.addf %348, %360 : vector<6x256xf32>
      %362 = vector.broadcast %155 : f32 to vector<6x256xf32>
      %363 = arith.mulf %362, %355 : vector<6x256xf32>
      %364 = arith.addf %351, %363 : vector<6x256xf32>
      %365 = vector.broadcast %209 : f32 to vector<6x256xf32>
      %366 = arith.mulf %365, %355 : vector<6x256xf32>
      %367 = arith.addf %354, %366 : vector<6x256xf32>
      %368 = vector.extract_strided_slice %341 {offsets = [2, 0], sizes = [6, 256], strides = [1, 1]} : vector<8x256xf32> to vector<6x256xf32>
      %369 = vector.broadcast %56 : f32 to vector<6x256xf32>
      %370 = arith.mulf %369, %368 : vector<6x256xf32>
      %371 = arith.addf %358, %370 : vector<6x256xf32>
      %372 = vector.broadcast %110 : f32 to vector<6x256xf32>
      %373 = arith.mulf %372, %368 : vector<6x256xf32>
      %374 = arith.addf %361, %373 : vector<6x256xf32>
      %375 = vector.broadcast %164 : f32 to vector<6x256xf32>
      %376 = arith.mulf %375, %368 : vector<6x256xf32>
      %377 = arith.addf %364, %376 : vector<6x256xf32>
      %378 = vector.broadcast %218 : f32 to vector<6x256xf32>
      %379 = arith.mulf %378, %368 : vector<6x256xf32>
      %380 = arith.addf %367, %379 : vector<6x256xf32>
      %c240_i32 = arith.constant 240 : i32
      %381 = tpu.dynamic_rotate %255 by %c240_i32 dim 1 : vector<8x256xf32>, i32 -> vector<8x256xf32>
      %382 = vector.extract_strided_slice %381 {offsets = [0, 0], sizes = [6, 256], strides = [1, 1]} : vector<8x256xf32> to vector<6x256xf32>
      %383 = vector.broadcast %39 : f32 to vector<6x256xf32>
      %384 = arith.mulf %383, %382 : vector<6x256xf32>
      %385 = arith.addf %371, %384 : vector<6x256xf32>
      %386 = vector.broadcast %93 : f32 to vector<6x256xf32>
      %387 = arith.mulf %386, %382 : vector<6x256xf32>
      %388 = arith.addf %374, %387 : vector<6x256xf32>
      %389 = vector.broadcast %147 : f32 to vector<6x256xf32>
      %390 = arith.mulf %389, %382 : vector<6x256xf32>
      %391 = arith.addf %377, %390 : vector<6x256xf32>
      %392 = vector.broadcast %201 : f32 to vector<6x256xf32>
      %393 = arith.mulf %392, %382 : vector<6x256xf32>
      %394 = arith.addf %380, %393 : vector<6x256xf32>
      %395 = vector.extract_strided_slice %381 {offsets = [1, 0], sizes = [6, 256], strides = [1, 1]} : vector<8x256xf32> to vector<6x256xf32>
      %396 = vector.broadcast %48 : f32 to vector<6x256xf32>
      %397 = arith.mulf %396, %395 : vector<6x256xf32>
      %398 = arith.addf %385, %397 : vector<6x256xf32>
      %399 = vector.broadcast %102 : f32 to vector<6x256xf32>
      %400 = arith.mulf %399, %395 : vector<6x256xf32>
      %401 = arith.addf %388, %400 : vector<6x256xf32>
      %402 = vector.broadcast %156 : f32 to vector<6x256xf32>
      %403 = arith.mulf %402, %395 : vector<6x256xf32>
      %404 = arith.addf %391, %403 : vector<6x256xf32>
      %405 = vector.broadcast %210 : f32 to vector<6x256xf32>
      %406 = arith.mulf %405, %395 : vector<6x256xf32>
      %407 = arith.addf %394, %406 : vector<6x256xf32>
      %408 = vector.extract_strided_slice %381 {offsets = [2, 0], sizes = [6, 256], strides = [1, 1]} : vector<8x256xf32> to vector<6x256xf32>
      %409 = vector.broadcast %57 : f32 to vector<6x256xf32>
      %410 = arith.mulf %409, %408 : vector<6x256xf32>
      %411 = arith.addf %398, %410 : vector<6x256xf32>
      %412 = vector.broadcast %111 : f32 to vector<6x256xf32>
      %413 = arith.mulf %412, %408 : vector<6x256xf32>
      %414 = arith.addf %401, %413 : vector<6x256xf32>
      %415 = vector.broadcast %165 : f32 to vector<6x256xf32>
      %416 = arith.mulf %415, %408 : vector<6x256xf32>
      %417 = arith.addf %404, %416 : vector<6x256xf32>
      %418 = vector.broadcast %219 : f32 to vector<6x256xf32>
      %419 = arith.mulf %418, %408 : vector<6x256xf32>
      %420 = arith.addf %407, %419 : vector<6x256xf32>
      %c239_i32 = arith.constant 239 : i32
      %421 = tpu.dynamic_rotate %255 by %c239_i32 dim 1 : vector<8x256xf32>, i32 -> vector<8x256xf32>
      %422 = vector.extract_strided_slice %421 {offsets = [0, 0], sizes = [6, 256], strides = [1, 1]} : vector<8x256xf32> to vector<6x256xf32>
      %423 = vector.broadcast %40 : f32 to vector<6x256xf32>
      %424 = arith.mulf %423, %422 : vector<6x256xf32>
      %425 = arith.addf %411, %424 : vector<6x256xf32>
      %426 = vector.broadcast %94 : f32 to vector<6x256xf32>
      %427 = arith.mulf %426, %422 : vector<6x256xf32>
      %428 = arith.addf %414, %427 : vector<6x256xf32>
      %429 = vector.broadcast %148 : f32 to vector<6x256xf32>
      %430 = arith.mulf %429, %422 : vector<6x256xf32>
      %431 = arith.addf %417, %430 : vector<6x256xf32>
      %432 = vector.broadcast %202 : f32 to vector<6x256xf32>
      %433 = arith.mulf %432, %422 : vector<6x256xf32>
      %434 = arith.addf %420, %433 : vector<6x256xf32>
      %435 = vector.extract_strided_slice %421 {offsets = [1, 0], sizes = [6, 256], strides = [1, 1]} : vector<8x256xf32> to vector<6x256xf32>
      %436 = vector.broadcast %49 : f32 to vector<6x256xf32>
      %437 = arith.mulf %436, %435 : vector<6x256xf32>
      %438 = arith.addf %425, %437 : vector<6x256xf32>
      %439 = vector.broadcast %103 : f32 to vector<6x256xf32>
      %440 = arith.mulf %439, %435 : vector<6x256xf32>
      %441 = arith.addf %428, %440 : vector<6x256xf32>
      %442 = vector.broadcast %157 : f32 to vector<6x256xf32>
      %443 = arith.mulf %442, %435 : vector<6x256xf32>
      %444 = arith.addf %431, %443 : vector<6x256xf32>
      %445 = vector.broadcast %211 : f32 to vector<6x256xf32>
      %446 = arith.mulf %445, %435 : vector<6x256xf32>
      %447 = arith.addf %434, %446 : vector<6x256xf32>
      %448 = vector.extract_strided_slice %421 {offsets = [2, 0], sizes = [6, 256], strides = [1, 1]} : vector<8x256xf32> to vector<6x256xf32>
      %449 = vector.broadcast %58 : f32 to vector<6x256xf32>
      %450 = arith.mulf %449, %448 : vector<6x256xf32>
      %451 = arith.addf %438, %450 : vector<6x256xf32>
      %452 = vector.broadcast %112 : f32 to vector<6x256xf32>
      %453 = arith.mulf %452, %448 : vector<6x256xf32>
      %454 = arith.addf %441, %453 : vector<6x256xf32>
      %455 = vector.broadcast %166 : f32 to vector<6x256xf32>
      %456 = arith.mulf %455, %448 : vector<6x256xf32>
      %457 = arith.addf %444, %456 : vector<6x256xf32>
      %458 = vector.broadcast %220 : f32 to vector<6x256xf32>
      %459 = arith.mulf %458, %448 : vector<6x256xf32>
      %460 = arith.addf %447, %459 : vector<6x256xf32>
      %c238_i32 = arith.constant 238 : i32
      %461 = tpu.dynamic_rotate %255 by %c238_i32 dim 1 : vector<8x256xf32>, i32 -> vector<8x256xf32>
      %462 = vector.extract_strided_slice %461 {offsets = [0, 0], sizes = [6, 256], strides = [1, 1]} : vector<8x256xf32> to vector<6x256xf32>
      %463 = vector.broadcast %41 : f32 to vector<6x256xf32>
      %464 = arith.mulf %463, %462 : vector<6x256xf32>
      %465 = arith.addf %451, %464 : vector<6x256xf32>
      %466 = vector.broadcast %95 : f32 to vector<6x256xf32>
      %467 = arith.mulf %466, %462 : vector<6x256xf32>
      %468 = arith.addf %454, %467 : vector<6x256xf32>
      %469 = vector.broadcast %149 : f32 to vector<6x256xf32>
      %470 = arith.mulf %469, %462 : vector<6x256xf32>
      %471 = arith.addf %457, %470 : vector<6x256xf32>
      %472 = vector.broadcast %203 : f32 to vector<6x256xf32>
      %473 = arith.mulf %472, %462 : vector<6x256xf32>
      %474 = arith.addf %460, %473 : vector<6x256xf32>
      %475 = vector.extract_strided_slice %461 {offsets = [1, 0], sizes = [6, 256], strides = [1, 1]} : vector<8x256xf32> to vector<6x256xf32>
      %476 = vector.broadcast %50 : f32 to vector<6x256xf32>
      %477 = arith.mulf %476, %475 : vector<6x256xf32>
      %478 = arith.addf %465, %477 : vector<6x256xf32>
      %479 = vector.broadcast %104 : f32 to vector<6x256xf32>
      %480 = arith.mulf %479, %475 : vector<6x256xf32>
      %481 = arith.addf %468, %480 : vector<6x256xf32>
      %482 = vector.broadcast %158 : f32 to vector<6x256xf32>
      %483 = arith.mulf %482, %475 : vector<6x256xf32>
      %484 = arith.addf %471, %483 : vector<6x256xf32>
      %485 = vector.broadcast %212 : f32 to vector<6x256xf32>
      %486 = arith.mulf %485, %475 : vector<6x256xf32>
      %487 = arith.addf %474, %486 : vector<6x256xf32>
      %488 = vector.extract_strided_slice %461 {offsets = [2, 0], sizes = [6, 256], strides = [1, 1]} : vector<8x256xf32> to vector<6x256xf32>
      %489 = vector.broadcast %59 : f32 to vector<6x256xf32>
      %490 = arith.mulf %489, %488 : vector<6x256xf32>
      %491 = arith.addf %478, %490 : vector<6x256xf32>
      %492 = vector.broadcast %113 : f32 to vector<6x256xf32>
      %493 = arith.mulf %492, %488 : vector<6x256xf32>
      %494 = arith.addf %481, %493 : vector<6x256xf32>
      %495 = vector.broadcast %167 : f32 to vector<6x256xf32>
      %496 = arith.mulf %495, %488 : vector<6x256xf32>
      %497 = arith.addf %484, %496 : vector<6x256xf32>
      %498 = vector.broadcast %221 : f32 to vector<6x256xf32>
      %499 = arith.mulf %498, %488 : vector<6x256xf32>
      %500 = arith.addf %487, %499 : vector<6x256xf32>
      %c224_i32 = arith.constant 224 : i32
      %501 = tpu.dynamic_rotate %255 by %c224_i32 dim 1 : vector<8x256xf32>, i32 -> vector<8x256xf32>
      %502 = vector.extract_strided_slice %501 {offsets = [0, 0], sizes = [6, 256], strides = [1, 1]} : vector<8x256xf32> to vector<6x256xf32>
      %503 = vector.broadcast %42 : f32 to vector<6x256xf32>
      %504 = arith.mulf %503, %502 : vector<6x256xf32>
      %505 = arith.addf %491, %504 : vector<6x256xf32>
      %506 = vector.broadcast %96 : f32 to vector<6x256xf32>
      %507 = arith.mulf %506, %502 : vector<6x256xf32>
      %508 = arith.addf %494, %507 : vector<6x256xf32>
      %509 = vector.broadcast %150 : f32 to vector<6x256xf32>
      %510 = arith.mulf %509, %502 : vector<6x256xf32>
      %511 = arith.addf %497, %510 : vector<6x256xf32>
      %512 = vector.broadcast %204 : f32 to vector<6x256xf32>
      %513 = arith.mulf %512, %502 : vector<6x256xf32>
      %514 = arith.addf %500, %513 : vector<6x256xf32>
      %515 = vector.extract_strided_slice %501 {offsets = [1, 0], sizes = [6, 256], strides = [1, 1]} : vector<8x256xf32> to vector<6x256xf32>
      %516 = vector.broadcast %51 : f32 to vector<6x256xf32>
      %517 = arith.mulf %516, %515 : vector<6x256xf32>
      %518 = arith.addf %505, %517 : vector<6x256xf32>
      %519 = vector.broadcast %105 : f32 to vector<6x256xf32>
      %520 = arith.mulf %519, %515 : vector<6x256xf32>
      %521 = arith.addf %508, %520 : vector<6x256xf32>
      %522 = vector.broadcast %159 : f32 to vector<6x256xf32>
      %523 = arith.mulf %522, %515 : vector<6x256xf32>
      %524 = arith.addf %511, %523 : vector<6x256xf32>
      %525 = vector.broadcast %213 : f32 to vector<6x256xf32>
      %526 = arith.mulf %525, %515 : vector<6x256xf32>
      %527 = arith.addf %514, %526 : vector<6x256xf32>
      %528 = vector.extract_strided_slice %501 {offsets = [2, 0], sizes = [6, 256], strides = [1, 1]} : vector<8x256xf32> to vector<6x256xf32>
      %529 = vector.broadcast %60 : f32 to vector<6x256xf32>
      %530 = arith.mulf %529, %528 : vector<6x256xf32>
      %531 = arith.addf %518, %530 : vector<6x256xf32>
      %532 = vector.broadcast %114 : f32 to vector<6x256xf32>
      %533 = arith.mulf %532, %528 : vector<6x256xf32>
      %534 = arith.addf %521, %533 : vector<6x256xf32>
      %535 = vector.broadcast %168 : f32 to vector<6x256xf32>
      %536 = arith.mulf %535, %528 : vector<6x256xf32>
      %537 = arith.addf %524, %536 : vector<6x256xf32>
      %538 = vector.broadcast %222 : f32 to vector<6x256xf32>
      %539 = arith.mulf %538, %528 : vector<6x256xf32>
      %540 = arith.addf %527, %539 : vector<6x256xf32>
      %c223_i32 = arith.constant 223 : i32
      %541 = tpu.dynamic_rotate %255 by %c223_i32 dim 1 : vector<8x256xf32>, i32 -> vector<8x256xf32>
      %542 = vector.extract_strided_slice %541 {offsets = [0, 0], sizes = [6, 256], strides = [1, 1]} : vector<8x256xf32> to vector<6x256xf32>
      %543 = vector.broadcast %43 : f32 to vector<6x256xf32>
      %544 = arith.mulf %543, %542 : vector<6x256xf32>
      %545 = arith.addf %531, %544 : vector<6x256xf32>
      %546 = vector.broadcast %97 : f32 to vector<6x256xf32>
      %547 = arith.mulf %546, %542 : vector<6x256xf32>
      %548 = arith.addf %534, %547 : vector<6x256xf32>
      %549 = vector.broadcast %151 : f32 to vector<6x256xf32>
      %550 = arith.mulf %549, %542 : vector<6x256xf32>
      %551 = arith.addf %537, %550 : vector<6x256xf32>
      %552 = vector.broadcast %205 : f32 to vector<6x256xf32>
      %553 = arith.mulf %552, %542 : vector<6x256xf32>
      %554 = arith.addf %540, %553 : vector<6x256xf32>
      %555 = vector.extract_strided_slice %541 {offsets = [1, 0], sizes = [6, 256], strides = [1, 1]} : vector<8x256xf32> to vector<6x256xf32>
      %556 = vector.broadcast %52 : f32 to vector<6x256xf32>
      %557 = arith.mulf %556, %555 : vector<6x256xf32>
      %558 = arith.addf %545, %557 : vector<6x256xf32>
      %559 = vector.broadcast %106 : f32 to vector<6x256xf32>
      %560 = arith.mulf %559, %555 : vector<6x256xf32>
      %561 = arith.addf %548, %560 : vector<6x256xf32>
      %562 = vector.broadcast %160 : f32 to vector<6x256xf32>
      %563 = arith.mulf %562, %555 : vector<6x256xf32>
      %564 = arith.addf %551, %563 : vector<6x256xf32>
      %565 = vector.broadcast %214 : f32 to vector<6x256xf32>
      %566 = arith.mulf %565, %555 : vector<6x256xf32>
      %567 = arith.addf %554, %566 : vector<6x256xf32>
      %568 = vector.extract_strided_slice %541 {offsets = [2, 0], sizes = [6, 256], strides = [1, 1]} : vector<8x256xf32> to vector<6x256xf32>
      %569 = vector.broadcast %61 : f32 to vector<6x256xf32>
      %570 = arith.mulf %569, %568 : vector<6x256xf32>
      %571 = arith.addf %558, %570 : vector<6x256xf32>
      %572 = vector.broadcast %115 : f32 to vector<6x256xf32>
      %573 = arith.mulf %572, %568 : vector<6x256xf32>
      %574 = arith.addf %561, %573 : vector<6x256xf32>
      %575 = vector.broadcast %169 : f32 to vector<6x256xf32>
      %576 = arith.mulf %575, %568 : vector<6x256xf32>
      %577 = arith.addf %564, %576 : vector<6x256xf32>
      %578 = vector.broadcast %223 : f32 to vector<6x256xf32>
      %579 = arith.mulf %578, %568 : vector<6x256xf32>
      %580 = arith.addf %567, %579 : vector<6x256xf32>
      %c222_i32 = arith.constant 222 : i32
      %581 = tpu.dynamic_rotate %255 by %c222_i32 dim 1 : vector<8x256xf32>, i32 -> vector<8x256xf32>
      %582 = vector.extract_strided_slice %581 {offsets = [0, 0], sizes = [6, 256], strides = [1, 1]} : vector<8x256xf32> to vector<6x256xf32>
      %583 = vector.broadcast %44 : f32 to vector<6x256xf32>
      %584 = arith.mulf %583, %582 : vector<6x256xf32>
      %585 = arith.addf %571, %584 : vector<6x256xf32>
      %586 = vector.broadcast %98 : f32 to vector<6x256xf32>
      %587 = arith.mulf %586, %582 : vector<6x256xf32>
      %588 = arith.addf %574, %587 : vector<6x256xf32>
      %589 = vector.broadcast %152 : f32 to vector<6x256xf32>
      %590 = arith.mulf %589, %582 : vector<6x256xf32>
      %591 = arith.addf %577, %590 : vector<6x256xf32>
      %592 = vector.broadcast %206 : f32 to vector<6x256xf32>
      %593 = arith.mulf %592, %582 : vector<6x256xf32>
      %594 = arith.addf %580, %593 : vector<6x256xf32>
      %595 = vector.extract_strided_slice %581 {offsets = [1, 0], sizes = [6, 256], strides = [1, 1]} : vector<8x256xf32> to vector<6x256xf32>
      %596 = vector.broadcast %53 : f32 to vector<6x256xf32>
      %597 = arith.mulf %596, %595 : vector<6x256xf32>
      %598 = arith.addf %585, %597 : vector<6x256xf32>
      %599 = vector.broadcast %107 : f32 to vector<6x256xf32>
      %600 = arith.mulf %599, %595 : vector<6x256xf32>
      %601 = arith.addf %588, %600 : vector<6x256xf32>
      %602 = vector.broadcast %161 : f32 to vector<6x256xf32>
      %603 = arith.mulf %602, %595 : vector<6x256xf32>
      %604 = arith.addf %591, %603 : vector<6x256xf32>
      %605 = vector.broadcast %215 : f32 to vector<6x256xf32>
      %606 = arith.mulf %605, %595 : vector<6x256xf32>
      %607 = arith.addf %594, %606 : vector<6x256xf32>
      %608 = vector.extract_strided_slice %581 {offsets = [2, 0], sizes = [6, 256], strides = [1, 1]} : vector<8x256xf32> to vector<6x256xf32>
      %609 = vector.broadcast %62 : f32 to vector<6x256xf32>
      %610 = arith.mulf %609, %608 : vector<6x256xf32>
      %611 = arith.addf %598, %610 : vector<6x256xf32>
      %612 = vector.broadcast %116 : f32 to vector<6x256xf32>
      %613 = arith.mulf %612, %608 : vector<6x256xf32>
      %614 = arith.addf %601, %613 : vector<6x256xf32>
      %615 = vector.broadcast %170 : f32 to vector<6x256xf32>
      %616 = arith.mulf %615, %608 : vector<6x256xf32>
      %617 = arith.addf %604, %616 : vector<6x256xf32>
      %618 = vector.broadcast %224 : f32 to vector<6x256xf32>
      %619 = arith.mulf %618, %608 : vector<6x256xf32>
      %620 = arith.addf %607, %619 : vector<6x256xf32>
      %621 = vector.extract_strided_slice %257 {offsets = [0, 0], sizes = [6, 256], strides = [1, 1]} : vector<8x256xf32> to vector<6x256xf32>
      %622 = vector.broadcast %63 : f32 to vector<6x256xf32>
      %623 = arith.mulf %622, %621 : vector<6x256xf32>
      %624 = arith.addf %611, %623 : vector<6x256xf32>
      %625 = vector.broadcast %117 : f32 to vector<6x256xf32>
      %626 = arith.mulf %625, %621 : vector<6x256xf32>
      %627 = arith.addf %614, %626 : vector<6x256xf32>
      %628 = vector.broadcast %171 : f32 to vector<6x256xf32>
      %629 = arith.mulf %628, %621 : vector<6x256xf32>
      %630 = arith.addf %617, %629 : vector<6x256xf32>
      %631 = vector.broadcast %225 : f32 to vector<6x256xf32>
      %632 = arith.mulf %631, %621 : vector<6x256xf32>
      %633 = arith.addf %620, %632 : vector<6x256xf32>
      %634 = vector.extract_strided_slice %257 {offsets = [1, 0], sizes = [6, 256], strides = [1, 1]} : vector<8x256xf32> to vector<6x256xf32>
      %635 = vector.broadcast %72 : f32 to vector<6x256xf32>
      %636 = arith.mulf %635, %634 : vector<6x256xf32>
      %637 = arith.addf %624, %636 : vector<6x256xf32>
      %638 = vector.broadcast %126 : f32 to vector<6x256xf32>
      %639 = arith.mulf %638, %634 : vector<6x256xf32>
      %640 = arith.addf %627, %639 : vector<6x256xf32>
      %641 = vector.broadcast %180 : f32 to vector<6x256xf32>
      %642 = arith.mulf %641, %634 : vector<6x256xf32>
      %643 = arith.addf %630, %642 : vector<6x256xf32>
      %644 = vector.broadcast %234 : f32 to vector<6x256xf32>
      %645 = arith.mulf %644, %634 : vector<6x256xf32>
      %646 = arith.addf %633, %645 : vector<6x256xf32>
      %647 = vector.extract_strided_slice %257 {offsets = [2, 0], sizes = [6, 256], strides = [1, 1]} : vector<8x256xf32> to vector<6x256xf32>
      %648 = vector.broadcast %81 : f32 to vector<6x256xf32>
      %649 = arith.mulf %648, %647 : vector<6x256xf32>
      %650 = arith.addf %637, %649 : vector<6x256xf32>
      %651 = vector.broadcast %135 : f32 to vector<6x256xf32>
      %652 = arith.mulf %651, %647 : vector<6x256xf32>
      %653 = arith.addf %640, %652 : vector<6x256xf32>
      %654 = vector.broadcast %189 : f32 to vector<6x256xf32>
      %655 = arith.mulf %654, %647 : vector<6x256xf32>
      %656 = arith.addf %643, %655 : vector<6x256xf32>
      %657 = vector.broadcast %243 : f32 to vector<6x256xf32>
      %658 = arith.mulf %657, %647 : vector<6x256xf32>
      %659 = arith.addf %646, %658 : vector<6x256xf32>
      %c255_i32_38 = arith.constant 255 : i32
      %660 = tpu.dynamic_rotate %257 by %c255_i32_38 dim 1 : vector<8x256xf32>, i32 -> vector<8x256xf32>
      %661 = vector.extract_strided_slice %660 {offsets = [0, 0], sizes = [6, 256], strides = [1, 1]} : vector<8x256xf32> to vector<6x256xf32>
      %662 = vector.broadcast %64 : f32 to vector<6x256xf32>
      %663 = arith.mulf %662, %661 : vector<6x256xf32>
      %664 = arith.addf %650, %663 : vector<6x256xf32>
      %665 = vector.broadcast %118 : f32 to vector<6x256xf32>
      %666 = arith.mulf %665, %661 : vector<6x256xf32>
      %667 = arith.addf %653, %666 : vector<6x256xf32>
      %668 = vector.broadcast %172 : f32 to vector<6x256xf32>
      %669 = arith.mulf %668, %661 : vector<6x256xf32>
      %670 = arith.addf %656, %669 : vector<6x256xf32>
      %671 = vector.broadcast %226 : f32 to vector<6x256xf32>
      %672 = arith.mulf %671, %661 : vector<6x256xf32>
      %673 = arith.addf %659, %672 : vector<6x256xf32>
      %674 = vector.extract_strided_slice %660 {offsets = [1, 0], sizes = [6, 256], strides = [1, 1]} : vector<8x256xf32> to vector<6x256xf32>
      %675 = vector.broadcast %73 : f32 to vector<6x256xf32>
      %676 = arith.mulf %675, %674 : vector<6x256xf32>
      %677 = arith.addf %664, %676 : vector<6x256xf32>
      %678 = vector.broadcast %127 : f32 to vector<6x256xf32>
      %679 = arith.mulf %678, %674 : vector<6x256xf32>
      %680 = arith.addf %667, %679 : vector<6x256xf32>
      %681 = vector.broadcast %181 : f32 to vector<6x256xf32>
      %682 = arith.mulf %681, %674 : vector<6x256xf32>
      %683 = arith.addf %670, %682 : vector<6x256xf32>
      %684 = vector.broadcast %235 : f32 to vector<6x256xf32>
      %685 = arith.mulf %684, %674 : vector<6x256xf32>
      %686 = arith.addf %673, %685 : vector<6x256xf32>
      %687 = vector.extract_strided_slice %660 {offsets = [2, 0], sizes = [6, 256], strides = [1, 1]} : vector<8x256xf32> to vector<6x256xf32>
      %688 = vector.broadcast %82 : f32 to vector<6x256xf32>
      %689 = arith.mulf %688, %687 : vector<6x256xf32>
      %690 = arith.addf %677, %689 : vector<6x256xf32>
      %691 = vector.broadcast %136 : f32 to vector<6x256xf32>
      %692 = arith.mulf %691, %687 : vector<6x256xf32>
      %693 = arith.addf %680, %692 : vector<6x256xf32>
      %694 = vector.broadcast %190 : f32 to vector<6x256xf32>
      %695 = arith.mulf %694, %687 : vector<6x256xf32>
      %696 = arith.addf %683, %695 : vector<6x256xf32>
      %697 = vector.broadcast %244 : f32 to vector<6x256xf32>
      %698 = arith.mulf %697, %687 : vector<6x256xf32>
      %699 = arith.addf %686, %698 : vector<6x256xf32>
      %c254_i32_39 = arith.constant 254 : i32
      %700 = tpu.dynamic_rotate %257 by %c254_i32_39 dim 1 : vector<8x256xf32>, i32 -> vector<8x256xf32>
      %701 = vector.extract_strided_slice %700 {offsets = [0, 0], sizes = [6, 256], strides = [1, 1]} : vector<8x256xf32> to vector<6x256xf32>
      %702 = vector.broadcast %65 : f32 to vector<6x256xf32>
      %703 = arith.mulf %702, %701 : vector<6x256xf32>
      %704 = arith.addf %690, %703 : vector<6x256xf32>
      %705 = vector.broadcast %119 : f32 to vector<6x256xf32>
      %706 = arith.mulf %705, %701 : vector<6x256xf32>
      %707 = arith.addf %693, %706 : vector<6x256xf32>
      %708 = vector.broadcast %173 : f32 to vector<6x256xf32>
      %709 = arith.mulf %708, %701 : vector<6x256xf32>
      %710 = arith.addf %696, %709 : vector<6x256xf32>
      %711 = vector.broadcast %227 : f32 to vector<6x256xf32>
      %712 = arith.mulf %711, %701 : vector<6x256xf32>
      %713 = arith.addf %699, %712 : vector<6x256xf32>
      %714 = vector.extract_strided_slice %700 {offsets = [1, 0], sizes = [6, 256], strides = [1, 1]} : vector<8x256xf32> to vector<6x256xf32>
      %715 = vector.broadcast %74 : f32 to vector<6x256xf32>
      %716 = arith.mulf %715, %714 : vector<6x256xf32>
      %717 = arith.addf %704, %716 : vector<6x256xf32>
      %718 = vector.broadcast %128 : f32 to vector<6x256xf32>
      %719 = arith.mulf %718, %714 : vector<6x256xf32>
      %720 = arith.addf %707, %719 : vector<6x256xf32>
      %721 = vector.broadcast %182 : f32 to vector<6x256xf32>
      %722 = arith.mulf %721, %714 : vector<6x256xf32>
      %723 = arith.addf %710, %722 : vector<6x256xf32>
      %724 = vector.broadcast %236 : f32 to vector<6x256xf32>
      %725 = arith.mulf %724, %714 : vector<6x256xf32>
      %726 = arith.addf %713, %725 : vector<6x256xf32>
      %727 = vector.extract_strided_slice %700 {offsets = [2, 0], sizes = [6, 256], strides = [1, 1]} : vector<8x256xf32> to vector<6x256xf32>
      %728 = vector.broadcast %83 : f32 to vector<6x256xf32>
      %729 = arith.mulf %728, %727 : vector<6x256xf32>
      %730 = arith.addf %717, %729 : vector<6x256xf32>
      %731 = vector.broadcast %137 : f32 to vector<6x256xf32>
      %732 = arith.mulf %731, %727 : vector<6x256xf32>
      %733 = arith.addf %720, %732 : vector<6x256xf32>
      %734 = vector.broadcast %191 : f32 to vector<6x256xf32>
      %735 = arith.mulf %734, %727 : vector<6x256xf32>
      %736 = arith.addf %723, %735 : vector<6x256xf32>
      %737 = vector.broadcast %245 : f32 to vector<6x256xf32>
      %738 = arith.mulf %737, %727 : vector<6x256xf32>
      %739 = arith.addf %726, %738 : vector<6x256xf32>
      %c240_i32_40 = arith.constant 240 : i32
      %740 = tpu.dynamic_rotate %257 by %c240_i32_40 dim 1 : vector<8x256xf32>, i32 -> vector<8x256xf32>
      %741 = vector.extract_strided_slice %740 {offsets = [0, 0], sizes = [6, 256], strides = [1, 1]} : vector<8x256xf32> to vector<6x256xf32>
      %742 = vector.broadcast %66 : f32 to vector<6x256xf32>
      %743 = arith.mulf %742, %741 : vector<6x256xf32>
      %744 = arith.addf %730, %743 : vector<6x256xf32>
      %745 = vector.broadcast %120 : f32 to vector<6x256xf32>
      %746 = arith.mulf %745, %741 : vector<6x256xf32>
      %747 = arith.addf %733, %746 : vector<6x256xf32>
      %748 = vector.broadcast %174 : f32 to vector<6x256xf32>
      %749 = arith.mulf %748, %741 : vector<6x256xf32>
      %750 = arith.addf %736, %749 : vector<6x256xf32>
      %751 = vector.broadcast %228 : f32 to vector<6x256xf32>
      %752 = arith.mulf %751, %741 : vector<6x256xf32>
      %753 = arith.addf %739, %752 : vector<6x256xf32>
      %754 = vector.extract_strided_slice %740 {offsets = [1, 0], sizes = [6, 256], strides = [1, 1]} : vector<8x256xf32> to vector<6x256xf32>
      %755 = vector.broadcast %75 : f32 to vector<6x256xf32>
      %756 = arith.mulf %755, %754 : vector<6x256xf32>
      %757 = arith.addf %744, %756 : vector<6x256xf32>
      %758 = vector.broadcast %129 : f32 to vector<6x256xf32>
      %759 = arith.mulf %758, %754 : vector<6x256xf32>
      %760 = arith.addf %747, %759 : vector<6x256xf32>
      %761 = vector.broadcast %183 : f32 to vector<6x256xf32>
      %762 = arith.mulf %761, %754 : vector<6x256xf32>
      %763 = arith.addf %750, %762 : vector<6x256xf32>
      %764 = vector.broadcast %237 : f32 to vector<6x256xf32>
      %765 = arith.mulf %764, %754 : vector<6x256xf32>
      %766 = arith.addf %753, %765 : vector<6x256xf32>
      %767 = vector.extract_strided_slice %740 {offsets = [2, 0], sizes = [6, 256], strides = [1, 1]} : vector<8x256xf32> to vector<6x256xf32>
      %768 = vector.broadcast %84 : f32 to vector<6x256xf32>
      %769 = arith.mulf %768, %767 : vector<6x256xf32>
      %770 = arith.addf %757, %769 : vector<6x256xf32>
      %771 = vector.broadcast %138 : f32 to vector<6x256xf32>
      %772 = arith.mulf %771, %767 : vector<6x256xf32>
      %773 = arith.addf %760, %772 : vector<6x256xf32>
      %774 = vector.broadcast %192 : f32 to vector<6x256xf32>
      %775 = arith.mulf %774, %767 : vector<6x256xf32>
      %776 = arith.addf %763, %775 : vector<6x256xf32>
      %777 = vector.broadcast %246 : f32 to vector<6x256xf32>
      %778 = arith.mulf %777, %767 : vector<6x256xf32>
      %779 = arith.addf %766, %778 : vector<6x256xf32>
      %c239_i32_41 = arith.constant 239 : i32
      %780 = tpu.dynamic_rotate %257 by %c239_i32_41 dim 1 : vector<8x256xf32>, i32 -> vector<8x256xf32>
      %781 = vector.extract_strided_slice %780 {offsets = [0, 0], sizes = [6, 256], strides = [1, 1]} : vector<8x256xf32> to vector<6x256xf32>
      %782 = vector.broadcast %67 : f32 to vector<6x256xf32>
      %783 = arith.mulf %782, %781 : vector<6x256xf32>
      %784 = arith.addf %770, %783 : vector<6x256xf32>
      %785 = vector.broadcast %121 : f32 to vector<6x256xf32>
      %786 = arith.mulf %785, %781 : vector<6x256xf32>
      %787 = arith.addf %773, %786 : vector<6x256xf32>
      %788 = vector.broadcast %175 : f32 to vector<6x256xf32>
      %789 = arith.mulf %788, %781 : vector<6x256xf32>
      %790 = arith.addf %776, %789 : vector<6x256xf32>
      %791 = vector.broadcast %229 : f32 to vector<6x256xf32>
      %792 = arith.mulf %791, %781 : vector<6x256xf32>
      %793 = arith.addf %779, %792 : vector<6x256xf32>
      %794 = vector.extract_strided_slice %780 {offsets = [1, 0], sizes = [6, 256], strides = [1, 1]} : vector<8x256xf32> to vector<6x256xf32>
      %795 = vector.broadcast %76 : f32 to vector<6x256xf32>
      %796 = arith.mulf %795, %794 : vector<6x256xf32>
      %797 = arith.addf %784, %796 : vector<6x256xf32>
      %798 = vector.broadcast %130 : f32 to vector<6x256xf32>
      %799 = arith.mulf %798, %794 : vector<6x256xf32>
      %800 = arith.addf %787, %799 : vector<6x256xf32>
      %801 = vector.broadcast %184 : f32 to vector<6x256xf32>
      %802 = arith.mulf %801, %794 : vector<6x256xf32>
      %803 = arith.addf %790, %802 : vector<6x256xf32>
      %804 = vector.broadcast %238 : f32 to vector<6x256xf32>
      %805 = arith.mulf %804, %794 : vector<6x256xf32>
      %806 = arith.addf %793, %805 : vector<6x256xf32>
      %807 = vector.extract_strided_slice %780 {offsets = [2, 0], sizes = [6, 256], strides = [1, 1]} : vector<8x256xf32> to vector<6x256xf32>
      %808 = vector.broadcast %85 : f32 to vector<6x256xf32>
      %809 = arith.mulf %808, %807 : vector<6x256xf32>
      %810 = arith.addf %797, %809 : vector<6x256xf32>
      %811 = vector.broadcast %139 : f32 to vector<6x256xf32>
      %812 = arith.mulf %811, %807 : vector<6x256xf32>
      %813 = arith.addf %800, %812 : vector<6x256xf32>
      %814 = vector.broadcast %193 : f32 to vector<6x256xf32>
      %815 = arith.mulf %814, %807 : vector<6x256xf32>
      %816 = arith.addf %803, %815 : vector<6x256xf32>
      %817 = vector.broadcast %247 : f32 to vector<6x256xf32>
      %818 = arith.mulf %817, %807 : vector<6x256xf32>
      %819 = arith.addf %806, %818 : vector<6x256xf32>
      %c238_i32_42 = arith.constant 238 : i32
      %820 = tpu.dynamic_rotate %257 by %c238_i32_42 dim 1 : vector<8x256xf32>, i32 -> vector<8x256xf32>
      %821 = vector.extract_strided_slice %820 {offsets = [0, 0], sizes = [6, 256], strides = [1, 1]} : vector<8x256xf32> to vector<6x256xf32>
      %822 = vector.broadcast %68 : f32 to vector<6x256xf32>
      %823 = arith.mulf %822, %821 : vector<6x256xf32>
      %824 = arith.addf %810, %823 : vector<6x256xf32>
      %825 = vector.broadcast %122 : f32 to vector<6x256xf32>
      %826 = arith.mulf %825, %821 : vector<6x256xf32>
      %827 = arith.addf %813, %826 : vector<6x256xf32>
      %828 = vector.broadcast %176 : f32 to vector<6x256xf32>
      %829 = arith.mulf %828, %821 : vector<6x256xf32>
      %830 = arith.addf %816, %829 : vector<6x256xf32>
      %831 = vector.broadcast %230 : f32 to vector<6x256xf32>
      %832 = arith.mulf %831, %821 : vector<6x256xf32>
      %833 = arith.addf %819, %832 : vector<6x256xf32>
      %834 = vector.extract_strided_slice %820 {offsets = [1, 0], sizes = [6, 256], strides = [1, 1]} : vector<8x256xf32> to vector<6x256xf32>
      %835 = vector.broadcast %77 : f32 to vector<6x256xf32>
      %836 = arith.mulf %835, %834 : vector<6x256xf32>
      %837 = arith.addf %824, %836 : vector<6x256xf32>
      %838 = vector.broadcast %131 : f32 to vector<6x256xf32>
      %839 = arith.mulf %838, %834 : vector<6x256xf32>
      %840 = arith.addf %827, %839 : vector<6x256xf32>
      %841 = vector.broadcast %185 : f32 to vector<6x256xf32>
      %842 = arith.mulf %841, %834 : vector<6x256xf32>
      %843 = arith.addf %830, %842 : vector<6x256xf32>
      %844 = vector.broadcast %239 : f32 to vector<6x256xf32>
      %845 = arith.mulf %844, %834 : vector<6x256xf32>
      %846 = arith.addf %833, %845 : vector<6x256xf32>
      %847 = vector.extract_strided_slice %820 {offsets = [2, 0], sizes = [6, 256], strides = [1, 1]} : vector<8x256xf32> to vector<6x256xf32>
      %848 = vector.broadcast %86 : f32 to vector<6x256xf32>
      %849 = arith.mulf %848, %847 : vector<6x256xf32>
      %850 = arith.addf %837, %849 : vector<6x256xf32>
      %851 = vector.broadcast %140 : f32 to vector<6x256xf32>
      %852 = arith.mulf %851, %847 : vector<6x256xf32>
      %853 = arith.addf %840, %852 : vector<6x256xf32>
      %854 = vector.broadcast %194 : f32 to vector<6x256xf32>
      %855 = arith.mulf %854, %847 : vector<6x256xf32>
      %856 = arith.addf %843, %855 : vector<6x256xf32>
      %857 = vector.broadcast %248 : f32 to vector<6x256xf32>
      %858 = arith.mulf %857, %847 : vector<6x256xf32>
      %859 = arith.addf %846, %858 : vector<6x256xf32>
      %c224_i32_43 = arith.constant 224 : i32
      %860 = tpu.dynamic_rotate %257 by %c224_i32_43 dim 1 : vector<8x256xf32>, i32 -> vector<8x256xf32>
      %861 = vector.extract_strided_slice %860 {offsets = [0, 0], sizes = [6, 256], strides = [1, 1]} : vector<8x256xf32> to vector<6x256xf32>
      %862 = vector.broadcast %69 : f32 to vector<6x256xf32>
      %863 = arith.mulf %862, %861 : vector<6x256xf32>
      %864 = arith.addf %850, %863 : vector<6x256xf32>
      %865 = vector.broadcast %123 : f32 to vector<6x256xf32>
      %866 = arith.mulf %865, %861 : vector<6x256xf32>
      %867 = arith.addf %853, %866 : vector<6x256xf32>
      %868 = vector.broadcast %177 : f32 to vector<6x256xf32>
      %869 = arith.mulf %868, %861 : vector<6x256xf32>
      %870 = arith.addf %856, %869 : vector<6x256xf32>
      %871 = vector.broadcast %231 : f32 to vector<6x256xf32>
      %872 = arith.mulf %871, %861 : vector<6x256xf32>
      %873 = arith.addf %859, %872 : vector<6x256xf32>
      %874 = vector.extract_strided_slice %860 {offsets = [1, 0], sizes = [6, 256], strides = [1, 1]} : vector<8x256xf32> to vector<6x256xf32>
      %875 = vector.broadcast %78 : f32 to vector<6x256xf32>
      %876 = arith.mulf %875, %874 : vector<6x256xf32>
      %877 = arith.addf %864, %876 : vector<6x256xf32>
      %878 = vector.broadcast %132 : f32 to vector<6x256xf32>
      %879 = arith.mulf %878, %874 : vector<6x256xf32>
      %880 = arith.addf %867, %879 : vector<6x256xf32>
      %881 = vector.broadcast %186 : f32 to vector<6x256xf32>
      %882 = arith.mulf %881, %874 : vector<6x256xf32>
      %883 = arith.addf %870, %882 : vector<6x256xf32>
      %884 = vector.broadcast %240 : f32 to vector<6x256xf32>
      %885 = arith.mulf %884, %874 : vector<6x256xf32>
      %886 = arith.addf %873, %885 : vector<6x256xf32>
      %887 = vector.extract_strided_slice %860 {offsets = [2, 0], sizes = [6, 256], strides = [1, 1]} : vector<8x256xf32> to vector<6x256xf32>
      %888 = vector.broadcast %87 : f32 to vector<6x256xf32>
      %889 = arith.mulf %888, %887 : vector<6x256xf32>
      %890 = arith.addf %877, %889 : vector<6x256xf32>
      %891 = vector.broadcast %141 : f32 to vector<6x256xf32>
      %892 = arith.mulf %891, %887 : vector<6x256xf32>
      %893 = arith.addf %880, %892 : vector<6x256xf32>
      %894 = vector.broadcast %195 : f32 to vector<6x256xf32>
      %895 = arith.mulf %894, %887 : vector<6x256xf32>
      %896 = arith.addf %883, %895 : vector<6x256xf32>
      %897 = vector.broadcast %249 : f32 to vector<6x256xf32>
      %898 = arith.mulf %897, %887 : vector<6x256xf32>
      %899 = arith.addf %886, %898 : vector<6x256xf32>
      %c223_i32_44 = arith.constant 223 : i32
      %900 = tpu.dynamic_rotate %257 by %c223_i32_44 dim 1 : vector<8x256xf32>, i32 -> vector<8x256xf32>
      %901 = vector.extract_strided_slice %900 {offsets = [0, 0], sizes = [6, 256], strides = [1, 1]} : vector<8x256xf32> to vector<6x256xf32>
      %902 = vector.broadcast %70 : f32 to vector<6x256xf32>
      %903 = arith.mulf %902, %901 : vector<6x256xf32>
      %904 = arith.addf %890, %903 : vector<6x256xf32>
      %905 = vector.broadcast %124 : f32 to vector<6x256xf32>
      %906 = arith.mulf %905, %901 : vector<6x256xf32>
      %907 = arith.addf %893, %906 : vector<6x256xf32>
      %908 = vector.broadcast %178 : f32 to vector<6x256xf32>
      %909 = arith.mulf %908, %901 : vector<6x256xf32>
      %910 = arith.addf %896, %909 : vector<6x256xf32>
      %911 = vector.broadcast %232 : f32 to vector<6x256xf32>
      %912 = arith.mulf %911, %901 : vector<6x256xf32>
      %913 = arith.addf %899, %912 : vector<6x256xf32>
      %914 = vector.extract_strided_slice %900 {offsets = [1, 0], sizes = [6, 256], strides = [1, 1]} : vector<8x256xf32> to vector<6x256xf32>
      %915 = vector.broadcast %79 : f32 to vector<6x256xf32>
      %916 = arith.mulf %915, %914 : vector<6x256xf32>
      %917 = arith.addf %904, %916 : vector<6x256xf32>
      %918 = vector.broadcast %133 : f32 to vector<6x256xf32>
      %919 = arith.mulf %918, %914 : vector<6x256xf32>
      %920 = arith.addf %907, %919 : vector<6x256xf32>
      %921 = vector.broadcast %187 : f32 to vector<6x256xf32>
      %922 = arith.mulf %921, %914 : vector<6x256xf32>
      %923 = arith.addf %910, %922 : vector<6x256xf32>
      %924 = vector.broadcast %241 : f32 to vector<6x256xf32>
      %925 = arith.mulf %924, %914 : vector<6x256xf32>
      %926 = arith.addf %913, %925 : vector<6x256xf32>
      %927 = vector.extract_strided_slice %900 {offsets = [2, 0], sizes = [6, 256], strides = [1, 1]} : vector<8x256xf32> to vector<6x256xf32>
      %928 = vector.broadcast %88 : f32 to vector<6x256xf32>
      %929 = arith.mulf %928, %927 : vector<6x256xf32>
      %930 = arith.addf %917, %929 : vector<6x256xf32>
      %931 = vector.broadcast %142 : f32 to vector<6x256xf32>
      %932 = arith.mulf %931, %927 : vector<6x256xf32>
      %933 = arith.addf %920, %932 : vector<6x256xf32>
      %934 = vector.broadcast %196 : f32 to vector<6x256xf32>
      %935 = arith.mulf %934, %927 : vector<6x256xf32>
      %936 = arith.addf %923, %935 : vector<6x256xf32>
      %937 = vector.broadcast %250 : f32 to vector<6x256xf32>
      %938 = arith.mulf %937, %927 : vector<6x256xf32>
      %939 = arith.addf %926, %938 : vector<6x256xf32>
      %c222_i32_45 = arith.constant 222 : i32
      %940 = tpu.dynamic_rotate %257 by %c222_i32_45 dim 1 : vector<8x256xf32>, i32 -> vector<8x256xf32>
      %941 = vector.extract_strided_slice %940 {offsets = [0, 0], sizes = [6, 256], strides = [1, 1]} : vector<8x256xf32> to vector<6x256xf32>
      %942 = vector.broadcast %71 : f32 to vector<6x256xf32>
      %943 = arith.mulf %942, %941 : vector<6x256xf32>
      %944 = arith.addf %930, %943 : vector<6x256xf32>
      %945 = vector.broadcast %125 : f32 to vector<6x256xf32>
      %946 = arith.mulf %945, %941 : vector<6x256xf32>
      %947 = arith.addf %933, %946 : vector<6x256xf32>
      %948 = vector.broadcast %179 : f32 to vector<6x256xf32>
      %949 = arith.mulf %948, %941 : vector<6x256xf32>
      %950 = arith.addf %936, %949 : vector<6x256xf32>
      %951 = vector.broadcast %233 : f32 to vector<6x256xf32>
      %952 = arith.mulf %951, %941 : vector<6x256xf32>
      %953 = arith.addf %939, %952 : vector<6x256xf32>
      %954 = vector.extract_strided_slice %940 {offsets = [1, 0], sizes = [6, 256], strides = [1, 1]} : vector<8x256xf32> to vector<6x256xf32>
      %955 = vector.broadcast %80 : f32 to vector<6x256xf32>
      %956 = arith.mulf %955, %954 : vector<6x256xf32>
      %957 = arith.addf %944, %956 : vector<6x256xf32>
      %958 = vector.broadcast %134 : f32 to vector<6x256xf32>
      %959 = arith.mulf %958, %954 : vector<6x256xf32>
      %960 = arith.addf %947, %959 : vector<6x256xf32>
      %961 = vector.broadcast %188 : f32 to vector<6x256xf32>
      %962 = arith.mulf %961, %954 : vector<6x256xf32>
      %963 = arith.addf %950, %962 : vector<6x256xf32>
      %964 = vector.broadcast %242 : f32 to vector<6x256xf32>
      %965 = arith.mulf %964, %954 : vector<6x256xf32>
      %966 = arith.addf %953, %965 : vector<6x256xf32>
      %967 = vector.extract_strided_slice %940 {offsets = [2, 0], sizes = [6, 256], strides = [1, 1]} : vector<8x256xf32> to vector<6x256xf32>
      %968 = vector.broadcast %89 : f32 to vector<6x256xf32>
      %969 = arith.mulf %968, %967 : vector<6x256xf32>
      %970 = arith.addf %957, %969 : vector<6x256xf32>
      %971 = vector.broadcast %143 : f32 to vector<6x256xf32>
      %972 = arith.mulf %971, %967 : vector<6x256xf32>
      %973 = arith.addf %960, %972 : vector<6x256xf32>
      %974 = vector.broadcast %197 : f32 to vector<6x256xf32>
      %975 = arith.mulf %974, %967 : vector<6x256xf32>
      %976 = arith.addf %963, %975 : vector<6x256xf32>
      %977 = vector.broadcast %251 : f32 to vector<6x256xf32>
      %978 = arith.mulf %977, %967 : vector<6x256xf32>
      %979 = arith.addf %966, %978 : vector<6x256xf32>
      %980 = arith.negf %970 : vector<6x256xf32>
      %981 = math.exp %980 : vector<6x256xf32>
      %cst_46 = arith.constant 1.000000e+00 : f32
      %982 = vector.broadcast %cst_46 : f32 to vector<6x256xf32>
      %983 = arith.addf %982, %981 : vector<6x256xf32>
      %984 = arith.divf %982, %983 : vector<6x256xf32>
      %c0_47 = arith.constant 0 : index
      %c0_48 = arith.constant 0 : index
      %c0_49 = arith.constant 0 : index
      %c0_50 = arith.constant 0 : index
      %985 = vector.load %arg4[%c0_47, %c0_48, %c0_49, %c0_50] : memref<1x4x6x256xf32, #tpu.memory_space<vmem>>, vector<1x1x6x256xf32>
      %986 = vector.shape_cast %985 : vector<1x1x6x256xf32> to vector<6x256xf32>
      %987 = vector.shape_cast %984 : vector<6x256xf32> to vector<1x1x6x256xf32>
      tpu.vector_store %arg4[%c0_47, %c0_48, %c0_49, %c0_50], %987 {strides = array<i32>} : memref<1x4x6x256xf32, #tpu.memory_space<vmem>>, vector<1x1x6x256xf32>,
      %988 = arith.negf %973 : vector<6x256xf32>
      %989 = math.exp %988 : vector<6x256xf32>
      %cst_51 = arith.constant 1.000000e+00 : f32
      %990 = vector.broadcast %cst_51 : f32 to vector<6x256xf32>
      %991 = arith.addf %990, %989 : vector<6x256xf32>
      %992 = arith.divf %990, %991 : vector<6x256xf32>
      %c0_52 = arith.constant 0 : index
      %c1_53 = arith.constant 1 : index
      %c0_54 = arith.constant 0 : index
      %c0_55 = arith.constant 0 : index
      %993 = vector.load %arg4[%c0_52, %c1_53, %c0_54, %c0_55] : memref<1x4x6x256xf32, #tpu.memory_space<vmem>>, vector<1x1x6x256xf32>
      %994 = vector.shape_cast %993 : vector<1x1x6x256xf32> to vector<6x256xf32>
      %995 = vector.shape_cast %992 : vector<6x256xf32> to vector<1x1x6x256xf32>
      tpu.vector_store %arg4[%c0_52, %c1_53, %c0_54, %c0_55], %995 {strides = array<i32>} : memref<1x4x6x256xf32, #tpu.memory_space<vmem>>, vector<1x1x6x256xf32>,
      %996 = arith.negf %976 : vector<6x256xf32>
      %997 = math.exp %996 : vector<6x256xf32>
      %cst_56 = arith.constant 1.000000e+00 : f32
      %998 = vector.broadcast %cst_56 : f32 to vector<6x256xf32>
      %999 = arith.addf %998, %997 : vector<6x256xf32>
      %1000 = arith.divf %998, %999 : vector<6x256xf32>
      %c0_57 = arith.constant 0 : index
      %c2_58 = arith.constant 2 : index
      %c0_59 = arith.constant 0 : index
      %c0_60 = arith.constant 0 : index
      %1001 = vector.load %arg4[%c0_57, %c2_58, %c0_59, %c0_60] : memref<1x4x6x256xf32, #tpu.memory_space<vmem>>, vector<1x1x6x256xf32>
      %1002 = vector.shape_cast %1001 : vector<1x1x6x256xf32> to vector<6x256xf32>
      %1003 = vector.shape_cast %1000 : vector<6x256xf32> to vector<1x1x6x256xf32>
      tpu.vector_store %arg4[%c0_57, %c2_58, %c0_59, %c0_60], %1003 {strides = array<i32>} : memref<1x4x6x256xf32, #tpu.memory_space<vmem>>, vector<1x1x6x256xf32>,
      %1004 = arith.negf %979 : vector<6x256xf32>
      %1005 = math.exp %1004 : vector<6x256xf32>
      %cst_61 = arith.constant 1.000000e+00 : f32
      %1006 = vector.broadcast %cst_61 : f32 to vector<6x256xf32>
      %1007 = arith.addf %1006, %1005 : vector<6x256xf32>
      %1008 = arith.divf %1006, %1007 : vector<6x256xf32>
      %c0_62 = arith.constant 0 : index
      %c3_63 = arith.constant 3 : index
      %c0_64 = arith.constant 0 : index
      %c0_65 = arith.constant 0 : index
      %1009 = vector.load %arg4[%c0_62, %c3_63, %c0_64, %c0_65] : memref<1x4x6x256xf32, #tpu.memory_space<vmem>>, vector<1x1x6x256xf32>
      %1010 = vector.shape_cast %1009 : vector<1x1x6x256xf32> to vector<6x256xf32>
      %1011 = vector.shape_cast %1008 : vector<6x256xf32> to vector<1x1x6x256xf32>
      tpu.vector_store %arg4[%c0_62, %c3_63, %c0_64, %c0_65], %1011 {strides = array<i32>} : memref<1x4x6x256xf32, #tpu.memory_space<vmem>>, vector<1x1x6x256xf32>,
    } else {
    }
    return
  }
  func.func @transform_0(%arg0: i32, %arg1: i32) -> i32 {
    %c0_i32 = arith.constant 0 : i32
    %c0_i32_0 = arith.constant 0 : i32
    return %c0_i32 : i32
  }
  func.func @transform_1(%arg0: i32, %arg1: i32) -> (i32, i32, i32, i32) {
    %c0_i32 = arith.constant 0 : i32
    %c0_i32_0 = arith.constant 0 : i32
    %c0_i32_1 = arith.constant 0 : i32
    return %arg0, %arg1, %c0_i32, %c0_i32_0 : i32, i32, i32, i32
  }
  func.func @transform_2(%arg0: i32, %arg1: i32) -> (i32, i32, i32, i32) {
    %c0_i32 = arith.constant 0 : i32
    %c0_i32_0 = arith.constant 0 : i32
    %c0_i32_1 = arith.constant 0 : i32
    %c0_i32_2 = arith.constant 0 : i32
    return %arg0, %c0_i32, %c0_i32_0, %c0_i32_1 : i32, i32, i32, i32
  }
}

</mosaic_0001>

<llo_original>
// kernel: tpu_custom_call.1
$region0: #{tpu_custom_call.1}
  #allocation0 [shape = 'u32[]', space=smem, size = 0x4, offset = 0x4, fixed_abs, tag = 'smem constant byte address 0x4 - core index']
  #allocation1 [shape = 'u32[72,128]{1,0:T(1,128)}', space=vmem, size = 0x9000, scoped, tag = 'internal scratch']
  #allocation2 [shape = 'f32[1,8,256]{2,1,0:T(8,128)}', space=vmem, size = 0x2000, scoped, tag = 'scratch operand']
  #allocation3 [shape = 'f32[1,8,256]{2,1,0:T(8,128)}', space=vmem, size = 0x2000, scoped, tag = 'scratch operand']
  %s0 = inlined_call_operand.hbm [shape: f32[216], index: 0, kind: input, shape index: {}]
  %s1 = inlined_call_operand.hbm [shape: f32[2,4,8,256], index: 1, kind: input, shape index: {}]
  %s2 = inlined_call_operand.vmem [shape: f32[2,4,6,256], index: 2, kind: output, shape index: {}]
  %s3 = sld [smem:[#allocation0]]
  $region57: #{tpu_custom_call.1} parent=0
    _
  %s5 = ssub.s32 1, %s3
  %s6 = scalar_select 0, %s5, %s3
  $region1: #{tpu_custom_call.1} parent=0
    #allocation4 [shape = 'u8[1024]{0}', space=smem, size = 0x400, scoped, tag = 'input window, operand 0, single buffered']
    #allocation5 [shape = 's32[2]{0}', space=sflag, size = 0x8, scoped, tag = 'scoped memory for tpu_custom_call.1']
    #allocation6 [shape = 's32[2]{0}', space=sflag, size = 0x8, scoped, tag = 'scoped memory for tpu_custom_call.1']
    #allocation7 [shape = 'u8[65536]{0}', space=vmem, size = 0x10000, scoped, tag = 'input window, operand 1']
    %7 = vsyncpa [#allocation6], 0
    %8 = vsyncpa [#allocation5], 0
    %s9 = scalar_lea.sflag [#allocation5], 1
    %10 = vsyncpa %s9, 0
    loop: start=0, step=1, limit=4
    $region2: #{tpu_custom_call.1} parent=1 // loop_pre_header
      _
    $region3: #{tpu_custom_call.1} parent=1 // loop_header
      %s12 = sphi 0, %s16
      %p13 = scmp.ge.s32.totalorder %s12, 4
      %s19 = sphi 0, %s31
      %s20 = sphi 0, %s27
      %s21 = sphi 0, %s19
      %s22 = sphi 0, %s20
      %s23 = sphi 0, %s21
      %s24 = sphi 0, %s22
      %s32 = sphi 0, %s32
      %s34 = sphi 0, %s32
      %s35 = sphi 0, %s34
      %s49 = sphi 0, %s35
      %s57 = sphi 0, %s59
      %s60 = sphi 0, %s57
      %s61 = sphi 0, %s60
      %s77 = sphi 0, %s61
      %s83 = sphi 0, %s85
      %s86 = sphi 0, %s83
      %s87 = sphi 0, %s86
      %s103 = sphi 0, %s87
    $region4: #{tpu_custom_call.1} parent=1 // loop_header_branch
      %15 = sbr.rel (%p13) target = $region8
    $region5: #{tpu_custom_call.1} parent=1 // loop_body
      %s17 = ssub.s32 %s12, 1
      %s18 = ssub.s32 %s12, 2
      %s25 = sadd.s32 1, %s20
      %p26 = scmp.ge.s32.totalorder %s25, 1
      %s27 = scalar_select %p26, 0, %s25
      %s28 = sadd.s32 1, %s19
      %s29 = scalar_select %p26, %s28, %s19
      %p30 = scmp.ge.s32.totalorder %s29, 2
      %s31 = scalar_select %p30, 0, %s29
      %s33 = sadd.s32 %s32, 1
      %p36 = scmp.eq.s32.totalorder %s12, 1
      %p37 = scmp.ne.s32.totalorder %s32, %s34
      %p38 = scmp.eq.s32.totalorder %s12, 0
      %p39 = por %p37, %p38
      %p40 = scmp.ne.s32.totalorder %s32, %s34
      %p41 = scmp.eq.s32.totalorder %s17, 1
      %p42 = por %p40, %p41
      %p43 = scmp.ne.s32.totalorder %s34, %s35
      %p44 = scmp.eq.s32.totalorder %s17, 0
      %p45 = por %p43, %p44
      %p46 = scmp.ne.s32.totalorder %s34, %s35
      %p47 = scmp.eq.s32.totalorder %s18, 1
      %p48 = por %p46, %p47
      %p50 = scmp.ne.s32.totalorder %s35, %s49
      %p51 = scmp.eq.s32.totalorder %s18, 0
      %p52 = por %p50, %p51
      %s53 = ssub.s32 %s19, %s31
      %s54 = ssub.s32 %s20, %s27
      %s55 = sor.u32 %s53, %s54
      %p56 = scmp.eq.s32.totalorder %s55, 0
      %s58 = sadd.s32 %s57, 1
      %s59 = scalar_select %p56, %s57, %s58
      %p62 = pneg %p56
      %p63 = scmp.eq.s32.totalorder %s12, 1
      %p64 = por %p62, %p63
      %p65 = scmp.ne.s32.totalorder %s57, %s60
      %p66 = scmp.eq.s32.totalorder %s12, 0
      %p67 = por %p65, %p66
      %p68 = scmp.ne.s32.totalorder %s57, %s60
      %p69 = scmp.eq.s32.totalorder %s17, 1
      %p70 = por %p68, %p69
      %p71 = scmp.ne.s32.totalorder %s60, %s61
      %p72 = scmp.eq.s32.totalorder %s17, 0
      %p73 = por %p71, %p72
      %p74 = scmp.ne.s32.totalorder %s60, %s61
      %p75 = scmp.eq.s32.totalorder %s18, 1
      %p76 = por %p74, %p75
      %p78 = scmp.ne.s32.totalorder %s61, %s77
      %p79 = scmp.eq.s32.totalorder %s18, 0
      %p80 = por %p78, %p79
      %s81 = ssub.s32 %s19, %s31
      %p82 = scmp.eq.s32.totalorder %s81, 0
      %s84 = sadd.s32 %s83, 1
      %s85 = scalar_select %p82, %s83, %s84
      %p88 = pneg %p82
      %p89 = scmp.eq.s32.totalorder %s12, 1
      %p90 = por %p88, %p89
      %p91 = scmp.ne.s32.totalorder %s83, %s86
      %p92 = scmp.eq.s32.totalorder %s12, 0
      %p93 = por %p91, %p92
      %p94 = scmp.ne.s32.totalorder %s83, %s86
      %p95 = scmp.eq.s32.totalorder %s17, 1
      %p96 = por %p94, %p95
      %p97 = scmp.ne.s32.totalorder %s86, %s87
      %p98 = scmp.eq.s32.totalorder %s17, 0
      %p99 = por %p97, %p98
      %p100 = scmp.ne.s32.totalorder %s86, %s87
      %p101 = scmp.eq.s32.totalorder %s18, 1
      %p102 = por %p100, %p101
      %p104 = scmp.ne.s32.totalorder %s87, %s103
      %p105 = scmp.eq.s32.totalorder %s18, 0
      %p106 = por %p104, %p105
      %p107 = scmp.le.s32.totalorder 1, %s12
      %p108 = scmp.lt.s32.totalorder %s12, 3
      %p109 = pnand %p107, %p108
      %p110 = pneg %p109
      // Predicated region
      $region9: #{tpu_custom_call.1} parent=5 // pred_check
        _
      $region10: #{tpu_custom_call.1} parent=5 // pred_check_branch
        %112 = sbr.rel (%p109) target = $region12
      $region11: #{tpu_custom_call.1} parent=5 // pred_region
        %s113 = ssub.s32 %s12, 1
        // Predicated region
        $region13: #{tpu_custom_call.1} parent=11 // pred_check
          %p114 = pneg %p45
        $region14: #{tpu_custom_call.1} parent=11 // pred_check_branch
          %116 = sbr.rel (%p114) target = $region16
        $region15: #{tpu_custom_call.1} parent=11 // pred_region
          %118 = vsyncadd [#allocation6], 0
          %s120 = sshll.u32 %s0, 4
          %s121 = int_to_ptr.hbm [resolvable:$true] %s120
          %123 = dma.hbm_to_smem %s121, 32, [#allocation4], [#allocation6]
        $region16: #{tpu_custom_call.1} parent=11 // pred_fallthru
          _
      $region12: #{tpu_custom_call.1} parent=5 // pred_fallthru
        _
      %p124 = scmp.lt.s32.totalorder %s12, 2
      // Predicated region
      $region17: #{tpu_custom_call.1} parent=5 // pred_check
        %p125 = pneg %p124
      $region18: #{tpu_custom_call.1} parent=5 // pred_check_branch
        %127 = sbr.rel (%p125) target = $region20
      $region19: #{tpu_custom_call.1} parent=5 // pred_region
        // Predicated region
        $region21: #{tpu_custom_call.1} parent=19 // pred_check
          %p128 = pneg %p67
        $region22: #{tpu_custom_call.1} parent=19 // pred_check_branch
          %130 = sbr.rel (%p128) target = $region24
        $region23: #{tpu_custom_call.1} parent=19 // pred_region
          %s131 = sand.u32 %s57, 1
          %s132 = scalar_lea.sflag [#allocation5], %s131
          %s133 = sand.u32 %s57, 1
          %s134 = smul.addr %s133, 64
          %s135 = scalar_lea.vmem [#allocation7], %s134
          %s136 = smul.u32 4, %s20
          %138 = vsyncadd %s132, 0
          %s139 = smul.addr %s136, 2
          %s140 = smul.addr %s19, 8
          %s141 = sadd.s32 %s139, %s140
          %s142 = smul.addr %s141, 8
          %s143 = scalar_lea.hbm %s1, %s142
          %s144 = sshll.u32 %s143, 4
          %s145 = int_to_ptr.hbm [resolvable:$true] %s144
          %s146 = sshll.u32 %s135, 4
          %s147 = int_to_ptr.vmem [resolvable:$true] %s146
          %152 = dma.hbm_to_vmem [thread:$0]  %s145, 1024, %s147, %s132, 256, 256, 16
        $region24: #{tpu_custom_call.1} parent=19 // pred_fallthru
          _
      $region20: #{tpu_custom_call.1} parent=5 // pred_fallthru
        _
      %p153 = scmp.le.s32.totalorder 1, %s12
      %p154 = scmp.lt.s32.totalorder %s12, 3
      %p155 = pnand %p153, %p154
      %p156 = pneg %p155
      // Predicated region
      $region25: #{tpu_custom_call.1} parent=5 // pred_check
        _
      $region26: #{tpu_custom_call.1} parent=5 // pred_check_branch
        %158 = sbr.rel (%p155) target = $region28
      $region27: #{tpu_custom_call.1} parent=5 // pred_region
        %s159 = ssub.s32 %s12, 1
        // Predicated region
        $region29: #{tpu_custom_call.1} parent=27 // pred_check
          %p160 = pneg %p45
        $region30: #{tpu_custom_call.1} parent=27 // pred_check_branch
          %162 = sbr.rel (%p160) target = $region32
        $region31: #{tpu_custom_call.1} parent=27 // pred_region
          %164 = dma.done [#allocation6], 32
        $region32: #{tpu_custom_call.1} parent=27 // pred_fallthru
          _
        %s165 = sand.u32 %s60, 1
        %s166 = scalar_lea.sflag [#allocation5], %s165
        %s167 = sand.u32 %s60, 1
        %s168 = smul.addr %s167, 64
        %s169 = scalar_lea.vmem [#allocation7], %s168
        // Predicated region
        $region33: #{tpu_custom_call.1} parent=27 // pred_check
          %p170 = pneg %p73
        $region34: #{tpu_custom_call.1} parent=27 // pred_check_branch
          %172 = sbr.rel (%p170) target = $region36
        $region35: #{tpu_custom_call.1} parent=27 // pred_region
          %174 = dma.done %s166, 1024
        $region36: #{tpu_custom_call.1} parent=27 // pred_fallthru
          _
        %175 = sfence
        %p176 = pneg %p45
        %p177 = pneg %p42
        %s178 = sand.u32 %s60, 1
        %s179 = scalar_lea.sflag [#allocation5], %s178
        %s180 = sand.u32 %s60, 1
        %s181 = smul.addr %s180, 64
        %s182 = scalar_lea.vmem [#allocation7], %s181
        %p183 = pneg %p73
        %p184 = pneg %p70
        %p185 = pneg %p99
        %p186 = pneg %p96
        %p187 = scmp.lt.s32.totalorder %s21, 1
        %s188 = scalar_select %p187, %s21, 1
        %s189 = smul.addr %s188, 8
        %s190 = smul.addr %s189, 8
        %s191 = scalar_lea.vmem %s2, %s190
        %s192 = smul.u32 4, %s22
        %p193 = scmp.lt.s32.totalorder %s21, 1
        %s194 = scalar_select %p193, %s21, 1
        %s195 = smul.addr %s194, 8
        %s196 = smul.addr %s195, 8
        %s197 = scalar_lea.vmem %s2, %s196
        %p198 = scmp.eq.s32.totalorder %s22, 0
        // Predicated region
        $region37: #{tpu_custom_call.1} parent=27 // pred_check
          %p199 = pneg %p198
        $region38: #{tpu_custom_call.1} parent=27 // pred_check_branch
          %201 = sbr.rel (%p199) target = $region40
        $region39: #{tpu_custom_call.1} parent=27 // pred_region
          %202 = vst [vmem:[#allocation2] sm:$0xff] 0.0
          %203 = vst [vmem:[#allocation2 + $0x8] sm:$0xff] 0.0
          %204 = vst [vmem:[#allocation3] sm:$0xff] -inf
          %205 = vst [vmem:[#allocation3 + $0x8] sm:$0xff] -inf
        $region40: #{tpu_custom_call.1} parent=27 // pred_fallthru
          _
        %v206 = vld [vmem:[#allocation2] sm:$0xff]
        %v207 = vld [vmem:[#allocation2 + $0x8] sm:$0xff]
        %v208 = vld [vmem:[#allocation3] sm:$0xff]
        %v209 = vld [vmem:[#allocation3 + $0x8] sm:$0xff]
        %v210 = vld [vmem:[%s169] sm:$0xff]
        %v211 = vld [vmem:[%s169 + $0x8] sm:$0xff]
        %v212 = vadd.f32 %v206, %v210
        %v213 = vadd.f32 %v207, %v211
        %v214 = vmax.f32 %v208, %v210
        %v215 = vmax.f32 %v209, %v211
        %s216 = scalar_lea.vmem %s169, 16 [#allocation7]
        %v217 = vld [vmem:[%s216] sm:$0xff]
        %v218 = vld [vmem:[%s216 + $0x8] sm:$0xff]
        %v219 = vadd.f32 %v212, %v217
        %v220 = vadd.f32 %v213, %v218
        %v221 = vmax.f32 %v214, %v217
        %v222 = vmax.f32 %v215, %v218
        %s223 = scalar_lea.vmem %s169, 32 [#allocation7]
        %v224 = vld [vmem:[%s223] sm:$0xff]
        %v225 = vld [vmem:[%s223 + $0x8] sm:$0xff]
        %v226 = vadd.f32 %v219, %v224
        %v227 = vadd.f32 %v220, %v225
        %v228 = vmax.f32 %v221, %v224
        %v229 = vmax.f32 %v222, %v225
        %s230 = scalar_lea.vmem %s169, 48 [#allocation7]
        %v231 = vld [vmem:[%s230] sm:$0xff]
        %v232 = vld [vmem:[%s230 + $0x8] sm:$0xff]
        %v233 = vadd.f32 %v226, %v231
        %v234 = vadd.f32 %v227, %v232
        %v235 = vmax.f32 %v228, %v231
        %v236 = vmax.f32 %v229, %v232
        %237 = vst [vmem:[#allocation2] sm:$0xff] %v233
        %238 = vst [vmem:[#allocation2 + $0x8] sm:$0xff] %v234
        %239 = vst [vmem:[#allocation3] sm:$0xff] %v235
        %240 = vst [vmem:[#allocation3 + $0x8] sm:$0xff] %v236
        // Predicated region
        $region41: #{tpu_custom_call.1} parent=27 // pred_check
          %p241 = pneg %p198
        $region42: #{tpu_custom_call.1} parent=27 // pred_check_branch
          %243 = sbr.rel (%p241) target = $region44
        $region43: #{tpu_custom_call.1} parent=27 // pred_region
          %s244 = sld [smem:[#allocation4]]
          %s245 = sld [smem:[#allocation4 + $0x1]]
          %s246 = sld [smem:[#allocation4 + $0x2]]
          %s247 = sld [smem:[#allocation4 + $0x3]]
          %s248 = sld [smem:[#allocation4 + $0x4]]
          %s249 = sld [smem:[#allocation4 + $0x5]]
          %s250 = sld [smem:[#allocation4 + $0x6]]
          %s251 = sld [smem:[#allocation4 + $0x7]]
          %s252 = sld [smem:[#allocation4 + $0x8]]
          %s253 = sld [smem:[#allocation4 + $0x9]]
          %s254 = sld [smem:[#allocation4 + $0xa]]
          %s255 = sld [smem:[#allocation4 + $0xb]]
          %s256 = sld [smem:[#allocation4 + $0xc]]
          %s257 = sld [smem:[#allocation4 + $0xd]]
          %s258 = sld [smem:[#allocation4 + $0xe]]
          %s259 = sld [smem:[#allocation4 + $0xf]]
          %s260 = sld [smem:[#allocation4 + $0x10]]
          %s261 = sld [smem:[#allocation4 + $0x11]]
          %s262 = sld [smem:[#allocation4 + $0x12]]
          %s263 = sld [smem:[#allocation4 + $0x13]]
          %s264 = sld [smem:[#allocation4 + $0x14]]
          %s265 = sld [smem:[#allocation4 + $0x15]]
          %s266 = sld [smem:[#allocation4 + $0x16]]
          %s267 = sld [smem:[#allocation4 + $0x17]]
          %s268 = sld [smem:[#allocation4 + $0x18]]
          %s269 = sld [smem:[#allocation4 + $0x19]]
          %s270 = sld [smem:[#allocation4 + $0x1a]]
          %s271 = sld [smem:[#allocation4 + $0x1b]]
          %s272 = sld [smem:[#allocation4 + $0x1c]]
          %s273 = sld [smem:[#allocation4 + $0x1d]]
          %s274 = sld [smem:[#allocation4 + $0x1e]]
          %s275 = sld [smem:[#allocation4 + $0x1f]]
          %s276 = sld [smem:[#allocation4 + $0x20]]
          %s277 = sld [smem:[#allocation4 + $0x21]]
          %s278 = sld [smem:[#allocation4 + $0x22]]
          %s279 = sld [smem:[#allocation4 + $0x23]]
          %s280 = sld [smem:[#allocation4 + $0x24]]
          %s281 = sld [smem:[#allocation4 + $0x25]]
          %s282 = sld [smem:[#allocation4 + $0x26]]
          %s283 = sld [smem:[#allocation4 + $0x27]]
          %s284 = sld [smem:[#allocation4 + $0x28]]
          %s285 = sld [smem:[#allocation4 + $0x29]]
          %s286 = sld [smem:[#allocation4 + $0x2a]]
          %s287 = sld [smem:[#allocation4 + $0x2b]]
          %s288 = sld [smem:[#allocation4 + $0x2c]]
          %s289 = sld [smem:[#allocation4 + $0x2d]]
          %s290 = sld [smem:[#allocation4 + $0x2e]]
          %s291 = sld [smem:[#allocation4 + $0x2f]]
          %s292 = sld [smem:[#allocation4 + $0x30]]
          %s293 = sld [smem:[#allocation4 + $0x31]]
          %s294 = sld [smem:[#allocation4 + $0x32]]
          %s295 = sld [smem:[#allocation4 + $0x33]]
          %s296 = sld [smem:[#allocation4 + $0x34]]
          %s297 = sld [smem:[#allocation4 + $0x35]]
          %s298 = sld [smem:[#allocation4 + $0x36]]
          %s299 = sld [smem:[#allocation4 + $0x37]]
          %s300 = sld [smem:[#allocation4 + $0x38]]
          %s301 = sld [smem:[#allocation4 + $0x39]]
          %s302 = sld [smem:[#allocation4 + $0x3a]]
          %s303 = sld [smem:[#allocation4 + $0x3b]]
          %s304 = sld [smem:[#allocation4 + $0x3c]]
          %s305 = sld [smem:[#allocation4 + $0x3d]]
          %s306 = sld [smem:[#allocation4 + $0x3e]]
          %s307 = sld [smem:[#allocation4 + $0x3f]]
          %s308 = sld [smem:[#allocation4 + $0x40]]
          %s309 = sld [smem:[#allocation4 + $0x41]]
          %s310 = sld [smem:[#allocation4 + $0x42]]
          %s311 = sld [smem:[#allocation4 + $0x43]]
          %s312 = sld [smem:[#allocation4 + $0x44]]
          %s313 = sld [smem:[#allocation4 + $0x45]]
          %s314 = sld [smem:[#allocation4 + $0x46]]
          %s315 = sld [smem:[#allocation4 + $0x47]]
          %s316 = sld [smem:[#allocation4 + $0x48]]
          %s317 = sld [smem:[#allocation4 + $0x49]]
          %s318 = sld [smem:[#allocation4 + $0x4a]]
          %s319 = sld [smem:[#allocation4 + $0x4b]]
          %s320 = sld [smem:[#allocation4 + $0x4c]]
          %s321 = sld [smem:[#allocation4 + $0x4d]]
          %s322 = sld [smem:[#allocation4 + $0x4e]]
          %s323 = sld [smem:[#allocation4 + $0x4f]]
          %s324 = sld [smem:[#allocation4 + $0x50]]
          %s325 = sld [smem:[#allocation4 + $0x51]]
          %s326 = sld [smem:[#allocation4 + $0x52]]
          %s327 = sld [smem:[#allocation4 + $0x53]]
          %s328 = sld [smem:[#allocation4 + $0x54]]
          %s329 = sld [smem:[#allocation4 + $0x55]]
          %s330 = sld [smem:[#allocation4 + $0x56]]
          %s331 = sld [smem:[#allocation4 + $0x57]]
          %s332 = sld [smem:[#allocation4 + $0x58]]
          %s333 = sld [smem:[#allocation4 + $0x59]]
          %s334 = sld [smem:[#allocation4 + $0x5a]]
          %s335 = sld [smem:[#allocation4 + $0x5b]]
          %s336 = sld [smem:[#allocation4 + $0x5c]]
          %s337 = sld [smem:[#allocation4 + $0x5d]]
          %s338 = sld [smem:[#allocation4 + $0x5e]]
          %s339 = sld [smem:[#allocation4 + $0x5f]]
          %s340 = sld [smem:[#allocation4 + $0x60]]
          %s341 = sld [smem:[#allocation4 + $0x61]]
          %s342 = sld [smem:[#allocation4 + $0x62]]
          %s343 = sld [smem:[#allocation4 + $0x63]]
          %s344 = sld [smem:[#allocation4 + $0x64]]
          %s345 = sld [smem:[#allocation4 + $0x65]]
          %s346 = sld [smem:[#allocation4 + $0x66]]
          %s347 = sld [smem:[#allocation4 + $0x67]]
          %s348 = sld [smem:[#allocation4 + $0x68]]
          %s349 = sld [smem:[#allocation4 + $0x69]]
          %s350 = sld [smem:[#allocation4 + $0x6a]]
          %s351 = sld [smem:[#allocation4 + $0x6b]]
          %s352 = sld [smem:[#allocation4 + $0x6c]]
          %s353 = sld [smem:[#allocation4 + $0x6d]]
          %s354 = sld [smem:[#allocation4 + $0x6e]]
          %s355 = sld [smem:[#allocation4 + $0x6f]]
          %s356 = sld [smem:[#allocation4 + $0x70]]
          %s357 = sld [smem:[#allocation4 + $0x71]]
          %s358 = sld [smem:[#allocation4 + $0x72]]
          %s359 = sld [smem:[#allocation4 + $0x73]]
          %s360 = sld [smem:[#allocation4 + $0x74]]
          %s361 = sld [smem:[#allocation4 + $0x75]]
          %s362 = sld [smem:[#allocation4 + $0x76]]
          %s363 = sld [smem:[#allocation4 + $0x77]]
          %s364 = sld [smem:[#allocation4 + $0x78]]
          %s365 = sld [smem:[#allocation4 + $0x79]]
          %s366 = sld [smem:[#allocation4 + $0x7a]]
          %s367 = sld [smem:[#allocation4 + $0x7b]]
          %s368 = sld [smem:[#allocation4 + $0x7c]]
          %s369 = sld [smem:[#allocation4 + $0x7d]]
          %s370 = sld [smem:[#allocation4 + $0x7e]]
          %s371 = sld [smem:[#allocation4 + $0x7f]]
          %s372 = sld [smem:[#allocation4 + $0x80]]
          %s373 = sld [smem:[#allocation4 + $0x81]]
          %s374 = sld [smem:[#allocation4 + $0x82]]
          %s375 = sld [smem:[#allocation4 + $0x83]]
          %s376 = sld [smem:[#allocation4 + $0x84]]
          %s377 = sld [smem:[#allocation4 + $0x85]]
          %s378 = sld [smem:[#allocation4 + $0x86]]
          %s379 = sld [smem:[#allocation4 + $0x87]]
          %s380 = sld [smem:[#allocation4 + $0x88]]
          %s381 = sld [smem:[#allocation4 + $0x89]]
          %s382 = sld [smem:[#allocation4 + $0x8a]]
          %s383 = sld [smem:[#allocation4 + $0x8b]]
          %s384 = sld [smem:[#allocation4 + $0x8c]]
          %s385 = sld [smem:[#allocation4 + $0x8d]]
          %s386 = sld [smem:[#allocation4 + $0x8e]]
          %s387 = sld [smem:[#allocation4 + $0x8f]]
          %s388 = sld [smem:[#allocation4 + $0x90]]
          %s389 = sld [smem:[#allocation4 + $0x91]]
          %s390 = sld [smem:[#allocation4 + $0x92]]
          %s391 = sld [smem:[#allocation4 + $0x93]]
          %s392 = sld [smem:[#allocation4 + $0x94]]
          %s393 = sld [smem:[#allocation4 + $0x95]]
          %s394 = sld [smem:[#allocation4 + $0x96]]
          %s395 = sld [smem:[#allocation4 + $0x97]]
          %s396 = sld [smem:[#allocation4 + $0x98]]
          %s397 = sld [smem:[#allocation4 + $0x99]]
          %s398 = sld [smem:[#allocation4 + $0x9a]]
          %s399 = sld [smem:[#allocation4 + $0x9b]]
          %s400 = sld [smem:[#allocation4 + $0x9c]]
          %s401 = sld [smem:[#allocation4 + $0x9d]]
          %s402 = sld [smem:[#allocation4 + $0x9e]]
          %s403 = sld [smem:[#allocation4 + $0x9f]]
          %s404 = sld [smem:[#allocation4 + $0xa0]]
          %s405 = sld [smem:[#allocation4 + $0xa1]]
          %s406 = sld [smem:[#allocation4 + $0xa2]]
          %s407 = sld [smem:[#allocation4 + $0xa3]]
          %s408 = sld [smem:[#allocation4 + $0xa4]]
          %s409 = sld [smem:[#allocation4 + $0xa5]]
          %s410 = sld [smem:[#allocation4 + $0xa6]]
          %s411 = sld [smem:[#allocation4 + $0xa7]]
          %s412 = sld [smem:[#allocation4 + $0xa8]]
          %s413 = sld [smem:[#allocation4 + $0xa9]]
          %s414 = sld [smem:[#allocation4 + $0xaa]]
          %s415 = sld [smem:[#allocation4 + $0xab]]
          %s416 = sld [smem:[#allocation4 + $0xac]]
          %s417 = sld [smem:[#allocation4 + $0xad]]
          %s418 = sld [smem:[#allocation4 + $0xae]]
          %s419 = sld [smem:[#allocation4 + $0xaf]]
          %s420 = sld [smem:[#allocation4 + $0xb0]]
          %s421 = sld [smem:[#allocation4 + $0xb1]]
          %s422 = sld [smem:[#allocation4 + $0xb2]]
          %s423 = sld [smem:[#allocation4 + $0xb3]]
          %s424 = sld [smem:[#allocation4 + $0xb4]]
          %s425 = sld [smem:[#allocation4 + $0xb5]]
          %s426 = sld [smem:[#allocation4 + $0xb6]]
          %s427 = sld [smem:[#allocation4 + $0xb7]]
          %s428 = sld [smem:[#allocation4 + $0xb8]]
          %s429 = sld [smem:[#allocation4 + $0xb9]]
          %s430 = sld [smem:[#allocation4 + $0xba]]
          %s431 = sld [smem:[#allocation4 + $0xbb]]
          %s432 = sld [smem:[#allocation4 + $0xbc]]
          %s433 = sld [smem:[#allocation4 + $0xbd]]
          %s434 = sld [smem:[#allocation4 + $0xbe]]
          %s435 = sld [smem:[#allocation4 + $0xbf]]
          %s436 = sld [smem:[#allocation4 + $0xc0]]
          %s437 = sld [smem:[#allocation4 + $0xc1]]
          %s438 = sld [smem:[#allocation4 + $0xc2]]
          %s439 = sld [smem:[#allocation4 + $0xc3]]
          %s440 = sld [smem:[#allocation4 + $0xc4]]
          %s441 = sld [smem:[#allocation4 + $0xc5]]
          %s442 = sld [smem:[#allocation4 + $0xc6]]
          %s443 = sld [smem:[#allocation4 + $0xc7]]
          %s444 = sld [smem:[#allocation4 + $0xc8]]
          %s445 = sld [smem:[#allocation4 + $0xc9]]
          %s446 = sld [smem:[#allocation4 + $0xca]]
          %s447 = sld [smem:[#allocation4 + $0xcb]]
          %s448 = sld [smem:[#allocation4 + $0xcc]]
          %s449 = sld [smem:[#allocation4 + $0xcd]]
          %s450 = sld [smem:[#allocation4 + $0xce]]
          %s451 = sld [smem:[#allocation4 + $0xcf]]
          %s452 = sld [smem:[#allocation4 + $0xd0]]
          %s453 = sld [smem:[#allocation4 + $0xd1]]
          %s454 = sld [smem:[#allocation4 + $0xd2]]
          %s455 = sld [smem:[#allocation4 + $0xd3]]
          %s456 = sld [smem:[#allocation4 + $0xd4]]
          %s457 = sld [smem:[#allocation4 + $0xd5]]
          %s458 = sld [smem:[#allocation4 + $0xd6]]
          %s459 = sld [smem:[#allocation4 + $0xd7]]
          %v460 = vld [vmem:[#allocation2] sm:$0xff]
          %v461 = vld [vmem:[#allocation2 + $0x8] sm:$0xff]
          %v462 = vmul.f32 %v460, 0.25
          %v463 = vmul.f32 %v461, 0.25
          %v464 = vld [vmem:[#allocation3] sm:$0xff]
          %v465 = vld [vmem:[#allocation3 + $0x8] sm:$0xff]
          %v466 = vstv %s244
          %v467 = vmul.f32 %v466, %v462
          %v468 = vmul.f32 %v466, %v463
          %v469 = vadd.f32 %v467, 0.0
          %v470 = vadd.f32 %v468, 0.0
          %v471 = vstv %s298
          %v472 = vmul.f32 %v471, %v462
          %v473 = vmul.f32 %v471, %v463
          %v474 = vadd.f32 %v472, 0.0
          %v475 = vadd.f32 %v473, 0.0
          %v476 = vstv %s352
          %v477 = vmul.f32 %v476, %v462
          %v478 = vmul.f32 %v476, %v463
          %v479 = vadd.f32 %v477, 0.0
          %v480 = vadd.f32 %v478, 0.0
          %v481 = vstv %s406
          %v482 = vmul.f32 %v481, %v462
          %v483 = vmul.f32 %v481, %v463
          %v484 = vadd.f32 %v482, 0.0
          %v485 = vadd.f32 %v483, 0.0
          %v486 = vstv %s253
          %v487 = vmul.f32 %v486, %v462
          %v488 = vmul.f32 %v486, %v463
          %v491 = vrot.slane %v487, 1
          %v492 = vrot.slane %v488, 1
          %v495 = vadd.f32 %v469, %v491
          %v496 = vadd.f32 %v470, %v492
          %v497 = vstv %s307
          %v498 = vmul.f32 %v497, %v462
          %v499 = vmul.f32 %v497, %v463
          %v502 = vrot.slane %v498, 1
          %v503 = vrot.slane %v499, 1
          %v506 = vadd.f32 %v474, %v502
          %v507 = vadd.f32 %v475, %v503
          %v508 = vstv %s361
          %v509 = vmul.f32 %v508, %v462
          %v510 = vmul.f32 %v508, %v463
          %v513 = vrot.slane %v509, 1
          %v514 = vrot.slane %v510, 1
          %v517 = vadd.f32 %v479, %v513
          %v518 = vadd.f32 %v480, %v514
          %v519 = vstv %s415
          %v520 = vmul.f32 %v519, %v462
          %v521 = vmul.f32 %v519, %v463
          %v524 = vrot.slane %v520, 1
          %v525 = vrot.slane %v521, 1
          %v528 = vadd.f32 %v484, %v524
          %v529 = vadd.f32 %v485, %v525
          %v530 = vstv %s262
          %v531 = vmul.f32 %v530, %v462
          %v532 = vmul.f32 %v530, %v463
          %v535 = vrot.slane %v531, 2
          %v536 = vrot.slane %v532, 2
          %v539 = vadd.f32 %v495, %v535
          %v540 = vadd.f32 %v496, %v536
          %v541 = vstv %s316
          %v542 = vmul.f32 %v541, %v462
          %v543 = vmul.f32 %v541, %v463
          %v546 = vrot.slane %v542, 2
          %v547 = vrot.slane %v543, 2
          %v550 = vadd.f32 %v506, %v546
          %v551 = vadd.f32 %v507, %v547
          %v552 = vstv %s370
          %v553 = vmul.f32 %v552, %v462
          %v554 = vmul.f32 %v552, %v463
          %v557 = vrot.slane %v553, 2
          %v558 = vrot.slane %v554, 2
          %v561 = vadd.f32 %v517, %v557
          %v562 = vadd.f32 %v518, %v558
          %v563 = vstv %s424
          %v564 = vmul.f32 %v563, %v462
          %v565 = vmul.f32 %v563, %v463
          %v568 = vrot.slane %v564, 2
          %v569 = vrot.slane %v565, 2
          %v572 = vadd.f32 %v528, %v568
          %v573 = vadd.f32 %v529, %v569
          %574 = vrot.lane.b32.xlu0 %v462, 127
          %v575 = vpop.permute.xlu0 %574
          %576 = vrot.lane.b32.xlu0 %v463, 127
          %v577 = vpop.permute.xlu0 %576
          %v578 = vlaneseq
          %v579 = vand.u32 %v578, 127
          %vm580 = vcmp.lt.s32.totalorder %v579, 127
          %v581 = vsel %vm580, %v575, %v577
          %v582 = vsel %vm580, %v577, %v575
          %v583 = vstv %s245
          %v584 = vmul.f32 %v583, %v581
          %v585 = vmul.f32 %v583, %v582
          %v586 = vadd.f32 %v539, %v584
          %v587 = vadd.f32 %v540, %v585
          %v588 = vstv %s299
          %v589 = vmul.f32 %v588, %v581
          %v590 = vmul.f32 %v588, %v582
          %v591 = vadd.f32 %v550, %v589
          %v592 = vadd.f32 %v551, %v590
          %v593 = vstv %s353
          %v594 = vmul.f32 %v593, %v581
          %v595 = vmul.f32 %v593, %v582
          %v596 = vadd.f32 %v561, %v594
          %v597 = vadd.f32 %v562, %v595
          %v598 = vstv %s407
          %v599 = vmul.f32 %v598, %v581
          %v600 = vmul.f32 %v598, %v582
          %v601 = vadd.f32 %v572, %v599
          %v602 = vadd.f32 %v573, %v600
          %v603 = vstv %s254
          %v604 = vmul.f32 %v603, %v581
          %v605 = vmul.f32 %v603, %v582
          %v608 = vrot.slane %v604, 1
          %v609 = vrot.slane %v605, 1
          %v612 = vadd.f32 %v586, %v608
          %v613 = vadd.f32 %v587, %v609
          %v614 = vstv %s308
          %v615 = vmul.f32 %v614, %v581
          %v616 = vmul.f32 %v614, %v582
          %v619 = vrot.slane %v615, 1
          %v620 = vrot.slane %v616, 1
          %v623 = vadd.f32 %v591, %v619
          %v624 = vadd.f32 %v592, %v620
          %v625 = vstv %s362
          %v626 = vmul.f32 %v625, %v581
          %v627 = vmul.f32 %v625, %v582
          %v630 = vrot.slane %v626, 1
          %v631 = vrot.slane %v627, 1
          %v634 = vadd.f32 %v596, %v630
          %v635 = vadd.f32 %v597, %v631
          %v636 = vstv %s416
          %v637 = vmul.f32 %v636, %v581
          %v638 = vmul.f32 %v636, %v582
          %v641 = vrot.slane %v637, 1
          %v642 = vrot.slane %v638, 1
          %v645 = vadd.f32 %v601, %v641
          %v646 = vadd.f32 %v602, %v642
          %v647 = vstv %s263
          %v648 = vmul.f32 %v647, %v581
          %v649 = vmul.f32 %v647, %v582
          %v652 = vrot.slane %v648, 2
          %v653 = vrot.slane %v649, 2
          %v656 = vadd.f32 %v612, %v652
          %v657 = vadd.f32 %v613, %v653
          %v658 = vstv %s317
          %v659 = vmul.f32 %v658, %v581
          %v660 = vmul.f32 %v658, %v582
          %v663 = vrot.slane %v659, 2
          %v664 = vrot.slane %v660, 2
          %v667 = vadd.f32 %v623, %v663
          %v668 = vadd.f32 %v624, %v664
          %v669 = vstv %s371
          %v670 = vmul.f32 %v669, %v581
          %v671 = vmul.f32 %v669, %v582
          %v674 = vrot.slane %v670, 2
          %v675 = vrot.slane %v671, 2
          %v678 = vadd.f32 %v634, %v674
          %v679 = vadd.f32 %v635, %v675
          %v680 = vstv %s425
          %v681 = vmul.f32 %v680, %v581
          %v682 = vmul.f32 %v680, %v582
          %v685 = vrot.slane %v681, 2
          %v686 = vrot.slane %v682, 2
          %v689 = vadd.f32 %v645, %v685
          %v690 = vadd.f32 %v646, %v686
          %691 = vrot.lane.b32.xlu0 %v462, 126
          %v692 = vpop.permute.xlu0 %691
          %693 = vrot.lane.b32.xlu0 %v463, 126
          %v694 = vpop.permute.xlu0 %693
          %vm695 = vcmp.lt.s32.totalorder %v579, 126
          %v696 = vsel %vm695, %v692, %v694
          %v697 = vsel %vm695, %v694, %v692
          %v698 = vstv %s246
          %v699 = vmul.f32 %v698, %v696
          %v700 = vmul.f32 %v698, %v697
          %v701 = vadd.f32 %v656, %v699
          %v702 = vadd.f32 %v657, %v700
          %v703 = vstv %s300
          %v704 = vmul.f32 %v703, %v696
          %v705 = vmul.f32 %v703, %v697
          %v706 = vadd.f32 %v667, %v704
          %v707 = vadd.f32 %v668, %v705
          %v708 = vstv %s354
          %v709 = vmul.f32 %v708, %v696
          %v710 = vmul.f32 %v708, %v697
          %v711 = vadd.f32 %v678, %v709
          %v712 = vadd.f32 %v679, %v710
          %v713 = vstv %s408
          %v714 = vmul.f32 %v713, %v696
          %v715 = vmul.f32 %v713, %v697
          %v716 = vadd.f32 %v689, %v714
          %v717 = vadd.f32 %v690, %v715
          %v718 = vstv %s255
          %v719 = vmul.f32 %v718, %v696
          %v720 = vmul.f32 %v718, %v697
          %v723 = vrot.slane %v719, 1
          %v724 = vrot.slane %v720, 1
          %v727 = vadd.f32 %v701, %v723
          %v728 = vadd.f32 %v702, %v724
          %v729 = vstv %s309
          %v730 = vmul.f32 %v729, %v696
          %v731 = vmul.f32 %v729, %v697
          %v734 = vrot.slane %v730, 1
          %v735 = vrot.slane %v731, 1
          %v738 = vadd.f32 %v706, %v734
          %v739 = vadd.f32 %v707, %v735
          %v740 = vstv %s363
          %v741 = vmul.f32 %v740, %v696
          %v742 = vmul.f32 %v740, %v697
          %v745 = vrot.slane %v741, 1
          %v746 = vrot.slane %v742, 1
          %v749 = vadd.f32 %v711, %v745
          %v750 = vadd.f32 %v712, %v746
          %v751 = vstv %s417
          %v752 = vmul.f32 %v751, %v696
          %v753 = vmul.f32 %v751, %v697
          %v756 = vrot.slane %v752, 1
          %v757 = vrot.slane %v753, 1
          %v760 = vadd.f32 %v716, %v756
          %v761 = vadd.f32 %v717, %v757
          %v762 = vstv %s264
          %v763 = vmul.f32 %v762, %v696
          %v764 = vmul.f32 %v762, %v697
          %v767 = vrot.slane %v763, 2
          %v768 = vrot.slane %v764, 2
          %v771 = vadd.f32 %v727, %v767
          %v772 = vadd.f32 %v728, %v768
          %v773 = vstv %s318
          %v774 = vmul.f32 %v773, %v696
          %v775 = vmul.f32 %v773, %v697
          %v778 = vrot.slane %v774, 2
          %v779 = vrot.slane %v775, 2
          %v782 = vadd.f32 %v738, %v778
          %v783 = vadd.f32 %v739, %v779
          %v784 = vstv %s372
          %v785 = vmul.f32 %v784, %v696
          %v786 = vmul.f32 %v784, %v697
          %v789 = vrot.slane %v785, 2
          %v790 = vrot.slane %v786, 2
          %v793 = vadd.f32 %v749, %v789
          %v794 = vadd.f32 %v750, %v790
          %v795 = vstv %s426
          %v796 = vmul.f32 %v795, %v696
          %v797 = vmul.f32 %v795, %v697
          %v800 = vrot.slane %v796, 2
          %v801 = vrot.slane %v797, 2
          %v804 = vadd.f32 %v760, %v800
          %v805 = vadd.f32 %v761, %v801
          %806 = vrot.lane.b32.xlu0 %v462, 112
          %v807 = vpop.permute.xlu0 %806
          %808 = vrot.lane.b32.xlu0 %v463, 112
          %v809 = vpop.permute.xlu0 %808
          %vm810 = vcmp.lt.s32.totalorder %v579, 112
          %v811 = vsel %vm810, %v807, %v809
          %v812 = vsel %vm810, %v809, %v807
          %v813 = vstv %s247
          %v814 = vmul.f32 %v813, %v811
          %v815 = vmul.f32 %v813, %v812
          %v816 = vadd.f32 %v771, %v814
          %v817 = vadd.f32 %v772, %v815
          %v818 = vstv %s301
          %v819 = vmul.f32 %v818, %v811
          %v820 = vmul.f32 %v818, %v812
          %v821 = vadd.f32 %v782, %v819
          %v822 = vadd.f32 %v783, %v820
          %v823 = vstv %s355
          %v824 = vmul.f32 %v823, %v811
          %v825 = vmul.f32 %v823, %v812
          %v826 = vadd.f32 %v793, %v824
          %v827 = vadd.f32 %v794, %v825
          %v828 = vstv %s409
          %v829 = vmul.f32 %v828, %v811
          %v830 = vmul.f32 %v828, %v812
          %v831 = vadd.f32 %v804, %v829
          %v832 = vadd.f32 %v805, %v830
          %v833 = vstv %s256
          %v834 = vmul.f32 %v833, %v811
          %v835 = vmul.f32 %v833, %v812
          %v838 = vrot.slane %v834, 1
          %v839 = vrot.slane %v835, 1
          %v842 = vadd.f32 %v816, %v838
          %v843 = vadd.f32 %v817, %v839
          %v844 = vstv %s310
          %v845 = vmul.f32 %v844, %v811
          %v846 = vmul.f32 %v844, %v812
          %v849 = vrot.slane %v845, 1
          %v850 = vrot.slane %v846, 1
          %v853 = vadd.f32 %v821, %v849
          %v854 = vadd.f32 %v822, %v850
          %v855 = vstv %s364
          %v856 = vmul.f32 %v855, %v811
          %v857 = vmul.f32 %v855, %v812
          %v860 = vrot.slane %v856, 1
          %v861 = vrot.slane %v857, 1
          %v864 = vadd.f32 %v826, %v860
          %v865 = vadd.f32 %v827, %v861
          %v866 = vstv %s418
          %v867 = vmul.f32 %v866, %v811
          %v868 = vmul.f32 %v866, %v812
          %v871 = vrot.slane %v867, 1
          %v872 = vrot.slane %v868, 1
          %v875 = vadd.f32 %v831, %v871
          %v876 = vadd.f32 %v832, %v872
          %v877 = vstv %s265
          %v878 = vmul.f32 %v877, %v811
          %v879 = vmul.f32 %v877, %v812
          %v882 = vrot.slane %v878, 2
          %v883 = vrot.slane %v879, 2
          %v886 = vadd.f32 %v842, %v882
          %v887 = vadd.f32 %v843, %v883
          %v888 = vstv %s319
          %v889 = vmul.f32 %v888, %v811
          %v890 = vmul.f32 %v888, %v812
          %v893 = vrot.slane %v889, 2
          %v894 = vrot.slane %v890, 2
          %v897 = vadd.f32 %v853, %v893
          %v898 = vadd.f32 %v854, %v894
          %v899 = vstv %s373
          %v900 = vmul.f32 %v899, %v811
          %v901 = vmul.f32 %v899, %v812
          %v904 = vrot.slane %v900, 2
          %v905 = vrot.slane %v901, 2
          %v908 = vadd.f32 %v864, %v904
          %v909 = vadd.f32 %v865, %v905
          %v910 = vstv %s427
          %v911 = vmul.f32 %v910, %v811
          %v912 = vmul.f32 %v910, %v812
          %v915 = vrot.slane %v911, 2
          %v916 = vrot.slane %v912, 2
          %v919 = vadd.f32 %v875, %v915
          %v920 = vadd.f32 %v876, %v916
          %921 = vrot.lane.b32.xlu0 %v462, 111
          %v922 = vpop.permute.xlu0 %921
          %923 = vrot.lane.b32.xlu0 %v463, 111
          %v924 = vpop.permute.xlu0 %923
          %vm925 = vcmp.lt.s32.totalorder %v579, 111
          %v926 = vsel %vm925, %v922, %v924
          %v927 = vsel %vm925, %v924, %v922
          %v928 = vstv %s248
          %v929 = vmul.f32 %v928, %v926
          %v930 = vmul.f32 %v928, %v927
          %v931 = vadd.f32 %v886, %v929
          %v932 = vadd.f32 %v887, %v930
          %v933 = vstv %s302
          %v934 = vmul.f32 %v933, %v926
          %v935 = vmul.f32 %v933, %v927
          %v936 = vadd.f32 %v897, %v934
          %v937 = vadd.f32 %v898, %v935
          %v938 = vstv %s356
          %v939 = vmul.f32 %v938, %v926
          %v940 = vmul.f32 %v938, %v927
          %v941 = vadd.f32 %v908, %v939
          %v942 = vadd.f32 %v909, %v940
          %v943 = vstv %s410
          %v944 = vmul.f32 %v943, %v926
          %v945 = vmul.f32 %v943, %v927
          %v946 = vadd.f32 %v919, %v944
          %v947 = vadd.f32 %v920, %v945
          %v948 = vstv %s257
          %v949 = vmul.f32 %v948, %v926
          %v950 = vmul.f32 %v948, %v927
          %v953 = vrot.slane %v949, 1
          %v954 = vrot.slane %v950, 1
          %v957 = vadd.f32 %v931, %v953
          %v958 = vadd.f32 %v932, %v954
          %v959 = vstv %s311
          %v960 = vmul.f32 %v959, %v926
          %v961 = vmul.f32 %v959, %v927
          %v964 = vrot.slane %v960, 1
          %v965 = vrot.slane %v961, 1
          %v968 = vadd.f32 %v936, %v964
          %v969 = vadd.f32 %v937, %v965
          %v970 = vstv %s365
          %v971 = vmul.f32 %v970, %v926
          %v972 = vmul.f32 %v970, %v927
          %v975 = vrot.slane %v971, 1
          %v976 = vrot.slane %v972, 1
          %v979 = vadd.f32 %v941, %v975
          %v980 = vadd.f32 %v942, %v976
          %v981 = vstv %s419
          %v982 = vmul.f32 %v981, %v926
          %v983 = vmul.f32 %v981, %v927
          %v986 = vrot.slane %v982, 1
          %v987 = vrot.slane %v983, 1
          %v990 = vadd.f32 %v946, %v986
          %v991 = vadd.f32 %v947, %v987
          %v992 = vstv %s266
          %v993 = vmul.f32 %v992, %v926
          %v994 = vmul.f32 %v992, %v927
          %v997 = vrot.slane %v993, 2
          %v998 = vrot.slane %v994, 2
          %v1001 = vadd.f32 %v957, %v997
          %v1002 = vadd.f32 %v958, %v998
          %v1003 = vstv %s320
          %v1004 = vmul.f32 %v1003, %v926
          %v1005 = vmul.f32 %v1003, %v927
          %v1008 = vrot.slane %v1004, 2
          %v1009 = vrot.slane %v1005, 2
          %v1012 = vadd.f32 %v968, %v1008
          %v1013 = vadd.f32 %v969, %v1009
          %v1014 = vstv %s374
          %v1015 = vmul.f32 %v1014, %v926
          %v1016 = vmul.f32 %v1014, %v927
          %v1019 = vrot.slane %v1015, 2
          %v1020 = vrot.slane %v1016, 2
          %v1023 = vadd.f32 %v979, %v1019
          %v1024 = vadd.f32 %v980, %v1020
          %v1025 = vstv %s428
          %v1026 = vmul.f32 %v1025, %v926
          %v1027 = vmul.f32 %v1025, %v927
          %v1030 = vrot.slane %v1026, 2
          %v1031 = vrot.slane %v1027, 2
          %v1034 = vadd.f32 %v990, %v1030
          %v1035 = vadd.f32 %v991, %v1031
          %1036 = vrot.lane.b32.xlu0 %v462, 110
          %v1037 = vpop.permute.xlu0 %1036
          %1038 = vrot.lane.b32.xlu0 %v463, 110
          %v1039 = vpop.permute.xlu0 %1038
          %vm1040 = vcmp.lt.s32.totalorder %v579, 110
          %v1041 = vsel %vm1040, %v1037, %v1039
          %v1042 = vsel %vm1040, %v1039, %v1037
          %v1043 = vstv %s249
          %v1044 = vmul.f32 %v1043, %v1041
          %v1045 = vmul.f32 %v1043, %v1042
          %v1046 = vadd.f32 %v1001, %v1044
          %v1047 = vadd.f32 %v1002, %v1045
          %v1048 = vstv %s303
          %v1049 = vmul.f32 %v1048, %v1041
          %v1050 = vmul.f32 %v1048, %v1042
          %v1051 = vadd.f32 %v1012, %v1049
          %v1052 = vadd.f32 %v1013, %v1050
          %v1053 = vstv %s357
          %v1054 = vmul.f32 %v1053, %v1041
          %v1055 = vmul.f32 %v1053, %v1042
          %v1056 = vadd.f32 %v1023, %v1054
          %v1057 = vadd.f32 %v1024, %v1055
          %v1058 = vstv %s411
          %v1059 = vmul.f32 %v1058, %v1041
          %v1060 = vmul.f32 %v1058, %v1042
          %v1061 = vadd.f32 %v1034, %v1059
          %v1062 = vadd.f32 %v1035, %v1060
          %v1063 = vstv %s258
          %v1064 = vmul.f32 %v1063, %v1041
          %v1065 = vmul.f32 %v1063, %v1042
          %v1068 = vrot.slane %v1064, 1
          %v1069 = vrot.slane %v1065, 1
          %v1072 = vadd.f32 %v1046, %v1068
          %v1073 = vadd.f32 %v1047, %v1069
          %v1074 = vstv %s312
          %v1075 = vmul.f32 %v1074, %v1041
          %v1076 = vmul.f32 %v1074, %v1042
          %v1079 = vrot.slane %v1075, 1
          %v1080 = vrot.slane %v1076, 1
          %v1083 = vadd.f32 %v1051, %v1079
          %v1084 = vadd.f32 %v1052, %v1080
          %v1085 = vstv %s366
          %v1086 = vmul.f32 %v1085, %v1041
          %v1087 = vmul.f32 %v1085, %v1042
          %v1090 = vrot.slane %v1086, 1
          %v1091 = vrot.slane %v1087, 1
          %v1094 = vadd.f32 %v1056, %v1090
          %v1095 = vadd.f32 %v1057, %v1091
          %v1096 = vstv %s420
          %v1097 = vmul.f32 %v1096, %v1041
          %v1098 = vmul.f32 %v1096, %v1042
          %v1101 = vrot.slane %v1097, 1
          %v1102 = vrot.slane %v1098, 1
          %v1105 = vadd.f32 %v1061, %v1101
          %v1106 = vadd.f32 %v1062, %v1102
          %v1107 = vstv %s267
          %v1108 = vmul.f32 %v1107, %v1041
          %v1109 = vmul.f32 %v1107, %v1042
          %v1112 = vrot.slane %v1108, 2
          %v1113 = vrot.slane %v1109, 2
          %v1116 = vadd.f32 %v1072, %v1112
          %v1117 = vadd.f32 %v1073, %v1113
          %v1118 = vstv %s321
          %v1119 = vmul.f32 %v1118, %v1041
          %v1120 = vmul.f32 %v1118, %v1042
          %v1123 = vrot.slane %v1119, 2
          %v1124 = vrot.slane %v1120, 2
          %v1127 = vadd.f32 %v1083, %v1123
          %v1128 = vadd.f32 %v1084, %v1124
          %v1129 = vstv %s375
          %v1130 = vmul.f32 %v1129, %v1041
          %v1131 = vmul.f32 %v1129, %v1042
          %v1134 = vrot.slane %v1130, 2
          %v1135 = vrot.slane %v1131, 2
          %v1138 = vadd.f32 %v1094, %v1134
          %v1139 = vadd.f32 %v1095, %v1135
          %v1140 = vstv %s429
          %v1141 = vmul.f32 %v1140, %v1041
          %v1142 = vmul.f32 %v1140, %v1042
          %v1145 = vrot.slane %v1141, 2
          %v1146 = vrot.slane %v1142, 2
          %v1149 = vadd.f32 %v1105, %v1145
          %v1150 = vadd.f32 %v1106, %v1146
          %1151 = vrot.lane.b32.xlu0 %v462, 96
          %v1152 = vpop.permute.xlu0 %1151
          %1153 = vrot.lane.b32.xlu0 %v463, 96
          %v1154 = vpop.permute.xlu0 %1153
          %vm1155 = vcmp.lt.s32.totalorder %v579, 96
          %v1156 = vsel %vm1155, %v1152, %v1154
          %v1157 = vsel %vm1155, %v1154, %v1152
          %v1158 = vstv %s250
          %v1159 = vmul.f32 %v1158, %v1156
          %v1160 = vmul.f32 %v1158, %v1157
          %v1161 = vadd.f32 %v1116, %v1159
          %v1162 = vadd.f32 %v1117, %v1160
          %v1163 = vstv %s304
          %v1164 = vmul.f32 %v1163, %v1156
          %v1165 = vmul.f32 %v1163, %v1157
          %v1166 = vadd.f32 %v1127, %v1164
          %v1167 = vadd.f32 %v1128, %v1165
          %v1168 = vstv %s358
          %v1169 = vmul.f32 %v1168, %v1156
          %v1170 = vmul.f32 %v1168, %v1157
          %v1171 = vadd.f32 %v1138, %v1169
          %v1172 = vadd.f32 %v1139, %v1170
          %v1173 = vstv %s412
          %v1174 = vmul.f32 %v1173, %v1156
          %v1175 = vmul.f32 %v1173, %v1157
          %v1176 = vadd.f32 %v1149, %v1174
          %v1177 = vadd.f32 %v1150, %v1175
          %v1178 = vstv %s259
          %v1179 = vmul.f32 %v1178, %v1156
          %v1180 = vmul.f32 %v1178, %v1157
          %v1183 = vrot.slane %v1179, 1
          %v1184 = vrot.slane %v1180, 1
          %v1187 = vadd.f32 %v1161, %v1183
          %v1188 = vadd.f32 %v1162, %v1184
          %v1189 = vstv %s313
          %v1190 = vmul.f32 %v1189, %v1156
          %v1191 = vmul.f32 %v1189, %v1157
          %v1194 = vrot.slane %v1190, 1
          %v1195 = vrot.slane %v1191, 1
          %v1198 = vadd.f32 %v1166, %v1194
          %v1199 = vadd.f32 %v1167, %v1195
          %v1200 = vstv %s367
          %v1201 = vmul.f32 %v1200, %v1156
          %v1202 = vmul.f32 %v1200, %v1157
          %v1205 = vrot.slane %v1201, 1
          %v1206 = vrot.slane %v1202, 1
          %v1209 = vadd.f32 %v1171, %v1205
          %v1210 = vadd.f32 %v1172, %v1206
          %v1211 = vstv %s421
          %v1212 = vmul.f32 %v1211, %v1156
          %v1213 = vmul.f32 %v1211, %v1157
          %v1216 = vrot.slane %v1212, 1
          %v1217 = vrot.slane %v1213, 1
          %v1220 = vadd.f32 %v1176, %v1216
          %v1221 = vadd.f32 %v1177, %v1217
          %v1222 = vstv %s268
          %v1223 = vmul.f32 %v1222, %v1156
          %v1224 = vmul.f32 %v1222, %v1157
          %v1227 = vrot.slane %v1223, 2
          %v1228 = vrot.slane %v1224, 2
          %v1231 = vadd.f32 %v1187, %v1227
          %v1232 = vadd.f32 %v1188, %v1228
          %v1233 = vstv %s322
          %v1234 = vmul.f32 %v1233, %v1156
          %v1235 = vmul.f32 %v1233, %v1157
          %v1238 = vrot.slane %v1234, 2
          %v1239 = vrot.slane %v1235, 2
          %v1242 = vadd.f32 %v1198, %v1238
          %v1243 = vadd.f32 %v1199, %v1239
          %v1244 = vstv %s376
          %v1245 = vmul.f32 %v1244, %v1156
          %v1246 = vmul.f32 %v1244, %v1157
          %v1249 = vrot.slane %v1245, 2
          %v1250 = vrot.slane %v1246, 2
          %v1253 = vadd.f32 %v1209, %v1249
          %v1254 = vadd.f32 %v1210, %v1250
          %v1255 = vstv %s430
          %v1256 = vmul.f32 %v1255, %v1156
          %v1257 = vmul.f32 %v1255, %v1157
          %v1260 = vrot.slane %v1256, 2
          %v1261 = vrot.slane %v1257, 2
          %v1264 = vadd.f32 %v1220, %v1260
          %v1265 = vadd.f32 %v1221, %v1261
          %1266 = vrot.lane.b32.xlu0 %v462, 95
          %v1267 = vpop.permute.xlu0 %1266
          %1268 = vrot.lane.b32.xlu0 %v463, 95
          %v1269 = vpop.permute.xlu0 %1268
          %vm1270 = vcmp.lt.s32.totalorder %v579, 95
          %v1271 = vsel %vm1270, %v1267, %v1269
          %v1272 = vsel %vm1270, %v1269, %v1267
          %v1273 = vstv %s251
          %v1274 = vmul.f32 %v1273, %v1271
          %v1275 = vmul.f32 %v1273, %v1272
          %v1276 = vadd.f32 %v1231, %v1274
          %v1277 = vadd.f32 %v1232, %v1275
          %v1278 = vstv %s305
          %v1279 = vmul.f32 %v1278, %v1271
          %v1280 = vmul.f32 %v1278, %v1272
          %v1281 = vadd.f32 %v1242, %v1279
          %v1282 = vadd.f32 %v1243, %v1280
          %v1283 = vstv %s359
          %v1284 = vmul.f32 %v1283, %v1271
          %v1285 = vmul.f32 %v1283, %v1272
          %v1286 = vadd.f32 %v1253, %v1284
          %v1287 = vadd.f32 %v1254, %v1285
          %v1288 = vstv %s413
          %v1289 = vmul.f32 %v1288, %v1271
          %v1290 = vmul.f32 %v1288, %v1272
          %v1291 = vadd.f32 %v1264, %v1289
          %v1292 = vadd.f32 %v1265, %v1290
          %v1293 = vstv %s260
          %v1294 = vmul.f32 %v1293, %v1271
          %v1295 = vmul.f32 %v1293, %v1272
          %v1298 = vrot.slane %v1294, 1
          %v1299 = vrot.slane %v1295, 1
          %v1302 = vadd.f32 %v1276, %v1298
          %v1303 = vadd.f32 %v1277, %v1299
          %v1304 = vstv %s314
          %v1305 = vmul.f32 %v1304, %v1271
          %v1306 = vmul.f32 %v1304, %v1272
          %v1309 = vrot.slane %v1305, 1
          %v1310 = vrot.slane %v1306, 1
          %v1313 = vadd.f32 %v1281, %v1309
          %v1314 = vadd.f32 %v1282, %v1310
          %v1315 = vstv %s368
          %v1316 = vmul.f32 %v1315, %v1271
          %v1317 = vmul.f32 %v1315, %v1272
          %v1320 = vrot.slane %v1316, 1
          %v1321 = vrot.slane %v1317, 1
          %v1324 = vadd.f32 %v1286, %v1320
          %v1325 = vadd.f32 %v1287, %v1321
          %v1326 = vstv %s422
          %v1327 = vmul.f32 %v1326, %v1271
          %v1328 = vmul.f32 %v1326, %v1272
          %v1331 = vrot.slane %v1327, 1
          %v1332 = vrot.slane %v1328, 1
          %v1335 = vadd.f32 %v1291, %v1331
          %v1336 = vadd.f32 %v1292, %v1332
          %v1337 = vstv %s269
          %v1338 = vmul.f32 %v1337, %v1271
          %v1339 = vmul.f32 %v1337, %v1272
          %v1342 = vrot.slane %v1338, 2
          %v1343 = vrot.slane %v1339, 2
          %v1346 = vadd.f32 %v1302, %v1342
          %v1347 = vadd.f32 %v1303, %v1343
          %v1348 = vstv %s323
          %v1349 = vmul.f32 %v1348, %v1271
          %v1350 = vmul.f32 %v1348, %v1272
          %v1353 = vrot.slane %v1349, 2
          %v1354 = vrot.slane %v1350, 2
          %v1357 = vadd.f32 %v1313, %v1353
          %v1358 = vadd.f32 %v1314, %v1354
          %v1359 = vstv %s377
          %v1360 = vmul.f32 %v1359, %v1271
          %v1361 = vmul.f32 %v1359, %v1272
          %v1364 = vrot.slane %v1360, 2
          %v1365 = vrot.slane %v1361, 2
          %v1368 = vadd.f32 %v1324, %v1364
          %v1369 = vadd.f32 %v1325, %v1365
          %v1370 = vstv %s431
          %v1371 = vmul.f32 %v1370, %v1271
          %v1372 = vmul.f32 %v1370, %v1272
          %v1375 = vrot.slane %v1371, 2
          %v1376 = vrot.slane %v1372, 2
          %v1379 = vadd.f32 %v1335, %v1375
          %v1380 = vadd.f32 %v1336, %v1376
          %1381 = vrot.lane.b32.xlu0 %v462, 94
          %v1382 = vpop.permute.xlu0 %1381
          %1383 = vrot.lane.b32.xlu0 %v463, 94
          %v1384 = vpop.permute.xlu0 %1383
          %vm1385 = vcmp.lt.s32.totalorder %v579, 94
          %v1386 = vsel %vm1385, %v1382, %v1384
          %v1387 = vsel %vm1385, %v1384, %v1382
          %v1388 = vstv %s252
          %v1389 = vmul.f32 %v1388, %v1386
          %v1390 = vmul.f32 %v1388, %v1387
          %v1391 = vadd.f32 %v1346, %v1389
          %v1392 = vadd.f32 %v1347, %v1390
          %v1393 = vstv %s306
          %v1394 = vmul.f32 %v1393, %v1386
          %v1395 = vmul.f32 %v1393, %v1387
          %v1396 = vadd.f32 %v1357, %v1394
          %v1397 = vadd.f32 %v1358, %v1395
          %v1398 = vstv %s360
          %v1399 = vmul.f32 %v1398, %v1386
          %v1400 = vmul.f32 %v1398, %v1387
          %v1401 = vadd.f32 %v1368, %v1399
          %v1402 = vadd.f32 %v1369, %v1400
          %v1403 = vstv %s414
          %v1404 = vmul.f32 %v1403, %v1386
          %v1405 = vmul.f32 %v1403, %v1387
          %v1406 = vadd.f32 %v1379, %v1404
          %v1407 = vadd.f32 %v1380, %v1405
          %v1408 = vstv %s261
          %v1409 = vmul.f32 %v1408, %v1386
          %v1410 = vmul.f32 %v1408, %v1387
          %v1413 = vrot.slane %v1409, 1
          %v1414 = vrot.slane %v1410, 1
          %v1417 = vadd.f32 %v1391, %v1413
          %v1418 = vadd.f32 %v1392, %v1414
          %v1419 = vstv %s315
          %v1420 = vmul.f32 %v1419, %v1386
          %v1421 = vmul.f32 %v1419, %v1387
          %v1424 = vrot.slane %v1420, 1
          %v1425 = vrot.slane %v1421, 1
          %v1428 = vadd.f32 %v1396, %v1424
          %v1429 = vadd.f32 %v1397, %v1425
          %v1430 = vstv %s369
          %v1431 = vmul.f32 %v1430, %v1386
          %v1432 = vmul.f32 %v1430, %v1387
          %v1435 = vrot.slane %v1431, 1
          %v1436 = vrot.slane %v1432, 1
          %v1439 = vadd.f32 %v1401, %v1435
          %v1440 = vadd.f32 %v1402, %v1436
          %v1441 = vstv %s423
          %v1442 = vmul.f32 %v1441, %v1386
          %v1443 = vmul.f32 %v1441, %v1387
          %v1446 = vrot.slane %v1442, 1
          %v1447 = vrot.slane %v1443, 1
          %v1450 = vadd.f32 %v1406, %v1446
          %v1451 = vadd.f32 %v1407, %v1447
          %v1452 = vstv %s270
          %v1453 = vmul.f32 %v1452, %v1386
          %v1454 = vmul.f32 %v1452, %v1387
          %v1457 = vrot.slane %v1453, 2
          %v1458 = vrot.slane %v1454, 2
          %v1461 = vadd.f32 %v1417, %v1457
          %v1462 = vadd.f32 %v1418, %v1458
          %v1463 = vstv %s324
          %v1464 = vmul.f32 %v1463, %v1386
          %v1465 = vmul.f32 %v1463, %v1387
          %v1468 = vrot.slane %v1464, 2
          %v1469 = vrot.slane %v1465, 2
          %v1472 = vadd.f32 %v1428, %v1468
          %v1473 = vadd.f32 %v1429, %v1469
          %v1474 = vstv %s378
          %v1475 = vmul.f32 %v1474, %v1386
          %v1476 = vmul.f32 %v1474, %v1387
          %v1479 = vrot.slane %v1475, 2
          %v1480 = vrot.slane %v1476, 2
          %v1483 = vadd.f32 %v1439, %v1479
          %v1484 = vadd.f32 %v1440, %v1480
          %v1485 = vstv %s432
          %v1486 = vmul.f32 %v1485, %v1386
          %v1487 = vmul.f32 %v1485, %v1387
          %v1490 = vrot.slane %v1486, 2
          %v1491 = vrot.slane %v1487, 2
          %v1494 = vadd.f32 %v1450, %v1490
          %v1495 = vadd.f32 %v1451, %v1491
          %v1496 = vstv %s271
          %v1497 = vmul.f32 %v1496, %v464
          %v1498 = vmul.f32 %v1496, %v465
          %v1499 = vadd.f32 %v1461, %v1497
          %v1500 = vadd.f32 %v1462, %v1498
          %v1501 = vstv %s325
          %v1502 = vmul.f32 %v1501, %v464
          %v1503 = vmul.f32 %v1501, %v465
          %v1504 = vadd.f32 %v1472, %v1502
          %v1505 = vadd.f32 %v1473, %v1503
          %v1506 = vstv %s379
          %v1507 = vmul.f32 %v1506, %v464
          %v1508 = vmul.f32 %v1506, %v465
          %v1509 = vadd.f32 %v1483, %v1507
          %v1510 = vadd.f32 %v1484, %v1508
          %v1511 = vstv %s433
          %v1512 = vmul.f32 %v1511, %v464
          %v1513 = vmul.f32 %v1511, %v465
          %v1514 = vadd.f32 %v1494, %v1512
          %v1515 = vadd.f32 %v1495, %v1513
          %v1516 = vstv %s280
          %v1517 = vmul.f32 %v1516, %v464
          %v1518 = vmul.f32 %v1516, %v465
          %v1521 = vrot.slane %v1517, 1
          %v1522 = vrot.slane %v1518, 1
          %v1525 = vadd.f32 %v1499, %v1521
          %v1526 = vadd.f32 %v1500, %v1522
          %v1527 = vstv %s334
          %v1528 = vmul.f32 %v1527, %v464
          %v1529 = vmul.f32 %v1527, %v465
          %v1532 = vrot.slane %v1528, 1
          %v1533 = vrot.slane %v1529, 1
          %v1536 = vadd.f32 %v1504, %v1532
          %v1537 = vadd.f32 %v1505, %v1533
          %v1538 = vstv %s388
          %v1539 = vmul.f32 %v1538, %v464
          %v1540 = vmul.f32 %v1538, %v465
          %v1543 = vrot.slane %v1539, 1
          %v1544 = vrot.slane %v1540, 1
          %v1547 = vadd.f32 %v1509, %v1543
          %v1548 = vadd.f32 %v1510, %v1544
          %v1549 = vstv %s442
          %v1550 = vmul.f32 %v1549, %v464
          %v1551 = vmul.f32 %v1549, %v465
          %v1554 = vrot.slane %v1550, 1
          %v1555 = vrot.slane %v1551, 1
          %v1558 = vadd.f32 %v1514, %v1554
          %v1559 = vadd.f32 %v1515, %v1555
          %v1560 = vstv %s289
          %v1561 = vmul.f32 %v1560, %v464
          %v1562 = vmul.f32 %v1560, %v465
          %v1565 = vrot.slane %v1561, 2
          %v1566 = vrot.slane %v1562, 2
          %v1569 = vadd.f32 %v1525, %v1565
          %v1570 = vadd.f32 %v1526, %v1566
          %v1571 = vstv %s343
          %v1572 = vmul.f32 %v1571, %v464
          %v1573 = vmul.f32 %v1571, %v465
          %v1576 = vrot.slane %v1572, 2
          %v1577 = vrot.slane %v1573, 2
          %v1580 = vadd.f32 %v1536, %v1576
          %v1581 = vadd.f32 %v1537, %v1577
          %v1582 = vstv %s397
          %v1583 = vmul.f32 %v1582, %v464
          %v1584 = vmul.f32 %v1582, %v465
          %v1587 = vrot.slane %v1583, 2
          %v1588 = vrot.slane %v1584, 2
          %v1591 = vadd.f32 %v1547, %v1587
          %v1592 = vadd.f32 %v1548, %v1588
          %v1593 = vstv %s451
          %v1594 = vmul.f32 %v1593, %v464
          %v1595 = vmul.f32 %v1593, %v465
          %v1598 = vrot.slane %v1594, 2
          %v1599 = vrot.slane %v1595, 2
          %v1602 = vadd.f32 %v1558, %v1598
          %v1603 = vadd.f32 %v1559, %v1599
          %1604 = vrot.lane.b32.xlu0 %v464, 127
          %v1605 = vpop.permute.xlu0 %1604
          %1606 = vrot.lane.b32.xlu0 %v465, 127
          %v1607 = vpop.permute.xlu0 %1606
          %v1608 = vsel %vm580, %v1605, %v1607
          %v1609 = vsel %vm580, %v1607, %v1605
          %v1610 = vstv %s272
          %v1611 = vmul.f32 %v1610, %v1608
          %v1612 = vmul.f32 %v1610, %v1609
          %v1613 = vadd.f32 %v1569, %v1611
          %v1614 = vadd.f32 %v1570, %v1612
          %v1615 = vstv %s326
          %v1616 = vmul.f32 %v1615, %v1608
          %v1617 = vmul.f32 %v1615, %v1609
          %v1618 = vadd.f32 %v1580, %v1616
          %v1619 = vadd.f32 %v1581, %v1617
          %v1620 = vstv %s380
          %v1621 = vmul.f32 %v1620, %v1608
          %v1622 = vmul.f32 %v1620, %v1609
          %v1623 = vadd.f32 %v1591, %v1621
          %v1624 = vadd.f32 %v1592, %v1622
          %v1625 = vstv %s434
          %v1626 = vmul.f32 %v1625, %v1608
          %v1627 = vmul.f32 %v1625, %v1609
          %v1628 = vadd.f32 %v1602, %v1626
          %v1629 = vadd.f32 %v1603, %v1627
          %v1630 = vstv %s281
          %v1631 = vmul.f32 %v1630, %v1608
          %v1632 = vmul.f32 %v1630, %v1609
          %v1635 = vrot.slane %v1631, 1
          %v1636 = vrot.slane %v1632, 1
          %v1639 = vadd.f32 %v1613, %v1635
          %v1640 = vadd.f32 %v1614, %v1636
          %v1641 = vstv %s335
          %v1642 = vmul.f32 %v1641, %v1608
          %v1643 = vmul.f32 %v1641, %v1609
          %v1646 = vrot.slane %v1642, 1
          %v1647 = vrot.slane %v1643, 1
          %v1650 = vadd.f32 %v1618, %v1646
          %v1651 = vadd.f32 %v1619, %v1647
          %v1652 = vstv %s389
          %v1653 = vmul.f32 %v1652, %v1608
          %v1654 = vmul.f32 %v1652, %v1609
          %v1657 = vrot.slane %v1653, 1
          %v1658 = vrot.slane %v1654, 1
          %v1661 = vadd.f32 %v1623, %v1657
          %v1662 = vadd.f32 %v1624, %v1658
          %v1663 = vstv %s443
          %v1664 = vmul.f32 %v1663, %v1608
          %v1665 = vmul.f32 %v1663, %v1609
          %v1668 = vrot.slane %v1664, 1
          %v1669 = vrot.slane %v1665, 1
          %v1672 = vadd.f32 %v1628, %v1668
          %v1673 = vadd.f32 %v1629, %v1669
          %v1674 = vstv %s290
          %v1675 = vmul.f32 %v1674, %v1608
          %v1676 = vmul.f32 %v1674, %v1609
          %v1679 = vrot.slane %v1675, 2
          %v1680 = vrot.slane %v1676, 2
          %v1683 = vadd.f32 %v1639, %v1679
          %v1684 = vadd.f32 %v1640, %v1680
          %v1685 = vstv %s344
          %v1686 = vmul.f32 %v1685, %v1608
          %v1687 = vmul.f32 %v1685, %v1609
          %v1690 = vrot.slane %v1686, 2
          %v1691 = vrot.slane %v1687, 2
          %v1694 = vadd.f32 %v1650, %v1690
          %v1695 = vadd.f32 %v1651, %v1691
          %v1696 = vstv %s398
          %v1697 = vmul.f32 %v1696, %v1608
          %v1698 = vmul.f32 %v1696, %v1609
          %v1701 = vrot.slane %v1697, 2
          %v1702 = vrot.slane %v1698, 2
          %v1705 = vadd.f32 %v1661, %v1701
          %v1706 = vadd.f32 %v1662, %v1702
          %v1707 = vstv %s452
          %v1708 = vmul.f32 %v1707, %v1608
          %v1709 = vmul.f32 %v1707, %v1609
          %v1712 = vrot.slane %v1708, 2
          %v1713 = vrot.slane %v1709, 2
          %v1716 = vadd.f32 %v1672, %v1712
          %v1717 = vadd.f32 %v1673, %v1713
          %1718 = vrot.lane.b32.xlu0 %v464, 126
          %v1719 = vpop.permute.xlu0 %1718
          %1720 = vrot.lane.b32.xlu0 %v465, 126
          %v1721 = vpop.permute.xlu0 %1720
          %v1722 = vsel %vm695, %v1719, %v1721
          %v1723 = vsel %vm695, %v1721, %v1719
          %v1724 = vstv %s273
          %v1725 = vmul.f32 %v1724, %v1722
          %v1726 = vmul.f32 %v1724, %v1723
          %v1727 = vadd.f32 %v1683, %v1725
          %v1728 = vadd.f32 %v1684, %v1726
          %v1729 = vstv %s327
          %v1730 = vmul.f32 %v1729, %v1722
          %v1731 = vmul.f32 %v1729, %v1723
          %v1732 = vadd.f32 %v1694, %v1730
          %v1733 = vadd.f32 %v1695, %v1731
          %v1734 = vstv %s381
          %v1735 = vmul.f32 %v1734, %v1722
          %v1736 = vmul.f32 %v1734, %v1723
          %v1737 = vadd.f32 %v1705, %v1735
          %v1738 = vadd.f32 %v1706, %v1736
          %v1739 = vstv %s435
          %v1740 = vmul.f32 %v1739, %v1722
          %v1741 = vmul.f32 %v1739, %v1723
          %v1742 = vadd.f32 %v1716, %v1740
          %v1743 = vadd.f32 %v1717, %v1741
          %v1744 = vstv %s282
          %v1745 = vmul.f32 %v1744, %v1722
          %v1746 = vmul.f32 %v1744, %v1723
          %v1749 = vrot.slane %v1745, 1
          %v1750 = vrot.slane %v1746, 1
          %v1753 = vadd.f32 %v1727, %v1749
          %v1754 = vadd.f32 %v1728, %v1750
          %v1755 = vstv %s336
          %v1756 = vmul.f32 %v1755, %v1722
          %v1757 = vmul.f32 %v1755, %v1723
          %v1760 = vrot.slane %v1756, 1
          %v1761 = vrot.slane %v1757, 1
          %v1764 = vadd.f32 %v1732, %v1760
          %v1765 = vadd.f32 %v1733, %v1761
          %v1766 = vstv %s390
          %v1767 = vmul.f32 %v1766, %v1722
          %v1768 = vmul.f32 %v1766, %v1723
          %v1771 = vrot.slane %v1767, 1
          %v1772 = vrot.slane %v1768, 1
          %v1775 = vadd.f32 %v1737, %v1771
          %v1776 = vadd.f32 %v1738, %v1772
          %v1777 = vstv %s444
          %v1778 = vmul.f32 %v1777, %v1722
          %v1779 = vmul.f32 %v1777, %v1723
          %v1782 = vrot.slane %v1778, 1
          %v1783 = vrot.slane %v1779, 1
          %v1786 = vadd.f32 %v1742, %v1782
          %v1787 = vadd.f32 %v1743, %v1783
          %v1788 = vstv %s291
          %v1789 = vmul.f32 %v1788, %v1722
          %v1790 = vmul.f32 %v1788, %v1723
          %v1793 = vrot.slane %v1789, 2
          %v1794 = vrot.slane %v1790, 2
          %v1797 = vadd.f32 %v1753, %v1793
          %v1798 = vadd.f32 %v1754, %v1794
          %v1799 = vstv %s345
          %v1800 = vmul.f32 %v1799, %v1722
          %v1801 = vmul.f32 %v1799, %v1723
          %v1804 = vrot.slane %v1800, 2
          %v1805 = vrot.slane %v1801, 2
          %v1808 = vadd.f32 %v1764, %v1804
          %v1809 = vadd.f32 %v1765, %v1805
          %v1810 = vstv %s399
          %v1811 = vmul.f32 %v1810, %v1722
          %v1812 = vmul.f32 %v1810, %v1723
          %v1815 = vrot.slane %v1811, 2
          %v1816 = vrot.slane %v1812, 2
          %v1819 = vadd.f32 %v1775, %v1815
          %v1820 = vadd.f32 %v1776, %v1816
          %v1821 = vstv %s453
          %v1822 = vmul.f32 %v1821, %v1722
          %v1823 = vmul.f32 %v1821, %v1723
          %v1826 = vrot.slane %v1822, 2
          %v1827 = vrot.slane %v1823, 2
          %v1830 = vadd.f32 %v1786, %v1826
          %v1831 = vadd.f32 %v1787, %v1827
          %1832 = vrot.lane.b32.xlu0 %v464, 112
          %v1833 = vpop.permute.xlu0 %1832
          %1834 = vrot.lane.b32.xlu0 %v465, 112
          %v1835 = vpop.permute.xlu0 %1834
          %v1836 = vsel %vm810, %v1833, %v1835
          %v1837 = vsel %vm810, %v1835, %v1833
          %v1838 = vstv %s274
          %v1839 = vmul.f32 %v1838, %v1836
          %v1840 = vmul.f32 %v1838, %v1837
          %v1841 = vadd.f32 %v1797, %v1839
          %v1842 = vadd.f32 %v1798, %v1840
          %v1843 = vstv %s328
          %v1844 = vmul.f32 %v1843, %v1836
          %v1845 = vmul.f32 %v1843, %v1837
          %v1846 = vadd.f32 %v1808, %v1844
          %v1847 = vadd.f32 %v1809, %v1845
          %v1848 = vstv %s382
          %v1849 = vmul.f32 %v1848, %v1836
          %v1850 = vmul.f32 %v1848, %v1837
          %v1851 = vadd.f32 %v1819, %v1849
          %v1852 = vadd.f32 %v1820, %v1850
          %v1853 = vstv %s436
          %v1854 = vmul.f32 %v1853, %v1836
          %v1855 = vmul.f32 %v1853, %v1837
          %v1856 = vadd.f32 %v1830, %v1854
          %v1857 = vadd.f32 %v1831, %v1855
          %v1858 = vstv %s283
          %v1859 = vmul.f32 %v1858, %v1836
          %v1860 = vmul.f32 %v1858, %v1837
          %v1863 = vrot.slane %v1859, 1
          %v1864 = vrot.slane %v1860, 1
          %v1867 = vadd.f32 %v1841, %v1863
          %v1868 = vadd.f32 %v1842, %v1864
          %v1869 = vstv %s337
          %v1870 = vmul.f32 %v1869, %v1836
          %v1871 = vmul.f32 %v1869, %v1837
          %v1874 = vrot.slane %v1870, 1
          %v1875 = vrot.slane %v1871, 1
          %v1878 = vadd.f32 %v1846, %v1874
          %v1879 = vadd.f32 %v1847, %v1875
          %v1880 = vstv %s391
          %v1881 = vmul.f32 %v1880, %v1836
          %v1882 = vmul.f32 %v1880, %v1837
          %v1885 = vrot.slane %v1881, 1
          %v1886 = vrot.slane %v1882, 1
          %v1889 = vadd.f32 %v1851, %v1885
          %v1890 = vadd.f32 %v1852, %v1886
          %v1891 = vstv %s445
          %v1892 = vmul.f32 %v1891, %v1836
          %v1893 = vmul.f32 %v1891, %v1837
          %v1896 = vrot.slane %v1892, 1
          %v1897 = vrot.slane %v1893, 1
          %v1900 = vadd.f32 %v1856, %v1896
          %v1901 = vadd.f32 %v1857, %v1897
          %v1902 = vstv %s292
          %v1903 = vmul.f32 %v1902, %v1836
          %v1904 = vmul.f32 %v1902, %v1837
          %v1907 = vrot.slane %v1903, 2
          %v1908 = vrot.slane %v1904, 2
          %v1911 = vadd.f32 %v1867, %v1907
          %v1912 = vadd.f32 %v1868, %v1908
          %v1913 = vstv %s346
          %v1914 = vmul.f32 %v1913, %v1836
          %v1915 = vmul.f32 %v1913, %v1837
          %v1918 = vrot.slane %v1914, 2
          %v1919 = vrot.slane %v1915, 2
          %v1922 = vadd.f32 %v1878, %v1918
          %v1923 = vadd.f32 %v1879, %v1919
          %v1924 = vstv %s400
          %v1925 = vmul.f32 %v1924, %v1836
          %v1926 = vmul.f32 %v1924, %v1837
          %v1929 = vrot.slane %v1925, 2
          %v1930 = vrot.slane %v1926, 2
          %v1933 = vadd.f32 %v1889, %v1929
          %v1934 = vadd.f32 %v1890, %v1930
          %v1935 = vstv %s454
          %v1936 = vmul.f32 %v1935, %v1836
          %v1937 = vmul.f32 %v1935, %v1837
          %v1940 = vrot.slane %v1936, 2
          %v1941 = vrot.slane %v1937, 2
          %v1944 = vadd.f32 %v1900, %v1940
          %v1945 = vadd.f32 %v1901, %v1941
          %1946 = vrot.lane.b32.xlu0 %v464, 111
          %v1947 = vpop.permute.xlu0 %1946
          %1948 = vrot.lane.b32.xlu0 %v465, 111
          %v1949 = vpop.permute.xlu0 %1948
          %v1950 = vsel %vm925, %v1947, %v1949
          %v1951 = vsel %vm925, %v1949, %v1947
          %v1952 = vstv %s275
          %v1953 = vmul.f32 %v1952, %v1950
          %v1954 = vmul.f32 %v1952, %v1951
          %v1955 = vadd.f32 %v1911, %v1953
          %v1956 = vadd.f32 %v1912, %v1954
          %v1957 = vstv %s329
          %v1958 = vmul.f32 %v1957, %v1950
          %v1959 = vmul.f32 %v1957, %v1951
          %v1960 = vadd.f32 %v1922, %v1958
          %v1961 = vadd.f32 %v1923, %v1959
          %v1962 = vstv %s383
          %v1963 = vmul.f32 %v1962, %v1950
          %v1964 = vmul.f32 %v1962, %v1951
          %v1965 = vadd.f32 %v1933, %v1963
          %v1966 = vadd.f32 %v1934, %v1964
          %v1967 = vstv %s437
          %v1968 = vmul.f32 %v1967, %v1950
          %v1969 = vmul.f32 %v1967, %v1951
          %v1970 = vadd.f32 %v1944, %v1968
          %v1971 = vadd.f32 %v1945, %v1969
          %v1972 = vstv %s284
          %v1973 = vmul.f32 %v1972, %v1950
          %v1974 = vmul.f32 %v1972, %v1951
          %v1977 = vrot.slane %v1973, 1
          %v1978 = vrot.slane %v1974, 1
          %v1981 = vadd.f32 %v1955, %v1977
          %v1982 = vadd.f32 %v1956, %v1978
          %v1983 = vstv %s338
          %v1984 = vmul.f32 %v1983, %v1950
          %v1985 = vmul.f32 %v1983, %v1951
          %v1988 = vrot.slane %v1984, 1
          %v1989 = vrot.slane %v1985, 1
          %v1992 = vadd.f32 %v1960, %v1988
          %v1993 = vadd.f32 %v1961, %v1989
          %v1994 = vstv %s392
          %v1995 = vmul.f32 %v1994, %v1950
          %v1996 = vmul.f32 %v1994, %v1951
          %v1999 = vrot.slane %v1995, 1
          %v2000 = vrot.slane %v1996, 1
          %v2003 = vadd.f32 %v1965, %v1999
          %v2004 = vadd.f32 %v1966, %v2000
          %v2005 = vstv %s446
          %v2006 = vmul.f32 %v2005, %v1950
          %v2007 = vmul.f32 %v2005, %v1951
          %v2010 = vrot.slane %v2006, 1
          %v2011 = vrot.slane %v2007, 1
          %v2014 = vadd.f32 %v1970, %v2010
          %v2015 = vadd.f32 %v1971, %v2011
          %v2016 = vstv %s293
          %v2017 = vmul.f32 %v2016, %v1950
          %v2018 = vmul.f32 %v2016, %v1951
          %v2021 = vrot.slane %v2017, 2
          %v2022 = vrot.slane %v2018, 2
          %v2025 = vadd.f32 %v1981, %v2021
          %v2026 = vadd.f32 %v1982, %v2022
          %v2027 = vstv %s347
          %v2028 = vmul.f32 %v2027, %v1950
          %v2029 = vmul.f32 %v2027, %v1951
          %v2032 = vrot.slane %v2028, 2
          %v2033 = vrot.slane %v2029, 2
          %v2036 = vadd.f32 %v1992, %v2032
          %v2037 = vadd.f32 %v1993, %v2033
          %v2038 = vstv %s401
          %v2039 = vmul.f32 %v2038, %v1950
          %v2040 = vmul.f32 %v2038, %v1951
          %v2043 = vrot.slane %v2039, 2
          %v2044 = vrot.slane %v2040, 2
          %v2047 = vadd.f32 %v2003, %v2043
          %v2048 = vadd.f32 %v2004, %v2044
          %v2049 = vstv %s455
          %v2050 = vmul.f32 %v2049, %v1950
          %v2051 = vmul.f32 %v2049, %v1951
          %v2054 = vrot.slane %v2050, 2
          %v2055 = vrot.slane %v2051, 2
          %v2058 = vadd.f32 %v2014, %v2054
          %v2059 = vadd.f32 %v2015, %v2055
          %2060 = vrot.lane.b32.xlu0 %v464, 110
          %v2061 = vpop.permute.xlu0 %2060
          %2062 = vrot.lane.b32.xlu0 %v465, 110
          %v2063 = vpop.permute.xlu0 %2062
          %v2064 = vsel %vm1040, %v2061, %v2063
          %v2065 = vsel %vm1040, %v2063, %v2061
          %v2066 = vstv %s276
          %v2067 = vmul.f32 %v2066, %v2064
          %v2068 = vmul.f32 %v2066, %v2065
          %v2069 = vadd.f32 %v2025, %v2067
          %v2070 = vadd.f32 %v2026, %v2068
          %v2071 = vstv %s330
          %v2072 = vmul.f32 %v2071, %v2064
          %v2073 = vmul.f32 %v2071, %v2065
          %v2074 = vadd.f32 %v2036, %v2072
          %v2075 = vadd.f32 %v2037, %v2073
          %v2076 = vstv %s384
          %v2077 = vmul.f32 %v2076, %v2064
          %v2078 = vmul.f32 %v2076, %v2065
          %v2079 = vadd.f32 %v2047, %v2077
          %v2080 = vadd.f32 %v2048, %v2078
          %v2081 = vstv %s438
          %v2082 = vmul.f32 %v2081, %v2064
          %v2083 = vmul.f32 %v2081, %v2065
          %v2084 = vadd.f32 %v2058, %v2082
          %v2085 = vadd.f32 %v2059, %v2083
          %v2086 = vstv %s285
          %v2087 = vmul.f32 %v2086, %v2064
          %v2088 = vmul.f32 %v2086, %v2065
          %v2091 = vrot.slane %v2087, 1
          %v2092 = vrot.slane %v2088, 1
          %v2095 = vadd.f32 %v2069, %v2091
          %v2096 = vadd.f32 %v2070, %v2092
          %v2097 = vstv %s339
          %v2098 = vmul.f32 %v2097, %v2064
          %v2099 = vmul.f32 %v2097, %v2065
          %v2102 = vrot.slane %v2098, 1
          %v2103 = vrot.slane %v2099, 1
          %v2106 = vadd.f32 %v2074, %v2102
          %v2107 = vadd.f32 %v2075, %v2103
          %v2108 = vstv %s393
          %v2109 = vmul.f32 %v2108, %v2064
          %v2110 = vmul.f32 %v2108, %v2065
          %v2113 = vrot.slane %v2109, 1
          %v2114 = vrot.slane %v2110, 1
          %v2117 = vadd.f32 %v2079, %v2113
          %v2118 = vadd.f32 %v2080, %v2114
          %v2119 = vstv %s447
          %v2120 = vmul.f32 %v2119, %v2064
          %v2121 = vmul.f32 %v2119, %v2065
          %v2124 = vrot.slane %v2120, 1
          %v2125 = vrot.slane %v2121, 1
          %v2128 = vadd.f32 %v2084, %v2124
          %v2129 = vadd.f32 %v2085, %v2125
          %v2130 = vstv %s294
          %v2131 = vmul.f32 %v2130, %v2064
          %v2132 = vmul.f32 %v2130, %v2065
          %v2135 = vrot.slane %v2131, 2
          %v2136 = vrot.slane %v2132, 2
          %v2139 = vadd.f32 %v2095, %v2135
          %v2140 = vadd.f32 %v2096, %v2136
          %v2141 = vstv %s348
          %v2142 = vmul.f32 %v2141, %v2064
          %v2143 = vmul.f32 %v2141, %v2065
          %v2146 = vrot.slane %v2142, 2
          %v2147 = vrot.slane %v2143, 2
          %v2150 = vadd.f32 %v2106, %v2146
          %v2151 = vadd.f32 %v2107, %v2147
          %v2152 = vstv %s402
          %v2153 = vmul.f32 %v2152, %v2064
          %v2154 = vmul.f32 %v2152, %v2065
          %v2157 = vrot.slane %v2153, 2
          %v2158 = vrot.slane %v2154, 2
          %v2161 = vadd.f32 %v2117, %v2157
          %v2162 = vadd.f32 %v2118, %v2158
          %v2163 = vstv %s456
          %v2164 = vmul.f32 %v2163, %v2064
          %v2165 = vmul.f32 %v2163, %v2065
          %v2168 = vrot.slane %v2164, 2
          %v2169 = vrot.slane %v2165, 2
          %v2172 = vadd.f32 %v2128, %v2168
          %v2173 = vadd.f32 %v2129, %v2169
          %2174 = vrot.lane.b32.xlu0 %v464, 96
          %v2175 = vpop.permute.xlu0 %2174
          %2176 = vrot.lane.b32.xlu0 %v465, 96
          %v2177 = vpop.permute.xlu0 %2176
          %v2178 = vsel %vm1155, %v2175, %v2177
          %v2179 = vsel %vm1155, %v2177, %v2175
          %v2180 = vstv %s277
          %v2181 = vmul.f32 %v2180, %v2178
          %v2182 = vmul.f32 %v2180, %v2179
          %v2183 = vadd.f32 %v2139, %v2181
          %v2184 = vadd.f32 %v2140, %v2182
          %v2185 = vstv %s331
          %v2186 = vmul.f32 %v2185, %v2178
          %v2187 = vmul.f32 %v2185, %v2179
          %v2188 = vadd.f32 %v2150, %v2186
          %v2189 = vadd.f32 %v2151, %v2187
          %v2190 = vstv %s385
          %v2191 = vmul.f32 %v2190, %v2178
          %v2192 = vmul.f32 %v2190, %v2179
          %v2193 = vadd.f32 %v2161, %v2191
          %v2194 = vadd.f32 %v2162, %v2192
          %v2195 = vstv %s439
          %v2196 = vmul.f32 %v2195, %v2178
          %v2197 = vmul.f32 %v2195, %v2179
          %v2198 = vadd.f32 %v2172, %v2196
          %v2199 = vadd.f32 %v2173, %v2197
          %v2200 = vstv %s286
          %v2201 = vmul.f32 %v2200, %v2178
          %v2202 = vmul.f32 %v2200, %v2179
          %v2205 = vrot.slane %v2201, 1
          %v2206 = vrot.slane %v2202, 1
          %v2209 = vadd.f32 %v2183, %v2205
          %v2210 = vadd.f32 %v2184, %v2206
          %v2211 = vstv %s340
          %v2212 = vmul.f32 %v2211, %v2178
          %v2213 = vmul.f32 %v2211, %v2179
          %v2216 = vrot.slane %v2212, 1
          %v2217 = vrot.slane %v2213, 1
          %v2220 = vadd.f32 %v2188, %v2216
          %v2221 = vadd.f32 %v2189, %v2217
          %v2222 = vstv %s394
          %v2223 = vmul.f32 %v2222, %v2178
          %v2224 = vmul.f32 %v2222, %v2179
          %v2227 = vrot.slane %v2223, 1
          %v2228 = vrot.slane %v2224, 1
          %v2231 = vadd.f32 %v2193, %v2227
          %v2232 = vadd.f32 %v2194, %v2228
          %v2233 = vstv %s448
          %v2234 = vmul.f32 %v2233, %v2178
          %v2235 = vmul.f32 %v2233, %v2179
          %v2238 = vrot.slane %v2234, 1
          %v2239 = vrot.slane %v2235, 1
          %v2242 = vadd.f32 %v2198, %v2238
          %v2243 = vadd.f32 %v2199, %v2239
          %v2244 = vstv %s295
          %v2245 = vmul.f32 %v2244, %v2178
          %v2246 = vmul.f32 %v2244, %v2179
          %v2249 = vrot.slane %v2245, 2
          %v2250 = vrot.slane %v2246, 2
          %v2253 = vadd.f32 %v2209, %v2249
          %v2254 = vadd.f32 %v2210, %v2250
          %v2255 = vstv %s349
          %v2256 = vmul.f32 %v2255, %v2178
          %v2257 = vmul.f32 %v2255, %v2179
          %v2260 = vrot.slane %v2256, 2
          %v2261 = vrot.slane %v2257, 2
          %v2264 = vadd.f32 %v2220, %v2260
          %v2265 = vadd.f32 %v2221, %v2261
          %v2266 = vstv %s403
          %v2267 = vmul.f32 %v2266, %v2178
          %v2268 = vmul.f32 %v2266, %v2179
          %v2271 = vrot.slane %v2267, 2
          %v2272 = vrot.slane %v2268, 2
          %v2275 = vadd.f32 %v2231, %v2271
          %v2276 = vadd.f32 %v2232, %v2272
          %v2277 = vstv %s457
          %v2278 = vmul.f32 %v2277, %v2178
          %v2279 = vmul.f32 %v2277, %v2179
          %v2282 = vrot.slane %v2278, 2
          %v2283 = vrot.slane %v2279, 2
          %v2286 = vadd.f32 %v2242, %v2282
          %v2287 = vadd.f32 %v2243, %v2283
          %2288 = vrot.lane.b32.xlu0 %v464, 95
          %v2289 = vpop.permute.xlu0 %2288
          %2290 = vrot.lane.b32.xlu0 %v465, 95
          %v2291 = vpop.permute.xlu0 %2290
          %v2292 = vsel %vm1270, %v2289, %v2291
          %v2293 = vsel %vm1270, %v2291, %v2289
          %v2294 = vstv %s278
          %v2295 = vmul.f32 %v2294, %v2292
          %v2296 = vmul.f32 %v2294, %v2293
          %v2297 = vadd.f32 %v2253, %v2295
          %v2298 = vadd.f32 %v2254, %v2296
          %v2299 = vstv %s332
          %v2300 = vmul.f32 %v2299, %v2292
          %v2301 = vmul.f32 %v2299, %v2293
          %v2302 = vadd.f32 %v2264, %v2300
          %v2303 = vadd.f32 %v2265, %v2301
          %v2304 = vstv %s386
          %v2305 = vmul.f32 %v2304, %v2292
          %v2306 = vmul.f32 %v2304, %v2293
          %v2307 = vadd.f32 %v2275, %v2305
          %v2308 = vadd.f32 %v2276, %v2306
          %v2309 = vstv %s440
          %v2310 = vmul.f32 %v2309, %v2292
          %v2311 = vmul.f32 %v2309, %v2293
          %v2312 = vadd.f32 %v2286, %v2310
          %v2313 = vadd.f32 %v2287, %v2311
          %v2314 = vstv %s287
          %v2315 = vmul.f32 %v2314, %v2292
          %v2316 = vmul.f32 %v2314, %v2293
          %v2319 = vrot.slane %v2315, 1
          %v2320 = vrot.slane %v2316, 1
          %v2323 = vadd.f32 %v2297, %v2319
          %v2324 = vadd.f32 %v2298, %v2320
          %v2325 = vstv %s341
          %v2326 = vmul.f32 %v2325, %v2292
          %v2327 = vmul.f32 %v2325, %v2293
          %v2330 = vrot.slane %v2326, 1
          %v2331 = vrot.slane %v2327, 1
          %v2334 = vadd.f32 %v2302, %v2330
          %v2335 = vadd.f32 %v2303, %v2331
          %v2336 = vstv %s395
          %v2337 = vmul.f32 %v2336, %v2292
          %v2338 = vmul.f32 %v2336, %v2293
          %v2341 = vrot.slane %v2337, 1
          %v2342 = vrot.slane %v2338, 1
          %v2345 = vadd.f32 %v2307, %v2341
          %v2346 = vadd.f32 %v2308, %v2342
          %v2347 = vstv %s449
          %v2348 = vmul.f32 %v2347, %v2292
          %v2349 = vmul.f32 %v2347, %v2293
          %v2352 = vrot.slane %v2348, 1
          %v2353 = vrot.slane %v2349, 1
          %v2356 = vadd.f32 %v2312, %v2352
          %v2357 = vadd.f32 %v2313, %v2353
          %v2358 = vstv %s296
          %v2359 = vmul.f32 %v2358, %v2292
          %v2360 = vmul.f32 %v2358, %v2293
          %v2363 = vrot.slane %v2359, 2
          %v2364 = vrot.slane %v2360, 2
          %v2367 = vadd.f32 %v2323, %v2363
          %v2368 = vadd.f32 %v2324, %v2364
          %v2369 = vstv %s350
          %v2370 = vmul.f32 %v2369, %v2292
          %v2371 = vmul.f32 %v2369, %v2293
          %v2374 = vrot.slane %v2370, 2
          %v2375 = vrot.slane %v2371, 2
          %v2378 = vadd.f32 %v2334, %v2374
          %v2379 = vadd.f32 %v2335, %v2375
          %v2380 = vstv %s404
          %v2381 = vmul.f32 %v2380, %v2292
          %v2382 = vmul.f32 %v2380, %v2293
          %v2385 = vrot.slane %v2381, 2
          %v2386 = vrot.slane %v2382, 2
          %v2389 = vadd.f32 %v2345, %v2385
          %v2390 = vadd.f32 %v2346, %v2386
          %v2391 = vstv %s458
          %v2392 = vmul.f32 %v2391, %v2292
          %v2393 = vmul.f32 %v2391, %v2293
          %v2396 = vrot.slane %v2392, 2
          %v2397 = vrot.slane %v2393, 2
          %v2400 = vadd.f32 %v2356, %v2396
          %v2401 = vadd.f32 %v2357, %v2397
          %2402 = vrot.lane.b32.xlu0 %v464, 94
          %v2403 = vpop.permute.xlu0 %2402
          %2404 = vrot.lane.b32.xlu0 %v465, 94
          %v2405 = vpop.permute.xlu0 %2404
          %v2406 = vsel %vm1385, %v2403, %v2405
          %v2407 = vsel %vm1385, %v2405, %v2403
          %v2408 = vstv %s279
          %v2409 = vmul.f32 %v2408, %v2406
          %v2410 = vmul.f32 %v2408, %v2407
          %v2411 = vadd.f32 %v2367, %v2409
          %v2412 = vadd.f32 %v2368, %v2410
          %v2413 = vstv %s333
          %v2414 = vmul.f32 %v2413, %v2406
          %v2415 = vmul.f32 %v2413, %v2407
          %v2416 = vadd.f32 %v2378, %v2414
          %v2417 = vadd.f32 %v2379, %v2415
          %v2418 = vstv %s387
          %v2419 = vmul.f32 %v2418, %v2406
          %v2420 = vmul.f32 %v2418, %v2407
          %v2421 = vadd.f32 %v2389, %v2419
          %v2422 = vadd.f32 %v2390, %v2420
          %v2423 = vstv %s441
          %v2424 = vmul.f32 %v2423, %v2406
          %v2425 = vmul.f32 %v2423, %v2407
          %v2426 = vadd.f32 %v2400, %v2424
          %v2427 = vadd.f32 %v2401, %v2425
          %v2428 = vstv %s288
          %v2429 = vmul.f32 %v2428, %v2406
          %v2430 = vmul.f32 %v2428, %v2407
          %v2433 = vrot.slane %v2429, 1
          %v2434 = vrot.slane %v2430, 1
          %v2437 = vadd.f32 %v2411, %v2433
          %v2438 = vadd.f32 %v2412, %v2434
          %v2439 = vstv %s342
          %v2440 = vmul.f32 %v2439, %v2406
          %v2441 = vmul.f32 %v2439, %v2407
          %v2444 = vrot.slane %v2440, 1
          %v2445 = vrot.slane %v2441, 1
          %v2448 = vadd.f32 %v2416, %v2444
          %v2449 = vadd.f32 %v2417, %v2445
          %v2450 = vstv %s396
          %v2451 = vmul.f32 %v2450, %v2406
          %v2452 = vmul.f32 %v2450, %v2407
          %v2455 = vrot.slane %v2451, 1
          %v2456 = vrot.slane %v2452, 1
          %v2459 = vadd.f32 %v2421, %v2455
          %v2460 = vadd.f32 %v2422, %v2456
          %v2461 = vstv %s450
          %v2462 = vmul.f32 %v2461, %v2406
          %v2463 = vmul.f32 %v2461, %v2407
          %v2466 = vrot.slane %v2462, 1
          %v2467 = vrot.slane %v2463, 1
          %v2470 = vadd.f32 %v2426, %v2466
          %v2471 = vadd.f32 %v2427, %v2467
          %v2472 = vstv %s297
          %v2473 = vmul.f32 %v2472, %v2406
          %v2474 = vmul.f32 %v2472, %v2407
          %v2477 = vrot.slane %v2473, 2
          %v2478 = vrot.slane %v2474, 2
          %v2481 = vadd.f32 %v2437, %v2477
          %v2482 = vadd.f32 %v2438, %v2478
          %v2483 = vstv %s351
          %v2484 = vmul.f32 %v2483, %v2406
          %v2485 = vmul.f32 %v2483, %v2407
          %v2488 = vrot.slane %v2484, 2
          %v2489 = vrot.slane %v2485, 2
          %v2492 = vadd.f32 %v2448, %v2488
          %v2493 = vadd.f32 %v2449, %v2489
          %v2494 = vstv %s405
          %v2495 = vmul.f32 %v2494, %v2406
          %v2496 = vmul.f32 %v2494, %v2407
          %v2499 = vrot.slane %v2495, 2
          %v2500 = vrot.slane %v2496, 2
          %v2503 = vadd.f32 %v2459, %v2499
          %v2504 = vadd.f32 %v2460, %v2500
          %v2505 = vstv %s459
          %v2506 = vmul.f32 %v2505, %v2406
          %v2507 = vmul.f32 %v2505, %v2407
          %v2510 = vrot.slane %v2506, 2
          %v2511 = vrot.slane %v2507, 2
          %v2514 = vadd.f32 %v2470, %v2510
          %v2515 = vadd.f32 %v2471, %v2511
          %v2516 = vxor.u32 %v2481, 2147483648
          %v2517 = vxor.u32 %v2482, 2147483648
          %v2518 = vmul.f32 %v2516, 1.442695
          %v2519 = vpow.pop %v2518
          %v2520 = vmul.f32 %v2517, 1.442695
          %v2521 = vpow.pop %v2520
          %v2522 = vadd.f32 %v2519, 1.0
          %v2523 = vadd.f32 %v2521, 1.0
          %v2524 = vrcp.pop %v2522
          %v2525 = vmul.f32 %v2522, %v2524
          %v2526 = vsub.f32 1.0, %v2525
          %v2527 = vmul.f32 %v2524, %v2526
          %v2528 = vadd.f32 %v2524, %v2527
          %vm2529 = vweird.f32 %v2522
          %vm2530 = vweird.f32 %v2524
          %vm2531 = vmor %vm2529, %vm2530
          %v2532 = vsel %vm2531, %v2524, %v2528
          %v2533 = vand.u32 2147483647, %v2522
          %vm2534 = vcmp.eq.f32.partialorder %v2533, 8.507059e+37
          %v2535 = vand.u32 %v2522, 2147483648
          %v2536 = vor.u32 1.1754944e-38, %v2535
          %v2537 = vsel %vm2534, %v2536, %v2532
          %v2538 = vmul.f32 1.0, %v2537
          %v2539 = vrcp.pop %v2523
          %v2540 = vmul.f32 %v2523, %v2539
          %v2541 = vsub.f32 1.0, %v2540
          %v2542 = vmul.f32 %v2539, %v2541
          %v2543 = vadd.f32 %v2539, %v2542
          %vm2544 = vweird.f32 %v2523
          %vm2545 = vweird.f32 %v2539
          %vm2546 = vmor %vm2544, %vm2545
          %v2547 = vsel %vm2546, %v2539, %v2543
          %v2548 = vand.u32 2147483647, %v2523
          %vm2549 = vcmp.eq.f32.partialorder %v2548, 8.507059e+37
          %v2550 = vand.u32 %v2523, 2147483648
          %v2551 = vor.u32 1.1754944e-38, %v2550
          %v2552 = vsel %vm2549, %v2551, %v2547
          %v2553 = vmul.f32 1.0, %v2552
          %2554 = vst [vmem:[%s197] sm:$0x3f] %v2538
          %2555 = vst [vmem:[%s197 + $0x8] sm:$0x3f] %v2553
          %v2556 = vxor.u32 %v2492, 2147483648
          %v2557 = vxor.u32 %v2493, 2147483648
          %v2558 = vmul.f32 %v2556, 1.442695
          %v2559 = vpow.pop %v2558
          %v2560 = vmul.f32 %v2557, 1.442695
          %v2561 = vpow.pop %v2560
          %v2562 = vadd.f32 %v2559, 1.0
          %v2563 = vadd.f32 %v2561, 1.0
          %v2564 = vrcp.pop %v2562
          %v2565 = vmul.f32 %v2562, %v2564
          %v2566 = vsub.f32 1.0, %v2565
          %v2567 = vmul.f32 %v2564, %v2566
          %v2568 = vadd.f32 %v2564, %v2567
          %vm2569 = vweird.f32 %v2562
          %vm2570 = vweird.f32 %v2564
          %vm2571 = vmor %vm2569, %vm2570
          %v2572 = vsel %vm2571, %v2564, %v2568
          %v2573 = vand.u32 2147483647, %v2562
          %vm2574 = vcmp.eq.f32.partialorder %v2573, 8.507059e+37
          %v2575 = vand.u32 %v2562, 2147483648
          %v2576 = vor.u32 1.1754944e-38, %v2575
          %v2577 = vsel %vm2574, %v2576, %v2572
          %v2578 = vmul.f32 1.0, %v2577
          %v2579 = vrcp.pop %v2563
          %v2580 = vmul.f32 %v2563, %v2579
          %v2581 = vsub.f32 1.0, %v2580
          %v2582 = vmul.f32 %v2579, %v2581
          %v2583 = vadd.f32 %v2579, %v2582
          %vm2584 = vweird.f32 %v2563
          %vm2585 = vweird.f32 %v2579
          %vm2586 = vmor %vm2584, %vm2585
          %v2587 = vsel %vm2586, %v2579, %v2583
          %v2588 = vand.u32 2147483647, %v2563
          %vm2589 = vcmp.eq.f32.partialorder %v2588, 8.507059e+37
          %v2590 = vand.u32 %v2563, 2147483648
          %v2591 = vor.u32 1.1754944e-38, %v2590
          %v2592 = vsel %vm2589, %v2591, %v2587
          %v2593 = vmul.f32 1.0, %v2592
          %s2594 = scalar_lea.vmem %s197, 16
          %2595 = vst [vmem:[%s2594] sm:$0x3f] %v2578
          %2596 = vst [vmem:[%s2594 + $0x8] sm:$0x3f] %v2593
          %v2597 = vxor.u32 %v2503, 2147483648
          %v2598 = vxor.u32 %v2504, 2147483648
          %v2599 = vmul.f32 %v2597, 1.442695
          %v2600 = vpow.pop %v2599
          %v2601 = vmul.f32 %v2598, 1.442695
          %v2602 = vpow.pop %v2601
          %v2603 = vadd.f32 %v2600, 1.0
          %v2604 = vadd.f32 %v2602, 1.0
          %v2605 = vrcp.pop %v2603
          %v2606 = vmul.f32 %v2603, %v2605
          %v2607 = vsub.f32 1.0, %v2606
          %v2608 = vmul.f32 %v2605, %v2607
          %v2609 = vadd.f32 %v2605, %v2608
          %vm2610 = vweird.f32 %v2603
          %vm2611 = vweird.f32 %v2605
          %vm2612 = vmor %vm2610, %vm2611
          %v2613 = vsel %vm2612, %v2605, %v2609
          %v2614 = vand.u32 2147483647, %v2603
          %vm2615 = vcmp.eq.f32.partialorder %v2614, 8.507059e+37
          %v2616 = vand.u32 %v2603, 2147483648
          %v2617 = vor.u32 1.1754944e-38, %v2616
          %v2618 = vsel %vm2615, %v2617, %v2613
          %v2619 = vmul.f32 1.0, %v2618
          %v2620 = vrcp.pop %v2604
          %v2621 = vmul.f32 %v2604, %v2620
          %v2622 = vsub.f32 1.0, %v2621
          %v2623 = vmul.f32 %v2620, %v2622
          %v2624 = vadd.f32 %v2620, %v2623
          %vm2625 = vweird.f32 %v2604
          %vm2626 = vweird.f32 %v2620
          %vm2627 = vmor %vm2625, %vm2626
          %v2628 = vsel %vm2627, %v2620, %v2624
          %v2629 = vand.u32 2147483647, %v2604
          %vm2630 = vcmp.eq.f32.partialorder %v2629, 8.507059e+37
          %v2631 = vand.u32 %v2604, 2147483648
          %v2632 = vor.u32 1.1754944e-38, %v2631
          %v2633 = vsel %vm2630, %v2632, %v2628
          %v2634 = vmul.f32 1.0, %v2633
          %s2635 = scalar_lea.vmem %s197, 32
          %2636 = vst [vmem:[%s2635] sm:$0x3f] %v2619
          %2637 = vst [vmem:[%s2635 + $0x8] sm:$0x3f] %v2634
          %v2638 = vxor.u32 %v2514, 2147483648
          %v2639 = vxor.u32 %v2515, 2147483648
          %v2640 = vmul.f32 %v2638, 1.442695
          %v2641 = vpow.pop %v2640
          %v2642 = vmul.f32 %v2639, 1.442695
          %v2643 = vpow.pop %v2642
          %v2644 = vadd.f32 %v2641, 1.0
          %v2645 = vadd.f32 %v2643, 1.0
          %v2646 = vrcp.pop %v2644
          %v2647 = vmul.f32 %v2644, %v2646
          %v2648 = vsub.f32 1.0, %v2647
          %v2649 = vmul.f32 %v2646, %v2648
          %v2650 = vadd.f32 %v2646, %v2649
          %vm2651 = vweird.f32 %v2644
          %vm2652 = vweird.f32 %v2646
          %vm2653 = vmor %vm2651, %vm2652
          %v2654 = vsel %vm2653, %v2646, %v2650
          %v2655 = vand.u32 2147483647, %v2644
          %vm2656 = vcmp.eq.f32.partialorder %v2655, 8.507059e+37
          %v2657 = vand.u32 %v2644, 2147483648
          %v2658 = vor.u32 1.1754944e-38, %v2657
          %v2659 = vsel %vm2656, %v2658, %v2654
          %v2660 = vmul.f32 1.0, %v2659
          %v2661 = vrcp.pop %v2645
          %v2662 = vmul.f32 %v2645, %v2661
          %v2663 = vsub.f32 1.0, %v2662
          %v2664 = vmul.f32 %v2661, %v2663
          %v2665 = vadd.f32 %v2661, %v2664
          %vm2666 = vweird.f32 %v2645
          %vm2667 = vweird.f32 %v2661
          %vm2668 = vmor %vm2666, %vm2667
          %v2669 = vsel %vm2668, %v2661, %v2665
          %v2670 = vand.u32 2147483647, %v2645
          %vm2671 = vcmp.eq.f32.partialorder %v2670, 8.507059e+37
          %v2672 = vand.u32 %v2645, 2147483648
          %v2673 = vor.u32 1.1754944e-38, %v2672
          %v2674 = vsel %vm2671, %v2673, %v2669
          %v2675 = vmul.f32 1.0, %v2674
          %s2676 = scalar_lea.vmem %s197, 48
          %2677 = vst [vmem:[%s2676] sm:$0x3f] %v2660
          %2678 = vst [vmem:[%s2676 + $0x8] sm:$0x3f] %v2675
        $region44: #{tpu_custom_call.1} parent=27 // pred_fallthru
          _
        %p2679 = scmp.lt.s32.totalorder %s21, 1
        %s2680 = scalar_select %p2679, %s21, 1
        %s2681 = smul.addr %s2680, 8
        %s2682 = smul.addr %s2681, 8
        %s2683 = scalar_lea.vmem %s2, %s2682
        // Predicated region
        $region45: #{tpu_custom_call.1} parent=27 // pred_check
          %p2684 = pneg %p96
        $region46: #{tpu_custom_call.1} parent=27 // pred_check_branch
          %2686 = sbr.rel (%p2684) target = $region48
        $region47: #{tpu_custom_call.1} parent=27 // pred_region
          _
        $region48: #{tpu_custom_call.1} parent=27 // pred_fallthru
          _
      $region28: #{tpu_custom_call.1} parent=5 // pred_fallthru
        _
      %p2687 = scmp.le.s32.totalorder 2, %s12
      // Predicated region
      $region49: #{tpu_custom_call.1} parent=5 // pred_check
        %p2688 = pneg %p2687
      $region50: #{tpu_custom_call.1} parent=5 // pred_check_branch
        %2690 = sbr.rel (%p2688) target = $region52
      $region51: #{tpu_custom_call.1} parent=5 // pred_region
        %s2691 = ssub.s32 %s12, 2
        // Predicated region
        $region53: #{tpu_custom_call.1} parent=51 // pred_check
          %p2692 = pneg %p102
        $region54: #{tpu_custom_call.1} parent=51 // pred_check_branch
          %2694 = sbr.rel (%p2692) target = $region56
        $region55: #{tpu_custom_call.1} parent=51 // pred_region
          %p2695 = scmp.lt.s32.totalorder %s23, 1
          %s2696 = scalar_select %p2695, %s23, 1
          %s2697 = smul.addr %s2696, 8
          %s2698 = smul.addr %s2697, 8
          %s2699 = scalar_lea.vmem %s2, %s2698
        $region56: #{tpu_custom_call.1} parent=51 // pred_fallthru
          _
      $region52: #{tpu_custom_call.1} parent=5 // pred_fallthru
        _
    $region6: #{tpu_custom_call.1} parent=1 // loop_footer
      %s16 = sadd.s32 1, %s12
    $region7: #{tpu_custom_call.1} parent=1 // loop_footer_branch
      %11 = sbr.rel target = $region3
    $region8: #{tpu_custom_call.1} parent=1 // loop_exit
      _
    %2700 = vsyncpa [#allocation5], 1
    %s2701 = scalar_lea.sflag [#allocation5], 1
    %2702 = vsyncpa %s2701, 1
    %2703 = vsyncpa [#allocation6], 1
    %s2704 = scalar_lea.sflag [#allocation6], 1
    %2705 = vsyncpa %s2704, 1

</llo_original>
